<compile_context>
chip_gen: v7x
topology: tpu7x:2x2x1
jax: 0.10.0
libtpu: 0.0.40
codegen_flags: <defaults>
</compile_context>

<pallas_src>
import functools

import jax
import jax.numpy as jnp
from jax import lax
from jax.experimental import pallas as pl
from jax.experimental.pallas import tpu as pltpu


def _round_up(a, b):
    return ((a + b - 1) // b) * b


def _cdiv(a, b):
    return (a + b - 1) // b


# -----------------------------------------------------------------------------
# Kernel 1: streaming spatial pool + fc1.
#   grid = (nB, nS); B-tiles "parallel", spatial tiles "arbitrary".
#   x block (tB, C, tS) in the native layout; pooled-sum accumulator (tB, C)
#   persists across si; fc1 matmul only on the last spatial tile.
#   Ragged spatial lanes / batch rows are masked (no HBM padding is streamed).
# -----------------------------------------------------------------------------
def _pool_fc1_kernel(x_ref, w_ref, o_ref, acc_ref, *,
                     inv_s, s_valid, b_valid, tS, tB, mask_s, mask_b):
    bi = pl.program_id(0)
    si = pl.program_id(1)

    @pl.when(si == 0)
    def _():
        acc_ref[...] = jnp.zeros_like(acc_ref)

    xb = x_ref[...].astype(jnp.float32)                    # (tB, C, tS)

    if mask_s:  # ragged last spatial tile: zero the out-of-range lanes
        lane = lax.broadcasted_iota(jnp.int32, xb.shape, 2)
        xb = jnp.where(si * tS + lane < s_valid, xb, 0.0)

    part = jnp.sum(xb, axis=2)                             # (tB, C)

    if mask_b:  # ragged last batch block: zero the out-of-range rows (post-reduce)
        row = lax.broadcasted_iota(jnp.int32, part.shape, 0)
        part = jnp.where(bi * tB + row < b_valid, part, 0.0)

    acc_ref[...] += part

    @pl.when(si == pl.num_programs(1) - 1)
    def _():
        pooled = acc_ref[...] * inv_s                      # (tB, C)  true mean
        o_ref[...] = jnp.dot(pooled, w_ref[...],
                             preferred_element_type=jnp.float32).astype(o_ref.dtype)


# -----------------------------------------------------------------------------
# Kernel 2: BatchNorm1d (training-mode batch stats) + affine + L2 normalize.
#   Tiny: operates on the full (B, Ep) fc1 output in one block.
# -----------------------------------------------------------------------------
def _bn_l2_kernel(y_ref, gamma_ref, beta_ref, o_ref):
    y = y_ref[...]                                          # (B, Ep) f32
    mean = jnp.mean(y, axis=0, keepdims=True)
    d = y - mean
    var = jnp.mean(d * d, axis=0, keepdims=True)            # biased variance
    yn = d * lax.rsqrt(var + 1e-5)
    yn = yn * gamma_ref[...] + beta_ref[...]
    # F.normalize(p=2, dim=1): clamp sumsq at 1e-24 == clamp ||x|| at 1e-12.
    sumsq = jnp.sum(yn * yn, axis=1, keepdims=True)
    o_ref[...] = (yn * lax.rsqrt(jnp.maximum(sumsq, 1e-24))).astype(o_ref.dtype)


@functools.partial(jax.jit, static_argnames=("emb_size", "block_bytes"))
def _emb_head_pallas(x, w_pad, gamma_pad, beta_pad, emb_size,
                     block_bytes=6 * 1024 * 1024):
    B, C, H, W = x.shape
    S = H * W
    _, Ep = w_pad.shape
    E = emb_size

    # Native layout: (B, C, S) is a pure reshape of NCHW — no HBM data movement.
    x3 = x.reshape(B, C, S)
    itemsize = x3.dtype.itemsize

    # --- batch tiling: >=2 blocks when B >= 16 so v7x's 2nd TensorCore has work;
    #     tB multiple of 8 keeps output blocks sublane-aligned.
    if B < 16:
        tB = B
    else:
        n_b_target = max(2, _cdiv(B, 64))
        tB = _round_up(_cdiv(B, n_b_target), 8)
    nB = _cdiv(B, tB)

    # --- spatial tiling: ~block_bytes x-blocks, divisor-aware, lane dim mult of 128
    bytes_per_s = tB * C * itemsize
    if bytes_per_s * S <= block_bytes or S <= 128:
        tS, nS = S, 1
    else:
        nS = _cdiv(bytes_per_s * S, block_bytes)
        tS = _round_up(_cdiv(S, nS), 128)
        if tS >= S:
            tS, nS = S, 1
        else:
            nS = _cdiv(S, tS)

    mask_s = (S % tS) != 0
    mask_b = (B % tB) != 0

    kern = functools.partial(
        _pool_fc1_kernel, inv_s=1.0 / S, s_valid=S, b_valid=B,
        tS=tS, tB=tB, mask_s=mask_s, mask_b=mask_b)

    x_index_map = lambda bi, si: (bi, 0, si)
    if nS >= 3:
        # Deeper input pipelining helps hide DMA issue latency on v7x.
        try:
            x_spec = pl.BlockSpec((tB, C, tS), x_index_map,
                                  pipeline_mode=pl.Buffered(3))
        except TypeError:  # older BlockSpec without pipeline_mode
            x_spec = pl.BlockSpec((tB, C, tS), x_index_map)
    else:
        x_spec = pl.BlockSpec((tB, C, tS), x_index_map)

    y = pl.pallas_call(
        kern,
        out_shape=jax.ShapeDtypeStruct((B, Ep), jnp.float32),
        grid=(nB, nS),
        in_specs=[
            x_spec,
            pl.BlockSpec((C, Ep), lambda bi, si: (0, 0)),   # weight resident
        ],
        out_specs=pl.BlockSpec((tB, Ep), lambda bi, si: (bi, 0)),
        scratch_shapes=[pltpu.VMEM((tB, C), jnp.float32)],
        compiler_params=pltpu.CompilerParams(
            dimension_semantics=("parallel", "arbitrary"),
            vmem_limit_bytes=40 * 1024 * 1024),
    )(x3, w_pad)

    # y is exactly (B, Ep): ragged-batch writes were dropped / masked, so batch
    # statistics below see only real rows.
    out = pl.pallas_call(
        _bn_l2_kernel,
        out_shape=jax.ShapeDtypeStruct((B, Ep), jnp.float32),
        grid=(1,),
        in_specs=[
            pl.BlockSpec((B, Ep), lambda i: (0, 0)),
            pl.BlockSpec((1, Ep), lambda i: (0, 0)),
            pl.BlockSpec((1, Ep), lambda i: (0, 0)),
        ],
        out_specs=pl.BlockSpec((B, Ep), lambda i: (0, 0)),
        compiler_params=pltpu.CompilerParams(
            dimension_semantics=("arbitrary",)),
    )(y, gamma_pad, beta_pad)

    return out[:, :E]   # drop lane padding of the embedding dim


class EmbHeadPallas:
    """JAX/Pallas port of emb_head."""

    def __init__(self, final_embedding_size=128, num_tokens=196,
                 use_normalization=True, n_local_frames=4, key=None):
        self.final_embedding_size = final_embedding_size
        self.num_tokens = num_tokens
        self.use_normalization = use_normalization  # unused in forward, kept for parity
        self.n_local_frames = n_local_frames        # unused in forward, kept for parity
        self.block_bytes = 6 * 1024 * 1024          # ~6 MiB x-blocks (see notes)
        if key is None:
            key = jax.random.PRNGKey(0)

        # fc1 ~ U(-1/sqrt(fan_in), 1/sqrt(fan_in)) (PyTorch default); BN gamma=1, beta=0.
        bound = 1.0 / (num_tokens ** 0.5)
        self.w_fc1 = jax.random.uniform(
            key, (final_embedding_size, num_tokens),
            minval=-bound, maxval=bound, dtype=jnp.float32)
        self.gamma = jnp.ones((final_embedding_size,), jnp.float32)
        self.beta = jnp.zeros((final_embedding_size,), jnp.float32)

        # Pre-transpose + pre-pad once at init: (E, C) -> (C, Ep).  Only the
        # embedding dim is padded (to a lane multiple); padded output features
        # are exactly 0 through BN and the L2 sum, so they are no-ops.
        Ep = _round_up(final_embedding_size, 128)
        self.w_pad = (jnp.zeros((num_tokens, Ep), jnp.float32)
                      .at[:, :final_embedding_size].set(self.w_fc1.T))
        self.gamma_pad = (jnp.zeros((1, Ep), jnp.float32)
                          .at[:, :final_embedding_size].set(self.gamma))
        self.beta_pad = (jnp.zeros((1, Ep), jnp.float32)
                         .at[:, :final_embedding_size].set(self.beta))

    def __call__(self, x, type):
        # x: (B, C, H, W) NCHW, with C == num_tokens (fc1 input width)
        if type not in ("l", "g"):
            return (None, None, None, None, None)
        B, C, H, W = x.shape
        assert C == self.num_tokens, "channel dim must equal num_tokens (fc1 input)"
        return _emb_head_pallas(x, self.w_pad, self.gamma_pad, self.beta_pad,
                                emb_size=self.final_embedding_size,
                                block_bytes=self.block_bytes)


def _reference(x, w, gamma, beta):
    # Pure-JAX reference mirroring the PyTorch forward (training-mode BN).
    B, C, H, W = x.shape
    pooled = x.reshape(B, C, H * W).mean(-1)          # (B, C)
    y = pooled @ w.T                                  # (B, E)
    mean = y.mean(0, keepdims=True)
    var = ((y - mean) ** 2).mean(0, keepdims=True)
    y = (y - mean) / jnp.sqrt(var + 1e-5) * gamma + beta
    n = jnp.sqrt((y * y).sum(1, keepdims=True))
    return y / jnp.maximum(n, 1e-12)


if __name__ == "__main__":
    key = jax.random.PRNGKey(0)
    k1, k2, k3, k4, k5 = jax.random.split(key, 5)

    # --- Test 1: module defaults (E=128, num_tokens=196), spatial 20x20.
    #     B=8 -> single B block, single S block (simple path).
    B, C, H, W = 8, 196, 20, 20
    E = 128
    head = EmbHeadPallas(final_embedding_size=E, num_tokens=C, key=k1)
    x = jax.random.normal(k2, (B, C, H, W), dtype=jnp.float32)

    out_l = head(x, "l")
    out_g = head(x, "g")
    jax.block_until_ready((out_l, out_g))

    ref = _reference(x, head.w_fc1, head.gamma, head.beta)
    assert out_l.shape == (B, E)
    assert jnp.allclose(out_l, ref, atol=1e-4, rtol=1e-4), \
        float(jnp.max(jnp.abs(out_l - ref)))
    assert jnp.allclose(out_g, ref, atol=1e-4, rtol=1e-4)
    assert head(x, "x") == (None, None, None, None, None)

    # --- Test 2: E=64 (output lane padding 64->128), small odd spatial (7x7).
    B2, C2, H2, W2, E2 = 4, 128, 7, 7, 64
    head2 = EmbHeadPallas(final_embedding_size=E2, num_tokens=C2, key=k3)
    x2 = jax.random.normal(k4, (B2, C2, H2, W2), dtype=jnp.float32)
    out2 = head2(x2, "l")
    jax.block_until_ready(out2)
    ref2 = _reference(x2, head2.w_fc1, head2.gamma, head2.beta)
    assert out2.shape == (B2, E2)
    assert jnp.allclose(out2, ref2, atol=1e-4, rtol=1e-4), \
        float(jnp.max(jnp.abs(out2 - ref2)))

    # --- Test 3: exercise the pipelined streaming path with a tiny block budget:
    #     multi S-tiles (ragged last tile masked), 2 B-blocks (ragged last block
    #     masked), Buffered(3) input pipelining.
    B3, C3, H3, W3, E3 = 20, 196, 20, 20, 128
    head3 = EmbHeadPallas(final_embedding_size=E3, num_tokens=C3, key=k1)
    head3.block_bytes = 256 * 1024
    x3 = jax.random.normal(k5, (B3, C3, H3, W3), dtype=jnp.float32)
    out3 = head3(x3, "g")
    jax.block_until_ready(out3)
    ref3 = _reference(x3, head3.w_fc1, head3.gamma, head3.beta)
    assert out3.shape == (B3, E3)
    assert jnp.allclose(out3, ref3, atol=1e-4, rtol=1e-4), \
        float(jnp.max(jnp.abs(out3 - ref3)))

    print("KERNEL_OK")
</pallas_src>

<mosaic_0001>
module attributes {stable_mosaic.version = 11 : i64} {
  func.func @_bn_l2_kernel(%arg0: i32, %arg1: memref<8x128xf32, #tpu.memory_space<vmem>>, %arg2: memref<1x128xf32, #tpu.memory_space<vmem>>, %arg3: memref<1x128xf32, #tpu.memory_space<vmem>>, %arg4: memref<8x128xf32, #tpu.memory_space<vmem>>) attributes {dimension_semantics = [#tpu.dimension_semantics<arbitrary>], iteration_bounds = array<i64: 1>, scalar_prefetch = 0 : i64, scratch_operands = 0 : i64, tpu.core_type = #tpu.core_type<tc>, window_params = [{pipeline_mode = #tpu.pipeline_mode<synchronous>, transform_indices = @transform_0, window_bounds = array<i64: 8, 128>}, {pipeline_mode = #tpu.pipeline_mode<synchronous>, transform_indices = @transform_1, window_bounds = array<i64: 1, 128>}, {pipeline_mode = #tpu.pipeline_mode<synchronous>, transform_indices = @transform_2, window_bounds = array<i64: 1, 128>}, {pipeline_mode = #tpu.pipeline_mode<synchronous>, transform_indices = @transform_3, window_bounds = array<i64: 8, 128>}]} {
    %c0 = arith.constant 0 : index
    %c0_0 = arith.constant 0 : index
    %0 = vector.load %arg1[%c0, %c0_0] : memref<8x128xf32, #tpu.memory_space<vmem>>, vector<8x128xf32>
    %cst = arith.constant dense<0.000000e+00> : vector<128xf32>
    %1 = vector.multi_reduction <add>, %0, %cst [0] : vector<8x128xf32> to vector<128xf32>
    %2 = vector.shape_cast %1 : vector<128xf32> to vector<1x128xf32>
    %cst_1 = arith.constant 8.000000e+00 : f32
    %3 = vector.broadcast %cst_1 : f32 to vector<1x128xf32>
    %4 = arith.divf %2, %3 : vector<1x128xf32>
    %5 = vector.broadcast %4 : vector<1x128xf32> to vector<8x128xf32>
    %6 = arith.subf %0, %5 : vector<8x128xf32>
    %7 = arith.mulf %6, %6 : vector<8x128xf32>
    %cst_2 = arith.constant dense<0.000000e+00> : vector<128xf32>
    %8 = vector.multi_reduction <add>, %7, %cst_2 [0] : vector<8x128xf32> to vector<128xf32>
    %9 = vector.shape_cast %8 : vector<128xf32> to vector<1x128xf32>
    %cst_3 = arith.constant 8.000000e+00 : f32
    %10 = vector.broadcast %cst_3 : f32 to vector<1x128xf32>
    %11 = arith.divf %9, %10 : vector<1x128xf32>
    %cst_4 = arith.constant 9.99999974E-6 : f32
    %12 = vector.broadcast %cst_4 : f32 to vector<1x128xf32>
    %13 = arith.addf %11, %12 : vector<1x128xf32>
    %14 = math.rsqrt %13 : vector<1x128xf32>
    %15 = vector.broadcast %14 : vector<1x128xf32> to vector<8x128xf32>
    %16 = arith.mulf %6, %15 : vector<8x128xf32>
    %c0_5 = arith.constant 0 : index
    %c0_6 = arith.constant 0 : index
    %17 = vector.load %arg2[%c0_5, %c0_6] : memref<1x128xf32, #tpu.memory_space<vmem>>, vector<1x128xf32>
    %18 = vector.broadcast %17 : vector<1x128xf32> to vector<8x128xf32>
    %19 = arith.mulf %16, %18 : vector<8x128xf32>
    %c0_7 = arith.constant 0 : index
    %c0_8 = arith.constant 0 : index
    %20 = vector.load %arg3[%c0_7, %c0_8] : memref<1x128xf32, #tpu.memory_space<vmem>>, vector<1x128xf32>
    %21 = vector.broadcast %20 : vector<1x128xf32> to vector<8x128xf32>
    %22 = arith.addf %19, %21 : vector<8x128xf32>
    %23 = arith.mulf %22, %22 : vector<8x128xf32>
    %cst_9 = arith.constant dense<0.000000e+00> : vector<8xf32>
    %24 = vector.multi_reduction <add>, %23, %cst_9 [1] : vector<8x128xf32> to vector<8xf32>
    %25 = vector.shape_cast %24 : vector<8xf32> to vector<8x1xf32>
    %cst_10 = arith.constant 1.000000e-24 : f32
    %26 = vector.broadcast %cst_10 : f32 to vector<8x1xf32>
    %27 = arith.maximumf %25, %26 : vector<8x1xf32>
    %28 = math.rsqrt %27 : vector<8x1xf32>
    %29 = vector.broadcast %28 : vector<8x1xf32> to vector<8x128xf32>
    %30 = arith.mulf %22, %29 : vector<8x128xf32>
    %c0_11 = arith.constant 0 : index
    %c0_12 = arith.constant 0 : index
    %31 = vector.load %arg4[%c0_11, %c0_12] : memref<8x128xf32, #tpu.memory_space<vmem>>, vector<8x128xf32>
    tpu.vector_store %arg4[%c0_11, %c0_12], %30 {strides = array<i32>} : memref<8x128xf32, #tpu.memory_space<vmem>>, vector<8x128xf32>,
    return
  }
  func.func @transform_0(%arg0: i32) -> (i32, i32) {
    %c0_i32 = arith.constant 0 : i32
    %c0_i32_0 = arith.constant 0 : i32
    %c0_i32_1 = arith.constant 0 : i32
    return %c0_i32, %c0_i32_0 : i32, i32
  }
  func.func @transform_1(%arg0: i32) -> (i32, i32) {
    %c0_i32 = arith.constant 0 : i32
    %c0_i32_0 = arith.constant 0 : i32
    %c0_i32_1 = arith.constant 0 : i32
    return %c0_i32, %c0_i32_0 : i32, i32
  }
  func.func @transform_2(%arg0: i32) -> (i32, i32) {
    %c0_i32 = arith.constant 0 : i32
    %c0_i32_0 = arith.constant 0 : i32
    %c0_i32_1 = arith.constant 0 : i32
    return %c0_i32, %c0_i32_0 : i32, i32
  }
  func.func @transform_3(%arg0: i32) -> (i32, i32) {
    %c0_i32 = arith.constant 0 : i32
    %c0_i32_0 = arith.constant 0 : i32
    %c0_i32_1 = arith.constant 0 : i32
    return %c0_i32, %c0_i32_0 : i32, i32
  }
}

module attributes {stable_mosaic.version = 11 : i64} {
  func.func @_pool_fc1_kernel(%arg0: i32, %arg1: i32, %arg2: memref<8x196x400xf32, #tpu.memory_space<vmem>>, %arg3: memref<196x128xf32, #tpu.memory_space<vmem>>, %arg4: memref<8x128xf32, #tpu.memory_space<vmem>>, %arg5: memref<8x196xf32, #tpu.memory_space<vmem>>) attributes {dimension_semantics = [#tpu.dimension_semantics<parallel>, #tpu.dimension_semantics<arbitrary>], iteration_bounds = array<i64: 1, 1>, scalar_prefetch = 0 : i64, scratch_operands = 1 : i64, tpu.core_type = #tpu.core_type<tc>, window_params = [{transform_indices = @transform_0, window_bounds = array<i64: 8, 196, 400>}, {pipeline_mode = #tpu.pipeline_mode<synchronous>, transform_indices = @transform_1, window_bounds = array<i64: 196, 128>}, {transform_indices = @transform_2, window_bounds = array<i64: 8, 128>}]} {
    %c0_i32 = arith.constant 0 : i32
    %0 = arith.cmpi eq, %arg1, %c0_i32 : i32
    %1 = arith.extui %0 : i1 to i32
    %c0_i32_0 = arith.constant 0 : i32
    %2 = arith.cmpi ne, %1, %c0_i32_0 : i32
    scf.if %2 {
      %cst_9 = arith.constant 0.000000e+00 : f32
      %11 = vector.broadcast %cst_9 : f32 to vector<8x196xf32>
      %c0_10 = arith.constant 0 : index
      %c0_11 = arith.constant 0 : index
      %12 = vector.load %arg5[%c0_10, %c0_11] : memref<8x196xf32, #tpu.memory_space<vmem>>, vector<8x196xf32>
      tpu.vector_store %arg5[%c0_10, %c0_11], %11 {strides = array<i32>} : memref<8x196xf32, #tpu.memory_space<vmem>>, vector<8x196xf32>,
    } else {
    }
    %c0 = arith.constant 0 : index
    %c0_1 = arith.constant 0 : index
    %c0_2 = arith.constant 0 : index
    %3 = vector.load %arg2[%c0, %c0_1, %c0_2] : memref<8x196x400xf32, #tpu.memory_space<vmem>>, vector<8x196x400xf32>
    %cst = arith.constant dense<0.000000e+00> : vector<8x196xf32>
    %4 = vector.multi_reduction <add>, %3, %cst [2] : vector<8x196x400xf32> to vector<8x196xf32>
    %c0_3 = arith.constant 0 : index
    %c0_4 = arith.constant 0 : index
    %5 = vector.load %arg5[%c0_3, %c0_4] : memref<8x196xf32, #tpu.memory_space<vmem>>, vector<8x196xf32>
    %6 = arith.addf %5, %4 : vector<8x196xf32>
    %c0_5 = arith.constant 0 : index
    %c0_6 = arith.constant 0 : index
    %7 = vector.load %arg5[%c0_5, %c0_6] : memref<8x196xf32, #tpu.memory_space<vmem>>, vector<8x196xf32>
    tpu.vector_store %arg5[%c0_5, %c0_6], %6 {strides = array<i32>} : memref<8x196xf32, #tpu.memory_space<vmem>>, vector<8x196xf32>,
    %c0_i32_7 = arith.constant 0 : i32
    %8 = arith.cmpi eq, %arg1, %c0_i32_7 : i32
    %9 = arith.extui %8 : i1 to i32
    %c0_i32_8 = arith.constant 0 : i32
    %10 = arith.cmpi ne, %9, %c0_i32_8 : i32
    scf.if %10 {
      %c0_9 = arith.constant 0 : index
      %c0_10 = arith.constant 0 : index
      %11 = vector.load %arg5[%c0_9, %c0_10] : memref<8x196xf32, #tpu.memory_space<vmem>>, vector<8x196xf32>
      %cst_11 = arith.constant 2.500000e-03 : f32
      %12 = vector.broadcast %cst_11 : f32 to vector<8x196xf32>
      %13 = arith.mulf %11, %12 : vector<8x196xf32>
      %c0_12 = arith.constant 0 : index
      %c0_13 = arith.constant 0 : index
      %14 = vector.load %arg3[%c0_12, %c0_13] : memref<196x128xf32, #tpu.memory_space<vmem>>, vector<196x128xf32>
      %cst_14 = arith.constant dense<0.000000e+00> : vector<8x128xf32>
      %15 = tpu.matmul %13, %14, %cst_14 {dimension_numbers = #tpu.dot_dimension_numbers<[1], [0], [0], [1], [0, 0, 1, 1], [], []>} : vector<8x196xf32>, vector<196x128xf32>, vector<8x128xf32> -> vector<8x128xf32>
      %c0_15 = arith.constant 0 : index
      %c0_16 = arith.constant 0 : index
      %16 = vector.load %arg4[%c0_15, %c0_16] : memref<8x128xf32, #tpu.memory_space<vmem>>, vector<8x128xf32>
      tpu.vector_store %arg4[%c0_15, %c0_16], %15 {strides = array<i32>} : memref<8x128xf32, #tpu.memory_space<vmem>>, vector<8x128xf32>,
    } else {
    }
    return
  }
  func.func @transform_0(%arg0: i32, %arg1: i32) -> (i32, i32, i32) {
    %c0_i32 = arith.constant 0 : i32
    %c0_i32_0 = arith.constant 0 : i32
    return %arg0, %c0_i32, %arg1 : i32, i32, i32
  }
  func.func @transform_1(%arg0: i32, %arg1: i32) -> (i32, i32) {
    %c0_i32 = arith.constant 0 : i32
    %c0_i32_0 = arith.constant 0 : i32
    %c0_i32_1 = arith.constant 0 : i32
    return %c0_i32, %c0_i32_0 : i32, i32
  }
  func.func @transform_2(%arg0: i32, %arg1: i32) -> (i32, i32) {
    %c0_i32 = arith.constant 0 : i32
    %c0_i32_0 = arith.constant 0 : i32
    return %arg0, %c0_i32 : i32, i32
  }
}

</mosaic_0001>

<llo_original>
// kernel: _emb_head_pallas.3
$region0: #{_emb_head_pallas.3}
  #allocation0 [shape = 'u32[]', space=smem, size = 0x4, offset = 0x4, fixed_abs, tag = 'smem constant byte address 0x4 - core index']
  #allocation1 [shape = 'u32[144,128]{1,0:T(1,128)}', space=vmem, size = 0x12000, scoped, tag = 'internal scratch']
  %s0 = inlined_call_operand.vmem [shape: f32[8,128], index: 0, kind: input, shape index: {}]
  %s1 = inlined_call_operand.vmem [shape: f32[1,128], index: 1, kind: input, shape index: {}]
  %s2 = inlined_call_operand.vmem [shape: f32[1,128], index: 2, kind: input, shape index: {}]
  %s3 = inlined_call_operand.hbm [shape: f32[8,128], index: 3, kind: output, shape index: {}]
  %s4 = sld [smem:[#allocation0]]
  $region22: #{_emb_head_pallas.3} parent=0
    _
  %s6 = ssub.s32 1, %s4
  %s7 = scalar_select 0, %s6, %s4
  $region1: #{_emb_head_pallas.3} parent=0
    #allocation2 [shape = 'u8[4096]{0}', space=vmem, size = 0x1000, scoped, tag = 'output window, operand 0, single buffered']
    #allocation3 [shape = 's32[1]{0}', space=sflag, size = 0x4, scoped, tag = 'scoped memory for _emb_head_pallas.3']
    %8 = vsyncpa [#allocation3], 0
    // Predicated region
    $region2: #{_emb_head_pallas.3} parent=1 // pred_check
      _
    $region3: #{_emb_head_pallas.3} parent=1 // pred_check_branch
      %10 = sbr.rel (0) target = $region5
    $region4: #{_emb_head_pallas.3} parent=1 // pred_region
      _
    $region5: #{_emb_head_pallas.3} parent=1 // pred_fallthru
      _
    // Predicated region
    $region6: #{_emb_head_pallas.3} parent=1 // pred_check
      _
    $region7: #{_emb_head_pallas.3} parent=1 // pred_check_branch
      %12 = sbr.rel (0) target = $region9
    $region8: #{_emb_head_pallas.3} parent=1 // pred_region
      _
    $region9: #{_emb_head_pallas.3} parent=1 // pred_fallthru
      _
    // Predicated region
    $region10: #{_emb_head_pallas.3} parent=1 // pred_check
      _
    $region11: #{_emb_head_pallas.3} parent=1 // pred_check_branch
      %14 = sbr.rel (0) target = $region13
    $region12: #{_emb_head_pallas.3} parent=1 // pred_region
      _
    $region13: #{_emb_head_pallas.3} parent=1 // pred_fallthru
      _
    %v15 = vld [vmem:[%s0] sm:$0xff]
    %v16 = vrot.slane %v15, 4
    %v17 = vadd.f32 %v15, %v16
    %v18 = vrot.slane %v17, 2
    %v19 = vadd.f32 %v17, %v18
    %v20 = vrot.slane %v19, 1
    %v21 = vadd.f32 %v19, %v20
    %v22 = vrcp.pop 8.0
    %v23 = vmul.f32 %v21, %v22
    %v24 = vsub.f32 %v15, %v23
    %v25 = vmul.f32 %v24, %v24
    %v26 = vrot.slane %v25, 4
    %v27 = vadd.f32 %v25, %v26
    %v28 = vrot.slane %v27, 2
    %v29 = vadd.f32 %v27, %v28
    %v30 = vrot.slane %v29, 1
    %v31 = vadd.f32 %v29, %v30
    %v32 = vmul.f32 %v31, %v22
    %v33 = vadd.f32 %v32, 1e-05
    %v34 = vrsqrt.pop %v33
    %v35 = vmul.f32 %v24, %v34
    %v36 = vld [vmem:[%s1] sm:$0x1]
    %v38 = vlaneseq
    %v39 = vshrl.u32 %v38, 7
    %v40 = vsub.s32 0, %v39
    %v41 = vrot.slane %v36, %v40
    %v43 = vmul.f32 %v35, %v41
    %v44 = vld [vmem:[%s2] sm:$0x1]
    %v46 = vlaneseq
    %v47 = vshrl.u32 %v46, 7
    %v48 = vsub.s32 0, %v47
    %v49 = vrot.slane %v44, %v48
    %v51 = vadd.f32 %v43, %v49
    %v52 = vmul.f32 %v51, %v51
    %53 = vadd.xlane.f32.xlu0 %v52
    %v54 = vpop.xlane.xlu0 %53
    %v55 = vmax.f32 %v54, 1e-24
    %v56 = vrsqrt.pop %v55
    %v57 = vmul.f32 %v51, %v56
    %58 = vst [vmem:[#allocation2] sm:$0xff] %v57
    // Predicated region
    $region14: #{_emb_head_pallas.3} parent=1 // pred_check
      _
    $region15: #{_emb_head_pallas.3} parent=1 // pred_check_branch
      %60 = sbr.rel (0) target = $region17
    $region16: #{_emb_head_pallas.3} parent=1 // pred_region
      %s62 = ssub.s32 128, 128
      %63 = vsyncadd [#allocation3], %s62
      %s65 = sshll.u32 [#allocation2], 4
      %s66 = int_to_ptr.vmem [resolvable:$true] %s65
      %68 = dma.vmem_to_hbm [thread:$0]  %s66, 128, %s3, [#allocation3]
    $region17: #{_emb_head_pallas.3} parent=1 // pred_fallthru
      _
    // Predicated region
    $region18: #{_emb_head_pallas.3} parent=1 // pred_check
      _
    $region19: #{_emb_head_pallas.3} parent=1 // pred_check_branch
      %70 = sbr.rel (0) target = $region21
    $region20: #{_emb_head_pallas.3} parent=1 // pred_region
      %71 = dma.done [#allocation3], 128
    $region21: #{_emb_head_pallas.3} parent=1 // pred_fallthru
      _
    %72 = vsyncpa [#allocation3], 1

// kernel: _emb_head_pallas.2
$region0: #{_emb_head_pallas.2}
  #allocation0 [shape = 'u32[]', space=smem, size = 0x4, offset = 0x4, fixed_abs, tag = 'smem constant byte address 0x4 - core index']
  #allocation1 [shape = 'u32[144,128]{1,0:T(1,128)}', space=vmem, size = 0x12000, scoped, tag = 'internal scratch']
  #allocation2 [shape = 'f32[8,196]{1,0:T(8,128)}', space=vmem, size = 0x2000, scoped, tag = 'scratch operand']
  %s0 = inlined_call_operand.vmem [shape: f32[8,196,400], index: 0, kind: input, shape index: {}]
  %s1 = inlined_call_operand.vmem [shape: f32[196,128], index: 1, kind: input, shape index: {}]
  %s2 = inlined_call_operand.vmem [shape: f32[8,128], index: 2, kind: output, shape index: {}]
  %s3 = sld [smem:[#allocation0]]
  $region26: #{_emb_head_pallas.2} parent=0
    _
  %s5 = ssub.s32 1, %s3
  %s6 = scalar_select 0, %s5, %s3
  // Predicated region
  $region2: #{_emb_head_pallas.2} parent=0 // pred_check
    _
  $region3: #{_emb_head_pallas.2} parent=0 // pred_check_branch
    %8 = sbr.rel (0) target = $region5
  $region4: #{_emb_head_pallas.2} parent=0 // pred_region
    _
  $region5: #{_emb_head_pallas.2} parent=0 // pred_fallthru
    _
  // Predicated region
  $region6: #{_emb_head_pallas.2} parent=0 // pred_check
    _
  $region7: #{_emb_head_pallas.2} parent=0 // pred_check_branch
    %10 = sbr.rel (0) target = $region9
  $region8: #{_emb_head_pallas.2} parent=0 // pred_region
    _
  $region9: #{_emb_head_pallas.2} parent=0 // pred_fallthru
    _
  %p11 = scmp.eq.s32.totalorder 0, 0
  // Predicated region
  $region10: #{_emb_head_pallas.2} parent=0 // pred_check
    %p12 = pneg %p11
  $region11: #{_emb_head_pallas.2} parent=0 // pred_check_branch
    %14 = sbr.rel (%p12) target = $region13
  $region12: #{_emb_head_pallas.2} parent=0 // pred_region
    %15 = vst [vmem:[#allocation2] sm:$0xff] 0.0
    %vm16 = vcmask 556032
    %17 = vst.msk [vmem:[#allocation2 + $0x8] sm:$0xff] %vm16, 0.0
  $region13: #{_emb_head_pallas.2} parent=0 // pred_fallthru
    _
  %v18 = vld [vmem:[%s0] sm:$0xff]
  %v19 = vld [vmem:[%s0 + $0x8] sm:$0xff]
  %v20 = vld [vmem:[%s0 + $0x10] sm:$0xff]
  %v21 = vld [vmem:[%s0 + $0x18] sm:$0xff]
  %v22 = vld [vmem:[%s0 + $0x20] sm:$0xff]
  %v23 = vld [vmem:[%s0 + $0x28] sm:$0xff]
  %v24 = vld [vmem:[%s0 + $0x30] sm:$0xff]
  %v25 = vld [vmem:[%s0 + $0x38] sm:$0xff]
  %v26 = vld [vmem:[%s0 + $0x40] sm:$0xff]
  %v27 = vld [vmem:[%s0 + $0x48] sm:$0xff]
  %v28 = vld [vmem:[%s0 + $0x50] sm:$0xff]
  %v29 = vld [vmem:[%s0 + $0x58] sm:$0xff]
  %v30 = vld [vmem:[%s0 + $0x60] sm:$0xff]
  %v31 = vld [vmem:[%s0 + $0x68] sm:$0xff]
  %v32 = vld [vmem:[%s0 + $0x70] sm:$0xff]
  %v33 = vld [vmem:[%s0 + $0x78] sm:$0xff]
  %v34 = vld [vmem:[%s0 + $0x80] sm:$0xff]
  %v35 = vld [vmem:[%s0 + $0x88] sm:$0xff]
  %v36 = vld [vmem:[%s0 + $0x90] sm:$0xff]
  %v37 = vld [vmem:[%s0 + $0x98] sm:$0xff]
  %v38 = vld [vmem:[%s0 + $0xa0] sm:$0xff]
  %v39 = vld [vmem:[%s0 + $0xa8] sm:$0xff]
  %v40 = vld [vmem:[%s0 + $0xb0] sm:$0xff]
  %v41 = vld [vmem:[%s0 + $0xb8] sm:$0xff]
  %v42 = vld [vmem:[%s0 + $0xc0] sm:$0xff]
  %v43 = vld [vmem:[%s0 + $0xc8] sm:$0xff]
  %v44 = vld [vmem:[%s0 + $0xd0] sm:$0xff]
  %v45 = vld [vmem:[%s0 + $0xd8] sm:$0xff]
  %v46 = vld [vmem:[%s0 + $0xe0] sm:$0xff]
  %v47 = vld [vmem:[%s0 + $0xe8] sm:$0xff]
  %v48 = vld [vmem:[%s0 + $0xf0] sm:$0xff]
  %v49 = vld [vmem:[%s0 + $0xf8] sm:$0xff]
  %v50 = vld [vmem:[%s0 + $0x100] sm:$0xff]
  %v51 = vld [vmem:[%s0 + $0x108] sm:$0xff]
  %v52 = vld [vmem:[%s0 + $0x110] sm:$0xff]
  %v53 = vld [vmem:[%s0 + $0x118] sm:$0xff]
  %v54 = vld [vmem:[%s0 + $0x120] sm:$0xff]
  %v55 = vld [vmem:[%s0 + $0x128] sm:$0xff]
  %v56 = vld [vmem:[%s0 + $0x130] sm:$0xff]
  %v57 = vld [vmem:[%s0 + $0x138] sm:$0xff]
  %v58 = vld [vmem:[%s0 + $0x140] sm:$0xff]
  %v59 = vld [vmem:[%s0 + $0x148] sm:$0xff]
  %v60 = vld [vmem:[%s0 + $0x150] sm:$0xff]
  %v61 = vld [vmem:[%s0 + $0x158] sm:$0xff]
  %v62 = vld [vmem:[%s0 + $0x160] sm:$0xff]
  %v63 = vld [vmem:[%s0 + $0x168] sm:$0xff]
  %v64 = vld [vmem:[%s0 + $0x170] sm:$0xff]
  %v65 = vld [vmem:[%s0 + $0x178] sm:$0xff]
  %v66 = vld [vmem:[%s0 + $0x180] sm:$0xff]
  %v67 = vld [vmem:[%s0 + $0x188] sm:$0xff]
  %v68 = vld [vmem:[%s0 + $0x190] sm:$0xff]
  %v69 = vld [vmem:[%s0 + $0x198] sm:$0xff]
  %v70 = vld [vmem:[%s0 + $0x1a0] sm:$0xff]
  %v71 = vld [vmem:[%s0 + $0x1a8] sm:$0xff]
  %v72 = vld [vmem:[%s0 + $0x1b0] sm:$0xff]
  %v73 = vld [vmem:[%s0 + $0x1b8] sm:$0xff]
  %v74 = vld [vmem:[%s0 + $0x1c0] sm:$0xff]
  %v75 = vld [vmem:[%s0 + $0x1c8] sm:$0xff]
  %v76 = vld [vmem:[%s0 + $0x1d0] sm:$0xff]
  %v77 = vld [vmem:[%s0 + $0x1d8] sm:$0xff]
  %v78 = vld [vmem:[%s0 + $0x1e0] sm:$0xff]
  %v79 = vld [vmem:[%s0 + $0x1e8] sm:$0xff]
  %v80 = vld [vmem:[%s0 + $0x1f0] sm:$0xff]
  %v81 = vld [vmem:[%s0 + $0x1f8] sm:$0xff]
  %v82 = vld [vmem:[%s0 + $0x200] sm:$0xff]
  %v83 = vld [vmem:[%s0 + $0x208] sm:$0xff]
  %v84 = vld [vmem:[%s0 + $0x210] sm:$0xff]
  %v85 = vld [vmem:[%s0 + $0x218] sm:$0xff]
  %v86 = vld [vmem:[%s0 + $0x220] sm:$0xff]
  %v87 = vld [vmem:[%s0 + $0x228] sm:$0xff]
  %v88 = vld [vmem:[%s0 + $0x230] sm:$0xff]
  %v89 = vld [vmem:[%s0 + $0x238] sm:$0xff]
  %v90 = vld [vmem:[%s0 + $0x240] sm:$0xff]
  %v91 = vld [vmem:[%s0 + $0x248] sm:$0xff]
  %v92 = vld [vmem:[%s0 + $0x250] sm:$0xff]
  %v93 = vld [vmem:[%s0 + $0x258] sm:$0xff]
  %v94 = vld [vmem:[%s0 + $0x260] sm:$0xff]
  %v95 = vld [vmem:[%s0 + $0x268] sm:$0xff]
  %v96 = vld [vmem:[%s0 + $0x270] sm:$0xff]
  %v97 = vld [vmem:[%s0 + $0x278] sm:$0xff]
  %v98 = vld [vmem:[%s0 + $0x280] sm:$0xff]
  %v99 = vld [vmem:[%s0 + $0x288] sm:$0xff]
  %v100 = vld [vmem:[%s0 + $0x290] sm:$0xff]
  %v101 = vld [vmem:[%s0 + $0x298] sm:$0xff]
  %v102 = vld [vmem:[%s0 + $0x2a0] sm:$0xff]
  %v103 = vld [vmem:[%s0 + $0x2a8] sm:$0xff]
  %v104 = vld [vmem:[%s0 + $0x2b0] sm:$0xff]
  %v105 = vld [vmem:[%s0 + $0x2b8] sm:$0xff]
  %v106 = vld [vmem:[%s0 + $0x2c0] sm:$0xff]
  %v107 = vld [vmem:[%s0 + $0x2c8] sm:$0xff]
  %v108 = vld [vmem:[%s0 + $0x2d0] sm:$0xff]
  %v109 = vld [vmem:[%s0 + $0x2d8] sm:$0xff]
  %v110 = vld [vmem:[%s0 + $0x2e0] sm:$0xff]
  %v111 = vld [vmem:[%s0 + $0x2e8] sm:$0xff]
  %v112 = vld [vmem:[%s0 + $0x2f0] sm:$0xff]
  %v113 = vld [vmem:[%s0 + $0x2f8] sm:$0xff]
  %v114 = vld [vmem:[%s0 + $0x300] sm:$0xf]
  %v115 = vld [vmem:[%s0 + $0x308] sm:$0xf]
  %v116 = vld [vmem:[%s0 + $0x310] sm:$0xf]
  %v117 = vld [vmem:[%s0 + $0x318] sm:$0xf]
  %v118 = vld [vmem:[%s0 + $0x320] sm:$0xff]
  %v119 = vld [vmem:[%s0 + $0x328] sm:$0xff]
  %v120 = vld [vmem:[%s0 + $0x330] sm:$0xff]
  %v121 = vld [vmem:[%s0 + $0x338] sm:$0xff]
  %v122 = vld [vmem:[%s0 + $0x340] sm:$0xff]
  %v123 = vld [vmem:[%s0 + $0x348] sm:$0xff]
  %v124 = vld [vmem:[%s0 + $0x350] sm:$0xff]
  %v125 = vld [vmem:[%s0 + $0x358] sm:$0xff]
  %v126 = vld [vmem:[%s0 + $0x360] sm:$0xff]
  %v127 = vld [vmem:[%s0 + $0x368] sm:$0xff]
  %v128 = vld [vmem:[%s0 + $0x370] sm:$0xff]
  %v129 = vld [vmem:[%s0 + $0x378] sm:$0xff]
  %v130 = vld [vmem:[%s0 + $0x380] sm:$0xff]
  %v131 = vld [vmem:[%s0 + $0x388] sm:$0xff]
  %v132 = vld [vmem:[%s0 + $0x390] sm:$0xff]
  %v133 = vld [vmem:[%s0 + $0x398] sm:$0xff]
  %v134 = vld [vmem:[%s0 + $0x3a0] sm:$0xff]
  %v135 = vld [vmem:[%s0 + $0x3a8] sm:$0xff]
  %v136 = vld [vmem:[%s0 + $0x3b0] sm:$0xff]
  %v137 = vld [vmem:[%s0 + $0x3b8] sm:$0xff]
  %v138 = vld [vmem:[%s0 + $0x3c0] sm:$0xff]
  %v139 = vld [vmem:[%s0 + $0x3c8] sm:$0xff]
  %v140 = vld [vmem:[%s0 + $0x3d0] sm:$0xff]
  %v141 = vld [vmem:[%s0 + $0x3d8] sm:$0xff]
  %v142 = vld [vmem:[%s0 + $0x3e0] sm:$0xff]
  %v143 = vld [vmem:[%s0 + $0x3e8] sm:$0xff]
  %v144 = vld [vmem:[%s0 + $0x3f0] sm:$0xff]
  %v145 = vld [vmem:[%s0 + $0x3f8] sm:$0xff]
  %v146 = vld [vmem:[%s0 + $0x400] sm:$0xff]
  %v147 = vld [vmem:[%s0 + $0x408] sm:$0xff]
  %v148 = vld [vmem:[%s0 + $0x410] sm:$0xff]
  %v149 = vld [vmem:[%s0 + $0x418] sm:$0xff]
  %v150 = vld [vmem:[%s0 + $0x420] sm:$0xff]
  %v151 = vld [vmem:[%s0 + $0x428] sm:$0xff]
  %v152 = vld [vmem:[%s0 + $0x430] sm:$0xff]
  %v153 = vld [vmem:[%s0 + $0x438] sm:$0xff]
  %v154 = vld [vmem:[%s0 + $0x440] sm:$0xff]
  %v155 = vld [vmem:[%s0 + $0x448] sm:$0xff]
  %v156 = vld [vmem:[%s0 + $0x450] sm:$0xff]
  %v157 = vld [vmem:[%s0 + $0x458] sm:$0xff]
  %v158 = vld [vmem:[%s0 + $0x460] sm:$0xff]
  %v159 = vld [vmem:[%s0 + $0x468] sm:$0xff]
  %v160 = vld [vmem:[%s0 + $0x470] sm:$0xff]
  %v161 = vld [vmem:[%s0 + $0x478] sm:$0xff]
  %v162 = vld [vmem:[%s0 + $0x480] sm:$0xff]
  %v163 = vld [vmem:[%s0 + $0x488] sm:$0xff]
  %v164 = vld [vmem:[%s0 + $0x490] sm:$0xff]
  %v165 = vld [vmem:[%s0 + $0x498] sm:$0xff]
  %v166 = vld [vmem:[%s0 + $0x4a0] sm:$0xff]
  %v167 = vld [vmem:[%s0 + $0x4a8] sm:$0xff]
  %v168 = vld [vmem:[%s0 + $0x4b0] sm:$0xff]
  %v169 = vld [vmem:[%s0 + $0x4b8] sm:$0xff]
  %v170 = vld [vmem:[%s0 + $0x4c0] sm:$0xff]
  %v171 = vld [vmem:[%s0 + $0x4c8] sm:$0xff]
  %v172 = vld [vmem:[%s0 + $0x4d0] sm:$0xff]
  %v173 = vld [vmem:[%s0 + $0x4d8] sm:$0xff]
  %v174 = vld [vmem:[%s0 + $0x4e0] sm:$0xff]
  %v175 = vld [vmem:[%s0 + $0x4e8] sm:$0xff]
  %v176 = vld [vmem:[%s0 + $0x4f0] sm:$0xff]
  %v177 = vld [vmem:[%s0 + $0x4f8] sm:$0xff]
  %v178 = vld [vmem:[%s0 + $0x500] sm:$0xff]
  %v179 = vld [vmem:[%s0 + $0x508] sm:$0xff]
  %v180 = vld [vmem:[%s0 + $0x510] sm:$0xff]
  %v181 = vld [vmem:[%s0 + $0x518] sm:$0xff]
  %v182 = vld [vmem:[%s0 + $0x520] sm:$0xff]
  %v183 = vld [vmem:[%s0 + $0x528] sm:$0xff]
  %v184 = vld [vmem:[%s0 + $0x530] sm:$0xff]
  %v185 = vld [vmem:[%s0 + $0x538] sm:$0xff]
  %v186 = vld [vmem:[%s0 + $0x540] sm:$0xff]
  %v187 = vld [vmem:[%s0 + $0x548] sm:$0xff]
  %v188 = vld [vmem:[%s0 + $0x550] sm:$0xff]
  %v189 = vld [vmem:[%s0 + $0x558] sm:$0xff]
  %v190 = vld [vmem:[%s0 + $0x560] sm:$0xff]
  %v191 = vld [vmem:[%s0 + $0x568] sm:$0xff]
  %v192 = vld [vmem:[%s0 + $0x570] sm:$0xff]
  %v193 = vld [vmem:[%s0 + $0x578] sm:$0xff]
  %v194 = vld [vmem:[%s0 + $0x580] sm:$0xff]
  %v195 = vld [vmem:[%s0 + $0x588] sm:$0xff]
  %v196 = vld [vmem:[%s0 + $0x590] sm:$0xff]
  %v197 = vld [vmem:[%s0 + $0x598] sm:$0xff]
  %v198 = vld [vmem:[%s0 + $0x5a0] sm:$0xff]
  %v199 = vld [vmem:[%s0 + $0x5a8] sm:$0xff]
  %v200 = vld [vmem:[%s0 + $0x5b0] sm:$0xff]
  %v201 = vld [vmem:[%s0 + $0x5b8] sm:$0xff]
  %v202 = vld [vmem:[%s0 + $0x5c0] sm:$0xff]
  %v203 = vld [vmem:[%s0 + $0x5c8] sm:$0xff]
  %v204 = vld [vmem:[%s0 + $0x5d0] sm:$0xff]
  %v205 = vld [vmem:[%s0 + $0x5d8] sm:$0xff]
  %v206 = vld [vmem:[%s0 + $0x5e0] sm:$0xff]
  %v207 = vld [vmem:[%s0 + $0x5e8] sm:$0xff]
  %v208 = vld [vmem:[%s0 + $0x5f0] sm:$0xff]
  %v209 = vld [vmem:[%s0 + $0x5f8] sm:$0xff]
  %v210 = vld [vmem:[%s0 + $0x600] sm:$0xff]
  %v211 = vld [vmem:[%s0 + $0x608] sm:$0xff]
  %v212 = vld [vmem:[%s0 + $0x610] sm:$0xff]
  %v213 = vld [vmem:[%s0 + $0x618] sm:$0xff]
  %v214 = vld [vmem:[%s0 + $0x620] sm:$0xf]
  %v215 = vld [vmem:[%s0 + $0x628] sm:$0xf]
  %v216 = vld [vmem:[%s0 + $0x630] sm:$0xf]
  %v217 = vld [vmem:[%s0 + $0x638] sm:$0xf]
  %v218 = vld [vmem:[%s0 + $0x640] sm:$0xff]
  %v219 = vld [vmem:[%s0 + $0x648] sm:$0xff]
  %v220 = vld [vmem:[%s0 + $0x650] sm:$0xff]
  %v221 = vld [vmem:[%s0 + $0x658] sm:$0xff]
  %v222 = vld [vmem:[%s0 + $0x660] sm:$0xff]
  %v223 = vld [vmem:[%s0 + $0x668] sm:$0xff]
  %v224 = vld [vmem:[%s0 + $0x670] sm:$0xff]
  %v225 = vld [vmem:[%s0 + $0x678] sm:$0xff]
  %v226 = vld [vmem:[%s0 + $0x680] sm:$0xff]
  %v227 = vld [vmem:[%s0 + $0x688] sm:$0xff]
  %v228 = vld [vmem:[%s0 + $0x690] sm:$0xff]
  %v229 = vld [vmem:[%s0 + $0x698] sm:$0xff]
  %v230 = vld [vmem:[%s0 + $0x6a0] sm:$0xff]
  %v231 = vld [vmem:[%s0 + $0x6a8] sm:$0xff]
  %v232 = vld [vmem:[%s0 + $0x6b0] sm:$0xff]
  %v233 = vld [vmem:[%s0 + $0x6b8] sm:$0xff]
  %v234 = vld [vmem:[%s0 + $0x6c0] sm:$0xff]
  %v235 = vld [vmem:[%s0 + $0x6c8] sm:$0xff]
  %v236 = vld [vmem:[%s0 + $0x6d0] sm:$0xff]
  %v237 = vld [vmem:[%s0 + $0x6d8] sm:$0xff]
  %v238 = vld [vmem:[%s0 + $0x6e0] sm:$0xff]
  %v239 = vld [vmem:[%s0 + $0x6e8] sm:$0xff]
  %v240 = vld [vmem:[%s0 + $0x6f0] sm:$0xff]
  %v241 = vld [vmem:[%s0 + $0x6f8] sm:$0xff]
  %v242 = vld [vmem:[%s0 + $0x700] sm:$0xff]
  %v243 = vld [vmem:[%s0 + $0x708] sm:$0xff]
  %v244 = vld [vmem:[%s0 + $0x710] sm:$0xff]
  %v245 = vld [vmem:[%s0 + $0x718] sm:$0xff]
  %v246 = vld [vmem:[%s0 + $0x720] sm:$0xff]
  %v247 = vld [vmem:[%s0 + $0x728] sm:$0xff]
  %v248 = vld [vmem:[%s0 + $0x730] sm:$0xff]
  %v249 = vld [vmem:[%s0 + $0x738] sm:$0xff]
  %v250 = vld [vmem:[%s0 + $0x740] sm:$0xff]
  %v251 = vld [vmem:[%s0 + $0x748] sm:$0xff]
  %v252 = vld [vmem:[%s0 + $0x750] sm:$0xff]
  %v253 = vld [vmem:[%s0 + $0x758] sm:$0xff]
  %v254 = vld [vmem:[%s0 + $0x760] sm:$0xff]
  %v255 = vld [vmem:[%s0 + $0x768] sm:$0xff]
  %v256 = vld [vmem:[%s0 + $0x770] sm:$0xff]
  %v257 = vld [vmem:[%s0 + $0x778] sm:$0xff]
  %v258 = vld [vmem:[%s0 + $0x780] sm:$0xff]
  %v259 = vld [vmem:[%s0 + $0x788] sm:$0xff]
  %v260 = vld [vmem:[%s0 + $0x790] sm:$0xff]
  %v261 = vld [vmem:[%s0 + $0x798] sm:$0xff]
  %v262 = vld [vmem:[%s0 + $0x7a0] sm:$0xff]
  %v263 = vld [vmem:[%s0 + $0x7a8] sm:$0xff]
  %v264 = vld [vmem:[%s0 + $0x7b0] sm:$0xff]
  %v265 = vld [vmem:[%s0 + $0x7b8] sm:$0xff]
  %v266 = vld [vmem:[%s0 + $0x7c0] sm:$0xff]
  %v267 = vld [vmem:[%s0 + $0x7c8] sm:$0xff]
  %v268 = vld [vmem:[%s0 + $0x7d0] sm:$0xff]
  %v269 = vld [vmem:[%s0 + $0x7d8] sm:$0xff]
  %v270 = vld [vmem:[%s0 + $0x7e0] sm:$0xff]
  %v271 = vld [vmem:[%s0 + $0x7e8] sm:$0xff]
  %v272 = vld [vmem:[%s0 + $0x7f0] sm:$0xff]
  %v273 = vld [vmem:[%s0 + $0x7f8] sm:$0xff]
  %v274 = vld [vmem:[%s0 + $0x800] sm:$0xff]
  %v275 = vld [vmem:[%s0 + $0x808] sm:$0xff]
  %v276 = vld [vmem:[%s0 + $0x810] sm:$0xff]
  %v277 = vld [vmem:[%s0 + $0x818] sm:$0xff]
  %v278 = vld [vmem:[%s0 + $0x820] sm:$0xff]
  %v279 = vld [vmem:[%s0 + $0x828] sm:$0xff]
  %v280 = vld [vmem:[%s0 + $0x830] sm:$0xff]
  %v281 = vld [vmem:[%s0 + $0x838] sm:$0xff]
  %v282 = vld [vmem:[%s0 + $0x840] sm:$0xff]
  %v283 = vld [vmem:[%s0 + $0x848] sm:$0xff]
  %v284 = vld [vmem:[%s0 + $0x850] sm:$0xff]
  %v285 = vld [vmem:[%s0 + $0x858] sm:$0xff]
  %v286 = vld [vmem:[%s0 + $0x860] sm:$0xff]
  %v287 = vld [vmem:[%s0 + $0x868] sm:$0xff]
  %v288 = vld [vmem:[%s0 + $0x870] sm:$0xff]
  %v289 = vld [vmem:[%s0 + $0x878] sm:$0xff]
  %v290 = vld [vmem:[%s0 + $0x880] sm:$0xff]
  %v291 = vld [vmem:[%s0 + $0x888] sm:$0xff]
  %v292 = vld [vmem:[%s0 + $0x890] sm:$0xff]
  %v293 = vld [vmem:[%s0 + $0x898] sm:$0xff]
  %v294 = vld [vmem:[%s0 + $0x8a0] sm:$0xff]
  %v295 = vld [vmem:[%s0 + $0x8a8] sm:$0xff]
  %v296 = vld [vmem:[%s0 + $0x8b0] sm:$0xff]
  %v297 = vld [vmem:[%s0 + $0x8b8] sm:$0xff]
  %v298 = vld [vmem:[%s0 + $0x8c0] sm:$0xff]
  %v299 = vld [vmem:[%s0 + $0x8c8] sm:$0xff]
  %v300 = vld [vmem:[%s0 + $0x8d0] sm:$0xff]
  %v301 = vld [vmem:[%s0 + $0x8d8] sm:$0xff]
  %v302 = vld [vmem:[%s0 + $0x8e0] sm:$0xff]
  %v303 = vld [vmem:[%s0 + $0x8e8] sm:$0xff]
  %v304 = vld [vmem:[%s0 + $0x8f0] sm:$0xff]
  %v305 = vld [vmem:[%s0 + $0x8f8] sm:$0xff]
  %v306 = vld [vmem:[%s0 + $0x900] sm:$0xff]
  %v307 = vld [vmem:[%s0 + $0x908] sm:$0xff]
  %v308 = vld [vmem:[%s0 + $0x910] sm:$0xff]
  %v309 = vld [vmem:[%s0 + $0x918] sm:$0xff]
  %v310 = vld [vmem:[%s0 + $0x920] sm:$0xff]
  %v311 = vld [vmem:[%s0 + $0x928] sm:$0xff]
  %v312 = vld [vmem:[%s0 + $0x930] sm:$0xff]
  %v313 = vld [vmem:[%s0 + $0x938] sm:$0xff]
  %v314 = vld [vmem:[%s0 + $0x940] sm:$0xf]
  %v315 = vld [vmem:[%s0 + $0x948] sm:$0xf]
  %v316 = vld [vmem:[%s0 + $0x950] sm:$0xf]
  %v317 = vld [vmem:[%s0 + $0x958] sm:$0xf]
  %v318 = vld [vmem:[%s0 + $0x960] sm:$0xff]
  %v319 = vld [vmem:[%s0 + $0x968] sm:$0xff]
  %v320 = vld [vmem:[%s0 + $0x970] sm:$0xff]
  %v321 = vld [vmem:[%s0 + $0x978] sm:$0xff]
  %v322 = vld [vmem:[%s0 + $0x980] sm:$0xff]
  %v323 = vld [vmem:[%s0 + $0x988] sm:$0xff]
  %v324 = vld [vmem:[%s0 + $0x990] sm:$0xff]
  %v325 = vld [vmem:[%s0 + $0x998] sm:$0xff]
  %v326 = vld [vmem:[%s0 + $0x9a0] sm:$0xff]
  %v327 = vld [vmem:[%s0 + $0x9a8] sm:$0xff]
  %v328 = vld [vmem:[%s0 + $0x9b0] sm:$0xff]
  %v329 = vld [vmem:[%s0 + $0x9b8] sm:$0xff]
  %v330 = vld [vmem:[%s0 + $0x9c0] sm:$0xff]
  %v331 = vld [vmem:[%s0 + $0x9c8] sm:$0xff]
  %v332 = vld [vmem:[%s0 + $0x9d0] sm:$0xff]
  %v333 = vld [vmem:[%s0 + $0x9d8] sm:$0xff]
  %v334 = vld [vmem:[%s0 + $0x9e0] sm:$0xff]
  %v335 = vld [vmem:[%s0 + $0x9e8] sm:$0xff]
  %v336 = vld [vmem:[%s0 + $0x9f0] sm:$0xff]
  %v337 = vld [vmem:[%s0 + $0x9f8] sm:$0xff]
  %v338 = vld [vmem:[%s0 + $0xa00] sm:$0xff]
  %v339 = vld [vmem:[%s0 + $0xa08] sm:$0xff]
  %v340 = vld [vmem:[%s0 + $0xa10] sm:$0xff]
  %v341 = vld [vmem:[%s0 + $0xa18] sm:$0xff]
  %v342 = vld [vmem:[%s0 + $0xa20] sm:$0xff]
  %v343 = vld [vmem:[%s0 + $0xa28] sm:$0xff]
  %v344 = vld [vmem:[%s0 + $0xa30] sm:$0xff]
  %v345 = vld [vmem:[%s0 + $0xa38] sm:$0xff]
  %v346 = vld [vmem:[%s0 + $0xa40] sm:$0xff]
  %v347 = vld [vmem:[%s0 + $0xa48] sm:$0xff]
  %v348 = vld [vmem:[%s0 + $0xa50] sm:$0xff]
  %v349 = vld [vmem:[%s0 + $0xa58] sm:$0xff]
  %v350 = vld [vmem:[%s0 + $0xa60] sm:$0xff]
  %v351 = vld [vmem:[%s0 + $0xa68] sm:$0xff]
  %v352 = vld [vmem:[%s0 + $0xa70] sm:$0xff]
  %v353 = vld [vmem:[%s0 + $0xa78] sm:$0xff]
  %v354 = vld [vmem:[%s0 + $0xa80] sm:$0xff]
  %v355 = vld [vmem:[%s0 + $0xa88] sm:$0xff]
  %v356 = vld [vmem:[%s0 + $0xa90] sm:$0xff]
  %v357 = vld [vmem:[%s0 + $0xa98] sm:$0xff]
  %v358 = vld [vmem:[%s0 + $0xaa0] sm:$0xff]
  %v359 = vld [vmem:[%s0 + $0xaa8] sm:$0xff]
  %v360 = vld [vmem:[%s0 + $0xab0] sm:$0xff]
  %v361 = vld [vmem:[%s0 + $0xab8] sm:$0xff]
  %v362 = vld [vmem:[%s0 + $0xac0] sm:$0xff]
  %v363 = vld [vmem:[%s0 + $0xac8] sm:$0xff]
  %v364 = vld [vmem:[%s0 + $0xad0] sm:$0xff]
  %v365 = vld [vmem:[%s0 + $0xad8] sm:$0xff]
  %v366 = vld [vmem:[%s0 + $0xae0] sm:$0xff]
  %v367 = vld [vmem:[%s0 + $0xae8] sm:$0xff]
  %v368 = vld [vmem:[%s0 + $0xaf0] sm:$0xff]
  %v369 = vld [vmem:[%s0 + $0xaf8] sm:$0xff]
  %v370 = vld [vmem:[%s0 + $0xb00] sm:$0xff]
  %v371 = vld [vmem:[%s0 + $0xb08] sm:$0xff]
  %v372 = vld [vmem:[%s0 + $0xb10] sm:$0xff]
  %v373 = vld [vmem:[%s0 + $0xb18] sm:$0xff]
  %v374 = vld [vmem:[%s0 + $0xb20] sm:$0xff]
  %v375 = vld [vmem:[%s0 + $0xb28] sm:$0xff]
  %v376 = vld [vmem:[%s0 + $0xb30] sm:$0xff]
  %v377 = vld [vmem:[%s0 + $0xb38] sm:$0xff]
  %v378 = vld [vmem:[%s0 + $0xb40] sm:$0xff]
  %v379 = vld [vmem:[%s0 + $0xb48] sm:$0xff]
  %v380 = vld [vmem:[%s0 + $0xb50] sm:$0xff]
  %v381 = vld [vmem:[%s0 + $0xb58] sm:$0xff]
  %v382 = vld [vmem:[%s0 + $0xb60] sm:$0xff]
  %v383 = vld [vmem:[%s0 + $0xb68] sm:$0xff]
  %v384 = vld [vmem:[%s0 + $0xb70] sm:$0xff]
  %v385 = vld [vmem:[%s0 + $0xb78] sm:$0xff]
  %v386 = vld [vmem:[%s0 + $0xb80] sm:$0xff]
  %v387 = vld [vmem:[%s0 + $0xb88] sm:$0xff]
  %v388 = vld [vmem:[%s0 + $0xb90] sm:$0xff]
  %v389 = vld [vmem:[%s0 + $0xb98] sm:$0xff]
  %v390 = vld [vmem:[%s0 + $0xba0] sm:$0xff]
  %v391 = vld [vmem:[%s0 + $0xba8] sm:$0xff]
  %v392 = vld [vmem:[%s0 + $0xbb0] sm:$0xff]
  %v393 = vld [vmem:[%s0 + $0xbb8] sm:$0xff]
  %v394 = vld [vmem:[%s0 + $0xbc0] sm:$0xff]
  %v395 = vld [vmem:[%s0 + $0xbc8] sm:$0xff]
  %v396 = vld [vmem:[%s0 + $0xbd0] sm:$0xff]
  %v397 = vld [vmem:[%s0 + $0xbd8] sm:$0xff]
  %v398 = vld [vmem:[%s0 + $0xbe0] sm:$0xff]
  %v399 = vld [vmem:[%s0 + $0xbe8] sm:$0xff]
  %v400 = vld [vmem:[%s0 + $0xbf0] sm:$0xff]
  %v401 = vld [vmem:[%s0 + $0xbf8] sm:$0xff]
  %v402 = vld [vmem:[%s0 + $0xc00] sm:$0xff]
  %v403 = vld [vmem:[%s0 + $0xc08] sm:$0xff]
  %v404 = vld [vmem:[%s0 + $0xc10] sm:$0xff]
  %v405 = vld [vmem:[%s0 + $0xc18] sm:$0xff]
  %v406 = vld [vmem:[%s0 + $0xc20] sm:$0xff]
  %v407 = vld [vmem:[%s0 + $0xc28] sm:$0xff]
  %v408 = vld [vmem:[%s0 + $0xc30] sm:$0xff]
  %v409 = vld [vmem:[%s0 + $0xc38] sm:$0xff]
  %v410 = vld [vmem:[%s0 + $0xc40] sm:$0xff]
  %v411 = vld [vmem:[%s0 + $0xc48] sm:$0xff]
  %v412 = vld [vmem:[%s0 + $0xc50] sm:$0xff]
  %v413 = vld [vmem:[%s0 + $0xc58] sm:$0xff]
  %v414 = vld [vmem:[%s0 + $0xc60] sm:$0xf]
  %v415 = vld [vmem:[%s0 + $0xc68] sm:$0xf]
  %v416 = vld [vmem:[%s0 + $0xc70] sm:$0xf]
  %v417 = vld [vmem:[%s0 + $0xc78] sm:$0xf]
  %v418 = vld [vmem:[%s0 + $0xc80] sm:$0xff]
  %v419 = vld [vmem:[%s0 + $0xc88] sm:$0xff]
  %v420 = vld [vmem:[%s0 + $0xc90] sm:$0xff]
  %v421 = vld [vmem:[%s0 + $0xc98] sm:$0xff]
  %v422 = vld [vmem:[%s0 + $0xca0] sm:$0xff]
  %v423 = vld [vmem:[%s0 + $0xca8] sm:$0xff]
  %v424 = vld [vmem:[%s0 + $0xcb0] sm:$0xff]
  %v425 = vld [vmem:[%s0 + $0xcb8] sm:$0xff]
  %v426 = vld [vmem:[%s0 + $0xcc0] sm:$0xff]
  %v427 = vld [vmem:[%s0 + $0xcc8] sm:$0xff]
  %v428 = vld [vmem:[%s0 + $0xcd0] sm:$0xff]
  %v429 = vld [vmem:[%s0 + $0xcd8] sm:$0xff]
  %v430 = vld [vmem:[%s0 + $0xce0] sm:$0xff]
  %v431 = vld [vmem:[%s0 + $0xce8] sm:$0xff]
  %v432 = vld [vmem:[%s0 + $0xcf0] sm:$0xff]
  %v433 = vld [vmem:[%s0 + $0xcf8] sm:$0xff]
  %v434 = vld [vmem:[%s0 + $0xd00] sm:$0xff]
  %v435 = vld [vmem:[%s0 + $0xd08] sm:$0xff]
  %v436 = vld [vmem:[%s0 + $0xd10] sm:$0xff]
  %v437 = vld [vmem:[%s0 + $0xd18] sm:$0xff]
  %v438 = vld [vmem:[%s0 + $0xd20] sm:$0xff]
  %v439 = vld [vmem:[%s0 + $0xd28] sm:$0xff]
  %v440 = vld [vmem:[%s0 + $0xd30] sm:$0xff]
  %v441 = vld [vmem:[%s0 + $0xd38] sm:$0xff]
  %v442 = vld [vmem:[%s0 + $0xd40] sm:$0xff]
  %v443 = vld [vmem:[%s0 + $0xd48] sm:$0xff]
  %v444 = vld [vmem:[%s0 + $0xd50] sm:$0xff]
  %v445 = vld [vmem:[%s0 + $0xd58] sm:$0xff]
  %v446 = vld [vmem:[%s0 + $0xd60] sm:$0xff]
  %v447 = vld [vmem:[%s0 + $0xd68] sm:$0xff]
  %v448 = vld [vmem:[%s0 + $0xd70] sm:$0xff]
  %v449 = vld [vmem:[%s0 + $0xd78] sm:$0xff]
  %v450 = vld [vmem:[%s0 + $0xd80] sm:$0xff]
  %v451 = vld [vmem:[%s0 + $0xd88] sm:$0xff]
  %v452 = vld [vmem:[%s0 + $0xd90] sm:$0xff]
  %v453 = vld [vmem:[%s0 + $0xd98] sm:$0xff]
  %v454 = vld [vmem:[%s0 + $0xda0] sm:$0xff]
  %v455 = vld [vmem:[%s0 + $0xda8] sm:$0xff]
  %v456 = vld [vmem:[%s0 + $0xdb0] sm:$0xff]
  %v457 = vld [vmem:[%s0 + $0xdb8] sm:$0xff]
  %v458 = vld [vmem:[%s0 + $0xdc0] sm:$0xff]
  %v459 = vld [vmem:[%s0 + $0xdc8] sm:$0xff]
  %v460 = vld [vmem:[%s0 + $0xdd0] sm:$0xff]
  %v461 = vld [vmem:[%s0 + $0xdd8] sm:$0xff]
  %v462 = vld [vmem:[%s0 + $0xde0] sm:$0xff]
  %v463 = vld [vmem:[%s0 + $0xde8] sm:$0xff]
  %v464 = vld [vmem:[%s0 + $0xdf0] sm:$0xff]
  %v465 = vld [vmem:[%s0 + $0xdf8] sm:$0xff]
  %v466 = vld [vmem:[%s0 + $0xe00] sm:$0xff]
  %v467 = vld [vmem:[%s0 + $0xe08] sm:$0xff]
  %v468 = vld [vmem:[%s0 + $0xe10] sm:$0xff]
  %v469 = vld [vmem:[%s0 + $0xe18] sm:$0xff]
  %v470 = vld [vmem:[%s0 + $0xe20] sm:$0xff]
  %v471 = vld [vmem:[%s0 + $0xe28] sm:$0xff]
  %v472 = vld [vmem:[%s0 + $0xe30] sm:$0xff]
  %v473 = vld [vmem:[%s0 + $0xe38] sm:$0xff]
  %v474 = vld [vmem:[%s0 + $0xe40] sm:$0xff]
  %v475 = vld [vmem:[%s0 + $0xe48] sm:$0xff]
  %v476 = vld [vmem:[%s0 + $0xe50] sm:$0xff]
  %v477 = vld [vmem:[%s0 + $0xe58] sm:$0xff]
  %v478 = vld [vmem:[%s0 + $0xe60] sm:$0xff]
  %v479 = vld [vmem:[%s0 + $0xe68] sm:$0xff]
  %v480 = vld [vmem:[%s0 + $0xe70] sm:$0xff]
  %v481 = vld [vmem:[%s0 + $0xe78] sm:$0xff]
  %v482 = vld [vmem:[%s0 + $0xe80] sm:$0xff]
  %v483 = vld [vmem:[%s0 + $0xe88] sm:$0xff]
  %v484 = vld [vmem:[%s0 + $0xe90] sm:$0xff]
  %v485 = vld [vmem:[%s0 + $0xe98] sm:$0xff]
  %v486 = vld [vmem:[%s0 + $0xea0] sm:$0xff]
  %v487 = vld [vmem:[%s0 + $0xea8] sm:$0xff]
  %v488 = vld [vmem:[%s0 + $0xeb0] sm:$0xff]
  %v489 = vld [vmem:[%s0 + $0xeb8] sm:$0xff]
  %v490 = vld [vmem:[%s0 + $0xec0] sm:$0xff]
  %v491 = vld [vmem:[%s0 + $0xec8] sm:$0xff]
  %v492 = vld [vmem:[%s0 + $0xed0] sm:$0xff]
  %v493 = vld [vmem:[%s0 + $0xed8] sm:$0xff]
  %v494 = vld [vmem:[%s0 + $0xee0] sm:$0xff]
  %v495 = vld [vmem:[%s0 + $0xee8] sm:$0xff]
  %v496 = vld [vmem:[%s0 + $0xef0] sm:$0xff]
  %v497 = vld [vmem:[%s0 + $0xef8] sm:$0xff]
  %v498 = vld [vmem:[%s0 + $0xf00] sm:$0xff]
  %v499 = vld [vmem:[%s0 + $0xf08] sm:$0xff]
  %v500 = vld [vmem:[%s0 + $0xf10] sm:$0xff]
  %v501 = vld [vmem:[%s0 + $0xf18] sm:$0xff]
  %v502 = vld [vmem:[%s0 + $0xf20] sm:$0xff]
  %v503 = vld [vmem:[%s0 + $0xf28] sm:$0xff]
  %v504 = vld [vmem:[%s0 + $0xf30] sm:$0xff]
  %v505 = vld [vmem:[%s0 + $0xf38] sm:$0xff]
  %v506 = vld [vmem:[%s0 + $0xf40] sm:$0xff]
  %v507 = vld [vmem:[%s0 + $0xf48] sm:$0xff]
  %v508 = vld [vmem:[%s0 + $0xf50] sm:$0xff]
  %v509 = vld [vmem:[%s0 + $0xf58] sm:$0xff]
  %v510 = vld [vmem:[%s0 + $0xf60] sm:$0xff]
  %v511 = vld [vmem:[%s0 + $0xf68] sm:$0xff]
  %v512 = vld [vmem:[%s0 + $0xf70] sm:$0xff]
  %v513 = vld [vmem:[%s0 + $0xf78] sm:$0xff]
  %v514 = vld [vmem:[%s0 + $0xf80] sm:$0xf]
  %v515 = vld [vmem:[%s0 + $0xf88] sm:$0xf]
  %v516 = vld [vmem:[%s0 + $0xf90] sm:$0xf]
  %v517 = vld [vmem:[%s0 + $0xf98] sm:$0xf]
  %v518 = vld [vmem:[%s0 + $0xfa0] sm:$0xff]
  %v519 = vld [vmem:[%s0 + $0xfa8] sm:$0xff]
  %v520 = vld [vmem:[%s0 + $0xfb0] sm:$0xff]
  %v521 = vld [vmem:[%s0 + $0xfb8] sm:$0xff]
  %v522 = vld [vmem:[%s0 + $0xfc0] sm:$0xff]
  %v523 = vld [vmem:[%s0 + $0xfc8] sm:$0xff]
  %v524 = vld [vmem:[%s0 + $0xfd0] sm:$0xff]
  %v525 = vld [vmem:[%s0 + $0xfd8] sm:$0xff]
  %v526 = vld [vmem:[%s0 + $0xfe0] sm:$0xff]
  %v527 = vld [vmem:[%s0 + $0xfe8] sm:$0xff]
  %v528 = vld [vmem:[%s0 + $0xff0] sm:$0xff]
  %v529 = vld [vmem:[%s0 + $0xff8] sm:$0xff]
  %v530 = vld [vmem:[%s0 + $0x1000] sm:$0xff]
  %v531 = vld [vmem:[%s0 + $0x1008] sm:$0xff]
  %v532 = vld [vmem:[%s0 + $0x1010] sm:$0xff]
  %v533 = vld [vmem:[%s0 + $0x1018] sm:$0xff]
  %v534 = vld [vmem:[%s0 + $0x1020] sm:$0xff]
  %v535 = vld [vmem:[%s0 + $0x1028] sm:$0xff]
  %v536 = vld [vmem:[%s0 + $0x1030] sm:$0xff]
  %v537 = vld [vmem:[%s0 + $0x1038] sm:$0xff]
  %v538 = vld [vmem:[%s0 + $0x1040] sm:$0xff]
  %v539 = vld [vmem:[%s0 + $0x1048] sm:$0xff]
  %v540 = vld [vmem:[%s0 + $0x1050] sm:$0xff]
  %v541 = vld [vmem:[%s0 + $0x1058] sm:$0xff]
  %v542 = vld [vmem:[%s0 + $0x1060] sm:$0xff]
  %v543 = vld [vmem:[%s0 + $0x1068] sm:$0xff]
  %v544 = vld [vmem:[%s0 + $0x1070] sm:$0xff]
  %v545 = vld [vmem:[%s0 + $0x1078] sm:$0xff]
  %v546 = vld [vmem:[%s0 + $0x1080] sm:$0xff]
  %v547 = vld [vmem:[%s0 + $0x1088] sm:$0xff]
  %v548 = vld [vmem:[%s0 + $0x1090] sm:$0xff]
  %v549 = vld [vmem:[%s0 + $0x1098] sm:$0xff]
  %v550 = vld [vmem:[%s0 + $0x10a0] sm:$0xff]
  %v551 = vld [vmem:[%s0 + $0x10a8] sm:$0xff]
  %v552 = vld [vmem:[%s0 + $0x10b0] sm:$0xff]
  %v553 = vld [vmem:[%s0 + $0x10b8] sm:$0xff]
  %v554 = vld [vmem:[%s0 + $0x10c0] sm:$0xff]
  %v555 = vld [vmem:[%s0 + $0x10c8] sm:$0xff]
  %v556 = vld [vmem:[%s0 + $0x10d0] sm:$0xff]
  %v557 = vld [vmem:[%s0 + $0x10d8] sm:$0xff]
  %v558 = vld [vmem:[%s0 + $0x10e0] sm:$0xff]
  %v559 = vld [vmem:[%s0 + $0x10e8] sm:$0xff]
  %v560 = vld [vmem:[%s0 + $0x10f0] sm:$0xff]
  %v561 = vld [vmem:[%s0 + $0x10f8] sm:$0xff]
  %v562 = vld [vmem:[%s0 + $0x1100] sm:$0xff]
  %v563 = vld [vmem:[%s0 + $0x1108] sm:$0xff]
  %v564 = vld [vmem:[%s0 + $0x1110] sm:$0xff]
  %v565 = vld [vmem:[%s0 + $0x1118] sm:$0xff]
  %v566 = vld [vmem:[%s0 + $0x1120] sm:$0xff]
  %v567 = vld [vmem:[%s0 + $0x1128] sm:$0xff]
  %v568 = vld [vmem:[%s0 + $0x1130] sm:$0xff]
  %v569 = vld [vmem:[%s0 + $0x1138] sm:$0xff]
  %v570 = vld [vmem:[%s0 + $0x1140] sm:$0xff]
  %v571 = vld [vmem:[%s0 + $0x1148] sm:$0xff]
  %v572 = vld [vmem:[%s0 + $0x1150] sm:$0xff]
  %v573 = vld [vmem:[%s0 + $0x1158] sm:$0xff]
  %v574 = vld [vmem:[%s0 + $0x1160] sm:$0xff]
  %v575 = vld [vmem:[%s0 + $0x1168] sm:$0xff]
  %v576 = vld [vmem:[%s0 + $0x1170] sm:$0xff]
  %v577 = vld [vmem:[%s0 + $0x1178] sm:$0xff]
  %v578 = vld [vmem:[%s0 + $0x1180] sm:$0xff]
  %v579 = vld [vmem:[%s0 + $0x1188] sm:$0xff]
  %v580 = vld [vmem:[%s0 + $0x1190] sm:$0xff]
  %v581 = vld [vmem:[%s0 + $0x1198] sm:$0xff]
  %v582 = vld [vmem:[%s0 + $0x11a0] sm:$0xff]
  %v583 = vld [vmem:[%s0 + $0x11a8] sm:$0xff]
  %v584 = vld [vmem:[%s0 + $0x11b0] sm:$0xff]
  %v585 = vld [vmem:[%s0 + $0x11b8] sm:$0xff]
  %v586 = vld [vmem:[%s0 + $0x11c0] sm:$0xff]
  %v587 = vld [vmem:[%s0 + $0x11c8] sm:$0xff]
  %v588 = vld [vmem:[%s0 + $0x11d0] sm:$0xff]
  %v589 = vld [vmem:[%s0 + $0x11d8] sm:$0xff]
  %v590 = vld [vmem:[%s0 + $0x11e0] sm:$0xff]
  %v591 = vld [vmem:[%s0 + $0x11e8] sm:$0xff]
  %v592 = vld [vmem:[%s0 + $0x11f0] sm:$0xff]
  %v593 = vld [vmem:[%s0 + $0x11f8] sm:$0xff]
  %v594 = vld [vmem:[%s0 + $0x1200] sm:$0xff]
  %v595 = vld [vmem:[%s0 + $0x1208] sm:$0xff]
  %v596 = vld [vmem:[%s0 + $0x1210] sm:$0xff]
  %v597 = vld [vmem:[%s0 + $0x1218] sm:$0xff]
  %v598 = vld [vmem:[%s0 + $0x1220] sm:$0xff]
  %v599 = vld [vmem:[%s0 + $0x1228] sm:$0xff]
  %v600 = vld [vmem:[%s0 + $0x1230] sm:$0xff]
  %v601 = vld [vmem:[%s0 + $0x1238] sm:$0xff]
  %v602 = vld [vmem:[%s0 + $0x1240] sm:$0xff]
  %v603 = vld [vmem:[%s0 + $0x1248] sm:$0xff]
  %v604 = vld [vmem:[%s0 + $0x1250] sm:$0xff]
  %v605 = vld [vmem:[%s0 + $0x1258] sm:$0xff]
  %v606 = vld [vmem:[%s0 + $0x1260] sm:$0xff]
  %v607 = vld [vmem:[%s0 + $0x1268] sm:$0xff]
  %v608 = vld [vmem:[%s0 + $0x1270] sm:$0xff]
  %v609 = vld [vmem:[%s0 + $0x1278] sm:$0xff]
  %v610 = vld [vmem:[%s0 + $0x1280] sm:$0xff]
  %v611 = vld [vmem:[%s0 + $0x1288] sm:$0xff]
  %v612 = vld [vmem:[%s0 + $0x1290] sm:$0xff]
  %v613 = vld [vmem:[%s0 + $0x1298] sm:$0xff]
  %v614 = vld [vmem:[%s0 + $0x12a0] sm:$0xf]
  %v615 = vld [vmem:[%s0 + $0x12a8] sm:$0xf]
  %v616 = vld [vmem:[%s0 + $0x12b0] sm:$0xf]
  %v617 = vld [vmem:[%s0 + $0x12b8] sm:$0xf]
  %v618 = vld [vmem:[%s0 + $0x12c0] sm:$0xff]
  %v619 = vld [vmem:[%s0 + $0x12c8] sm:$0xff]
  %v620 = vld [vmem:[%s0 + $0x12d0] sm:$0xff]
  %v621 = vld [vmem:[%s0 + $0x12d8] sm:$0xff]
  %v622 = vld [vmem:[%s0 + $0x12e0] sm:$0xff]
  %v623 = vld [vmem:[%s0 + $0x12e8] sm:$0xff]
  %v624 = vld [vmem:[%s0 + $0x12f0] sm:$0xff]
  %v625 = vld [vmem:[%s0 + $0x12f8] sm:$0xff]
  %v626 = vld [vmem:[%s0 + $0x1300] sm:$0xff]
  %v627 = vld [vmem:[%s0 + $0x1308] sm:$0xff]
  %v628 = vld [vmem:[%s0 + $0x1310] sm:$0xff]
  %v629 = vld [vmem:[%s0 + $0x1318] sm:$0xff]
  %v630 = vld [vmem:[%s0 + $0x1320] sm:$0xff]
  %v631 = vld [vmem:[%s0 + $0x1328] sm:$0xff]
  %v632 = vld [vmem:[%s0 + $0x1330] sm:$0xff]
  %v633 = vld [vmem:[%s0 + $0x1338] sm:$0xff]
  %v634 = vld [vmem:[%s0 + $0x1340] sm:$0xff]
  %v635 = vld [vmem:[%s0 + $0x1348] sm:$0xff]
  %v636 = vld [vmem:[%s0 + $0x1350] sm:$0xff]
  %v637 = vld [vmem:[%s0 + $0x1358] sm:$0xff]
  %v638 = vld [vmem:[%s0 + $0x1360] sm:$0xff]
  %v639 = vld [vmem:[%s0 + $0x1368] sm:$0xff]
  %v640 = vld [vmem:[%s0 + $0x1370] sm:$0xff]
  %v641 = vld [vmem:[%s0 + $0x1378] sm:$0xff]
  %v642 = vld [vmem:[%s0 + $0x1380] sm:$0xff]
  %v643 = vld [vmem:[%s0 + $0x1388] sm:$0xff]
  %v644 = vld [vmem:[%s0 + $0x1390] sm:$0xff]
  %v645 = vld [vmem:[%s0 + $0x1398] sm:$0xff]
  %v646 = vld [vmem:[%s0 + $0x13a0] sm:$0xff]
  %v647 = vld [vmem:[%s0 + $0x13a8] sm:$0xff]
  %v648 = vld [vmem:[%s0 + $0x13b0] sm:$0xff]
  %v649 = vld [vmem:[%s0 + $0x13b8] sm:$0xff]
  %v650 = vld [vmem:[%s0 + $0x13c0] sm:$0xff]
  %v651 = vld [vmem:[%s0 + $0x13c8] sm:$0xff]
  %v652 = vld [vmem:[%s0 + $0x13d0] sm:$0xff]
  %v653 = vld [vmem:[%s0 + $0x13d8] sm:$0xff]
  %v654 = vld [vmem:[%s0 + $0x13e0] sm:$0xff]
  %v655 = vld [vmem:[%s0 + $0x13e8] sm:$0xff]
  %v656 = vld [vmem:[%s0 + $0x13f0] sm:$0xff]
  %v657 = vld [vmem:[%s0 + $0x13f8] sm:$0xff]
  %v658 = vld [vmem:[%s0 + $0x1400] sm:$0xff]
  %v659 = vld [vmem:[%s0 + $0x1408] sm:$0xff]
  %v660 = vld [vmem:[%s0 + $0x1410] sm:$0xff]
  %v661 = vld [vmem:[%s0 + $0x1418] sm:$0xff]
  %v662 = vld [vmem:[%s0 + $0x1420] sm:$0xff]
  %v663 = vld [vmem:[%s0 + $0x1428] sm:$0xff]
  %v664 = vld [vmem:[%s0 + $0x1430] sm:$0xff]
  %v665 = vld [vmem:[%s0 + $0x1438] sm:$0xff]
  %v666 = vld [vmem:[%s0 + $0x1440] sm:$0xff]
  %v667 = vld [vmem:[%s0 + $0x1448] sm:$0xff]
  %v668 = vld [vmem:[%s0 + $0x1450] sm:$0xff]
  %v669 = vld [vmem:[%s0 + $0x1458] sm:$0xff]
  %v670 = vld [vmem:[%s0 + $0x1460] sm:$0xff]
  %v671 = vld [vmem:[%s0 + $0x1468] sm:$0xff]
  %v672 = vld [vmem:[%s0 + $0x1470] sm:$0xff]
  %v673 = vld [vmem:[%s0 + $0x1478] sm:$0xff]
  %v674 = vld [vmem:[%s0 + $0x1480] sm:$0xff]
  %v675 = vld [vmem:[%s0 + $0x1488] sm:$0xff]
  %v676 = vld [vmem:[%s0 + $0x1490] sm:$0xff]
  %v677 = vld [vmem:[%s0 + $0x1498] sm:$0xff]
  %v678 = vld [vmem:[%s0 + $0x14a0] sm:$0xff]
  %v679 = vld [vmem:[%s0 + $0x14a8] sm:$0xff]
  %v680 = vld [vmem:[%s0 + $0x14b0] sm:$0xff]
  %v681 = vld [vmem:[%s0 + $0x14b8] sm:$0xff]
  %v682 = vld [vmem:[%s0 + $0x14c0] sm:$0xff]
  %v683 = vld [vmem:[%s0 + $0x14c8] sm:$0xff]
  %v684 = vld [vmem:[%s0 + $0x14d0] sm:$0xff]
  %v685 = vld [vmem:[%s0 + $0x14d8] sm:$0xff]
  %v686 = vld [vmem:[%s0 + $0x14e0] sm:$0xff]
  %v687 = vld [vmem:[%s0 + $0x14e8] sm:$0xff]
  %v688 = vld [vmem:[%s0 + $0x14f0] sm:$0xff]
  %v689 = vld [vmem:[%s0 + $0x14f8] sm:$0xff]
  %v690 = vld [vmem:[%s0 + $0x1500] sm:$0xff]
  %v691 = vld [vmem:[%s0 + $0x1508] sm:$0xff]
  %v692 = vld [vmem:[%s0 + $0x1510] sm:$0xff]
  %v693 = vld [vmem:[%s0 + $0x1518] sm:$0xff]
  %v694 = vld [vmem:[%s0 + $0x1520] sm:$0xff]
  %v695 = vld [vmem:[%s0 + $0x1528] sm:$0xff]
  %v696 = vld [vmem:[%s0 + $0x1530] sm:$0xff]
  %v697 = vld [vmem:[%s0 + $0x1538] sm:$0xff]
  %v698 = vld [vmem:[%s0 + $0x1540] sm:$0xff]
  %v699 = vld [vmem:[%s0 + $0x1548] sm:$0xff]
  %v700 = vld [vmem:[%s0 + $0x1550] sm:$0xff]
  %v701 = vld [vmem:[%s0 + $0x1558] sm:$0xff]
  %v702 = vld [vmem:[%s0 + $0x1560] sm:$0xff]
  %v703 = vld [vmem:[%s0 + $0x1568] sm:$0xff]
  %v704 = vld [vmem:[%s0 + $0x1570] sm:$0xff]
  %v705 = vld [vmem:[%s0 + $0x1578] sm:$0xff]
  %v706 = vld [vmem:[%s0 + $0x1580] sm:$0xff]
  %v707 = vld [vmem:[%s0 + $0x1588] sm:$0xff]
  %v708 = vld [vmem:[%s0 + $0x1590] sm:$0xff]
  %v709 = vld [vmem:[%s0 + $0x1598] sm:$0xff]
  %v710 = vld [vmem:[%s0 + $0x15a0] sm:$0xff]
  %v711 = vld [vmem:[%s0 + $0x15a8] sm:$0xff]
  %v712 = vld [vmem:[%s0 + $0x15b0] sm:$0xff]
  %v713 = vld [vmem:[%s0 + $0x15b8] sm:$0xff]
  %v714 = vld [vmem:[%s0 + $0x15c0] sm:$0xf]
  %v715 = vld [vmem:[%s0 + $0x15c8] sm:$0xf]
  %v716 = vld [vmem:[%s0 + $0x15d0] sm:$0xf]
  %v717 = vld [vmem:[%s0 + $0x15d8] sm:$0xf]
  %v718 = vld [vmem:[%s0 + $0x15e0] sm:$0xff]
  %v719 = vld [vmem:[%s0 + $0x15e8] sm:$0xff]
  %v720 = vld [vmem:[%s0 + $0x15f0] sm:$0xff]
  %v721 = vld [vmem:[%s0 + $0x15f8] sm:$0xff]
  %v722 = vld [vmem:[%s0 + $0x1600] sm:$0xff]
  %v723 = vld [vmem:[%s0 + $0x1608] sm:$0xff]
  %v724 = vld [vmem:[%s0 + $0x1610] sm:$0xff]
  %v725 = vld [vmem:[%s0 + $0x1618] sm:$0xff]
  %v726 = vld [vmem:[%s0 + $0x1620] sm:$0xff]
  %v727 = vld [vmem:[%s0 + $0x1628] sm:$0xff]
  %v728 = vld [vmem:[%s0 + $0x1630] sm:$0xff]
  %v729 = vld [vmem:[%s0 + $0x1638] sm:$0xff]
  %v730 = vld [vmem:[%s0 + $0x1640] sm:$0xff]
  %v731 = vld [vmem:[%s0 + $0x1648] sm:$0xff]
  %v732 = vld [vmem:[%s0 + $0x1650] sm:$0xff]
  %v733 = vld [vmem:[%s0 + $0x1658] sm:$0xff]
  %v734 = vld [vmem:[%s0 + $0x1660] sm:$0xff]
  %v735 = vld [vmem:[%s0 + $0x1668] sm:$0xff]
  %v736 = vld [vmem:[%s0 + $0x1670] sm:$0xff]
  %v737 = vld [vmem:[%s0 + $0x1678] sm:$0xff]
  %v738 = vld [vmem:[%s0 + $0x1680] sm:$0xff]
  %v739 = vld [vmem:[%s0 + $0x1688] sm:$0xff]
  %v740 = vld [vmem:[%s0 + $0x1690] sm:$0xff]
  %v741 = vld [vmem:[%s0 + $0x1698] sm:$0xff]
  %v742 = vld [vmem:[%s0 + $0x16a0] sm:$0xff]
  %v743 = vld [vmem:[%s0 + $0x16a8] sm:$0xff]
  %v744 = vld [vmem:[%s0 + $0x16b0] sm:$0xff]
  %v745 = vld [vmem:[%s0 + $0x16b8] sm:$0xff]
  %v746 = vld [vmem:[%s0 + $0x16c0] sm:$0xff]
  %v747 = vld [vmem:[%s0 + $0x16c8] sm:$0xff]
  %v748 = vld [vmem:[%s0 + $0x16d0] sm:$0xff]
  %v749 = vld [vmem:[%s0 + $0x16d8] sm:$0xff]
  %v750 = vld [vmem:[%s0 + $0x16e0] sm:$0xff]
  %v751 = vld [vmem:[%s0 + $0x16e8] sm:$0xff]
  %v752 = vld [vmem:[%s0 + $0x16f0] sm:$0xff]
  %v753 = vld [vmem:[%s0 + $0x16f8] sm:$0xff]
  %v754 = vld [vmem:[%s0 + $0x1700] sm:$0xff]
  %v755 = vld [vmem:[%s0 + $0x1708] sm:$0xff]
  %v756 = vld [vmem:[%s0 + $0x1710] sm:$0xff]
  %v757 = vld [vmem:[%s0 + $0x1718] sm:$0xff]
  %v758 = vld [vmem:[%s0 + $0x1720] sm:$0xff]
  %v759 = vld [vmem:[%s0 + $0x1728] sm:$0xff]
  %v760 = vld [vmem:[%s0 + $0x1730] sm:$0xff]
  %v761 = vld [vmem:[%s0 + $0x1738] sm:$0xff]
  %v762 = vld [vmem:[%s0 + $0x1740] sm:$0xff]
  %v763 = vld [vmem:[%s0 + $0x1748] sm:$0xff]
  %v764 = vld [vmem:[%s0 + $0x1750] sm:$0xff]
  %v765 = vld [vmem:[%s0 + $0x1758] sm:$0xff]
  %v766 = vld [vmem:[%s0 + $0x1760] sm:$0xff]
  %v767 = vld [vmem:[%s0 + $0x1768] sm:$0xff]
  %v768 = vld [vmem:[%s0 + $0x1770] sm:$0xff]
  %v769 = vld [vmem:[%s0 + $0x1778] sm:$0xff]
  %v770 = vld [vmem:[%s0 + $0x1780] sm:$0xff]
  %v771 = vld [vmem:[%s0 + $0x1788] sm:$0xff]
  %v772 = vld [vmem:[%s0 + $0x1790] sm:$0xff]
  %v773 = vld [vmem:[%s0 + $0x1798] sm:$0xff]
  %v774 = vld [vmem:[%s0 + $0x17a0] sm:$0xff]
  %v775 = vld [vmem:[%s0 + $0x17a8] sm:$0xff]
  %v776 = vld [vmem:[%s0 + $0x17b0] sm:$0xff]
  %v777 = vld [vmem:[%s0 + $0x17b8] sm:$0xff]
  %v778 = vld [vmem:[%s0 + $0x17c0] sm:$0xff]
  %v779 = vld [vmem:[%s0 + $0x17c8] sm:$0xff]
  %v780 = vld [vmem:[%s0 + $0x17d0] sm:$0xff]
  %v781 = vld [vmem:[%s0 + $0x17d8] sm:$0xff]
  %v782 = vld [vmem:[%s0 + $0x17e0] sm:$0xff]
  %v783 = vld [vmem:[%s0 + $0x17e8] sm:$0xff]
  %v784 = vld [vmem:[%s0 + $0x17f0] sm:$0xff]
  %v785 = vld [vmem:[%s0 + $0x17f8] sm:$0xff]
  %v786 = vld [vmem:[%s0 + $0x1800] sm:$0xff]
  %v787 = vld [vmem:[%s0 + $0x1808] sm:$0xff]
  %v788 = vld [vmem:[%s0 + $0x1810] sm:$0xff]
  %v789 = vld [vmem:[%s0 + $0x1818] sm:$0xff]
  %v790 = vld [vmem:[%s0 + $0x1820] sm:$0xff]
  %v791 = vld [vmem:[%s0 + $0x1828] sm:$0xff]
  %v792 = vld [vmem:[%s0 + $0x1830] sm:$0xff]
  %v793 = vld [vmem:[%s0 + $0x1838] sm:$0xff]
  %v794 = vld [vmem:[%s0 + $0x1840] sm:$0xff]
  %v795 = vld [vmem:[%s0 + $0x1848] sm:$0xff]
  %v796 = vld [vmem:[%s0 + $0x1850] sm:$0xff]
  %v797 = vld [vmem:[%s0 + $0x1858] sm:$0xff]
  %v798 = vld [vmem:[%s0 + $0x1860] sm:$0xff]
  %v799 = vld [vmem:[%s0 + $0x1868] sm:$0xff]
  %v800 = vld [vmem:[%s0 + $0x1870] sm:$0xff]
  %v801 = vld [vmem:[%s0 + $0x1878] sm:$0xff]
  %v802 = vld [vmem:[%s0 + $0x1880] sm:$0xff]
  %v803 = vld [vmem:[%s0 + $0x1888] sm:$0xff]
  %v804 = vld [vmem:[%s0 + $0x1890] sm:$0xff]
  %v805 = vld [vmem:[%s0 + $0x1898] sm:$0xff]
  %v806 = vld [vmem:[%s0 + $0x18a0] sm:$0xff]
  %v807 = vld [vmem:[%s0 + $0x18a8] sm:$0xff]
  %v808 = vld [vmem:[%s0 + $0x18b0] sm:$0xff]
  %v809 = vld [vmem:[%s0 + $0x18b8] sm:$0xff]
  %v810 = vld [vmem:[%s0 + $0x18c0] sm:$0xff]
  %v811 = vld [vmem:[%s0 + $0x18c8] sm:$0xff]
  %v812 = vld [vmem:[%s0 + $0x18d0] sm:$0xff]
  %v813 = vld [vmem:[%s0 + $0x18d8] sm:$0xff]
  %v814 = vld [vmem:[%s0 + $0x18e0] sm:$0xf]
  %v815 = vld [vmem:[%s0 + $0x18e8] sm:$0xf]
  %v816 = vld [vmem:[%s0 + $0x18f0] sm:$0xf]
  %v817 = vld [vmem:[%s0 + $0x18f8] sm:$0xf]
  %v818 = vadd.f32 %v18, %v19
  %v819 = vadd.f32 %v818, %v20
  %vm820 = vcmask 130048
  %v821 = vsel %vm820, %v21, 0.0
  %v822 = vadd.f32 %v819, %v821
  %823 = vadd.xlane.f32.xlu0 %v822
  %v824 = vpop.xlane.xlu0 %823
  %v825 = vadd.f32 %v22, %v23
  %v826 = vadd.f32 %v825, %v24
  %v827 = vsel %vm820, %v25, 0.0
  %v828 = vadd.f32 %v826, %v827
  %829 = vadd.xlane.f32.xlu0 %v828
  %v830 = vpop.xlane.xlu0 %829
  %v831 = vadd.f32 %v26, %v27
  %v832 = vadd.f32 %v831, %v28
  %v833 = vsel %vm820, %v29, 0.0
  %v834 = vadd.f32 %v832, %v833
  %835 = vadd.xlane.f32.xlu0 %v834
  %v836 = vpop.xlane.xlu0 %835
  %v837 = vadd.f32 %v30, %v31
  %v838 = vadd.f32 %v837, %v32
  %v839 = vsel %vm820, %v33, 0.0
  %v840 = vadd.f32 %v838, %v839
  %841 = vadd.xlane.f32.xlu0 %v840
  %v842 = vpop.xlane.xlu0 %841
  %v843 = vadd.f32 %v34, %v35
  %v844 = vadd.f32 %v843, %v36
  %v845 = vsel %vm820, %v37, 0.0
  %v846 = vadd.f32 %v844, %v845
  %847 = vadd.xlane.f32.xlu0 %v846
  %v848 = vpop.xlane.xlu0 %847
  %v849 = vadd.f32 %v38, %v39
  %v850 = vadd.f32 %v849, %v40
  %v851 = vsel %vm820, %v41, 0.0
  %v852 = vadd.f32 %v850, %v851
  %853 = vadd.xlane.f32.xlu0 %v852
  %v854 = vpop.xlane.xlu0 %853
  %v855 = vadd.f32 %v42, %v43
  %v856 = vadd.f32 %v855, %v44
  %v857 = vsel %vm820, %v45, 0.0
  %v858 = vadd.f32 %v856, %v857
  %859 = vadd.xlane.f32.xlu0 %v858
  %v860 = vpop.xlane.xlu0 %859
  %v861 = vadd.f32 %v46, %v47
  %v862 = vadd.f32 %v861, %v48
  %v863 = vsel %vm820, %v49, 0.0
  %v864 = vadd.f32 %v862, %v863
  %865 = vadd.xlane.f32.xlu0 %v864
  %v866 = vpop.xlane.xlu0 %865
  %v867 = vadd.f32 %v50, %v51
  %v868 = vadd.f32 %v867, %v52
  %v869 = vsel %vm820, %v53, 0.0
  %v870 = vadd.f32 %v868, %v869
  %871 = vadd.xlane.f32.xlu0 %v870
  %v872 = vpop.xlane.xlu0 %871
  %v873 = vadd.f32 %v54, %v55
  %v874 = vadd.f32 %v873, %v56
  %v875 = vsel %vm820, %v57, 0.0
  %v876 = vadd.f32 %v874, %v875
  %877 = vadd.xlane.f32.xlu0 %v876
  %v878 = vpop.xlane.xlu0 %877
  %v879 = vadd.f32 %v58, %v59
  %v880 = vadd.f32 %v879, %v60
  %v881 = vsel %vm820, %v61, 0.0
  %v882 = vadd.f32 %v880, %v881
  %883 = vadd.xlane.f32.xlu0 %v882
  %v884 = vpop.xlane.xlu0 %883
  %v885 = vadd.f32 %v62, %v63
  %v886 = vadd.f32 %v885, %v64
  %v887 = vsel %vm820, %v65, 0.0
  %v888 = vadd.f32 %v886, %v887
  %889 = vadd.xlane.f32.xlu0 %v888
  %v890 = vpop.xlane.xlu0 %889
  %v891 = vadd.f32 %v66, %v67
  %v892 = vadd.f32 %v891, %v68
  %v893 = vsel %vm820, %v69, 0.0
  %v894 = vadd.f32 %v892, %v893
  %895 = vadd.xlane.f32.xlu0 %v894
  %v896 = vpop.xlane.xlu0 %895
  %v897 = vadd.f32 %v70, %v71
  %v898 = vadd.f32 %v897, %v72
  %v899 = vsel %vm820, %v73, 0.0
  %v900 = vadd.f32 %v898, %v899
  %901 = vadd.xlane.f32.xlu0 %v900
  %v902 = vpop.xlane.xlu0 %901
  %v903 = vadd.f32 %v74, %v75
  %v904 = vadd.f32 %v903, %v76
  %v905 = vsel %vm820, %v77, 0.0
  %v906 = vadd.f32 %v904, %v905
  %907 = vadd.xlane.f32.xlu0 %v906
  %v908 = vpop.xlane.xlu0 %907
  %v909 = vadd.f32 %v78, %v79
  %v910 = vadd.f32 %v909, %v80
  %v911 = vsel %vm820, %v81, 0.0
  %v912 = vadd.f32 %v910, %v911
  %913 = vadd.xlane.f32.xlu0 %v912
  %v914 = vpop.xlane.xlu0 %913
  %v915 = vadd.f32 %v82, %v83
  %v916 = vadd.f32 %v915, %v84
  %v917 = vsel %vm820, %v85, 0.0
  %v918 = vadd.f32 %v916, %v917
  %919 = vadd.xlane.f32.xlu0 %v918
  %v920 = vpop.xlane.xlu0 %919
  %v921 = vadd.f32 %v86, %v87
  %v922 = vadd.f32 %v921, %v88
  %v923 = vsel %vm820, %v89, 0.0
  %v924 = vadd.f32 %v922, %v923
  %925 = vadd.xlane.f32.xlu0 %v924
  %v926 = vpop.xlane.xlu0 %925
  %v927 = vadd.f32 %v90, %v91
  %v928 = vadd.f32 %v927, %v92
  %v929 = vsel %vm820, %v93, 0.0
  %v930 = vadd.f32 %v928, %v929
  %931 = vadd.xlane.f32.xlu0 %v930
  %v932 = vpop.xlane.xlu0 %931
  %v933 = vadd.f32 %v94, %v95
  %v934 = vadd.f32 %v933, %v96
  %v935 = vsel %vm820, %v97, 0.0
  %v936 = vadd.f32 %v934, %v935
  %937 = vadd.xlane.f32.xlu0 %v936
  %v938 = vpop.xlane.xlu0 %937
  %v939 = vadd.f32 %v98, %v99
  %v940 = vadd.f32 %v939, %v100
  %v941 = vsel %vm820, %v101, 0.0
  %v942 = vadd.f32 %v940, %v941
  %943 = vadd.xlane.f32.xlu0 %v942
  %v944 = vpop.xlane.xlu0 %943
  %v945 = vadd.f32 %v102, %v103
  %v946 = vadd.f32 %v945, %v104
  %v947 = vsel %vm820, %v105, 0.0
  %v948 = vadd.f32 %v946, %v947
  %949 = vadd.xlane.f32.xlu0 %v948
  %v950 = vpop.xlane.xlu0 %949
  %v951 = vadd.f32 %v106, %v107
  %v952 = vadd.f32 %v951, %v108
  %v953 = vsel %vm820, %v109, 0.0
  %v954 = vadd.f32 %v952, %v953
  %955 = vadd.xlane.f32.xlu0 %v954
  %v956 = vpop.xlane.xlu0 %955
  %v957 = vadd.f32 %v110, %v111
  %v958 = vadd.f32 %v957, %v112
  %v959 = vsel %vm820, %v113, 0.0
  %v960 = vadd.f32 %v958, %v959
  %961 = vadd.xlane.f32.xlu0 %v960
  %v962 = vpop.xlane.xlu0 %961
  %vm963 = vcmask 1043456
  %v964 = vsel %vm963, %v114, 0.0
  %v965 = vsel %vm963, %v115, 0.0
  %v966 = vadd.f32 %v964, %v965
  %v967 = vsel %vm963, %v116, 0.0
  %v968 = vadd.f32 %v966, %v967
  %vm969 = vcmask 125952
  %v970 = vsel %vm969, %v117, 0.0
  %v971 = vadd.f32 %v968, %v970
  %972 = vadd.xlane.f32.xlu0 %v971
  %v973 = vpop.xlane.xlu0 %972
  %v974 = vadd.f32 %v118, %v119
  %v975 = vadd.f32 %v974, %v120
  %v976 = vsel %vm820, %v121, 0.0
  %v977 = vadd.f32 %v975, %v976
  %978 = vadd.xlane.f32.xlu0 %v977
  %v979 = vpop.xlane.xlu0 %978
  %v980 = vadd.f32 %v122, %v123
  %v981 = vadd.f32 %v980, %v124
  %v982 = vsel %vm820, %v125, 0.0
  %v983 = vadd.f32 %v981, %v982
  %984 = vadd.xlane.f32.xlu0 %v983
  %v985 = vpop.xlane.xlu0 %984
  %v986 = vadd.f32 %v126, %v127
  %v987 = vadd.f32 %v986, %v128
  %v988 = vsel %vm820, %v129, 0.0
  %v989 = vadd.f32 %v987, %v988
  %990 = vadd.xlane.f32.xlu0 %v989
  %v991 = vpop.xlane.xlu0 %990
  %v992 = vadd.f32 %v130, %v131
  %v993 = vadd.f32 %v992, %v132
  %v994 = vsel %vm820, %v133, 0.0
  %v995 = vadd.f32 %v993, %v994
  %996 = vadd.xlane.f32.xlu0 %v995
  %v997 = vpop.xlane.xlu0 %996
  %v998 = vadd.f32 %v134, %v135
  %v999 = vadd.f32 %v998, %v136
  %v1000 = vsel %vm820, %v137, 0.0
  %v1001 = vadd.f32 %v999, %v1000
  %1002 = vadd.xlane.f32.xlu0 %v1001
  %v1003 = vpop.xlane.xlu0 %1002
  %v1004 = vadd.f32 %v138, %v139
  %v1005 = vadd.f32 %v1004, %v140
  %v1006 = vsel %vm820, %v141, 0.0
  %v1007 = vadd.f32 %v1005, %v1006
  %1008 = vadd.xlane.f32.xlu0 %v1007
  %v1009 = vpop.xlane.xlu0 %1008
  %v1010 = vadd.f32 %v142, %v143
  %v1011 = vadd.f32 %v1010, %v144
  %v1012 = vsel %vm820, %v145, 0.0
  %v1013 = vadd.f32 %v1011, %v1012
  %1014 = vadd.xlane.f32.xlu0 %v1013
  %v1015 = vpop.xlane.xlu0 %1014
  %v1016 = vadd.f32 %v146, %v147
  %v1017 = vadd.f32 %v1016, %v148
  %v1018 = vsel %vm820, %v149, 0.0
  %v1019 = vadd.f32 %v1017, %v1018
  %1020 = vadd.xlane.f32.xlu0 %v1019
  %v1021 = vpop.xlane.xlu0 %1020
  %v1022 = vadd.f32 %v150, %v151
  %v1023 = vadd.f32 %v1022, %v152
  %v1024 = vsel %vm820, %v153, 0.0
  %v1025 = vadd.f32 %v1023, %v1024
  %1026 = vadd.xlane.f32.xlu0 %v1025
  %v1027 = vpop.xlane.xlu0 %1026
  %v1028 = vadd.f32 %v154, %v155
  %v1029 = vadd.f32 %v1028, %v156
  %v1030 = vsel %vm820, %v157, 0.0
  %v1031 = vadd.f32 %v1029, %v1030
  %1032 = vadd.xlane.f32.xlu0 %v1031
  %v1033 = vpop.xlane.xlu0 %1032
  %v1034 = vadd.f32 %v158, %v159
  %v1035 = vadd.f32 %v1034, %v160
  %v1036 = vsel %vm820, %v161, 0.0
  %v1037 = vadd.f32 %v1035, %v1036
  %1038 = vadd.xlane.f32.xlu0 %v1037
  %v1039 = vpop.xlane.xlu0 %1038
  %v1040 = vadd.f32 %v162, %v163
  %v1041 = vadd.f32 %v1040, %v164
  %v1042 = vsel %vm820, %v165, 0.0
  %v1043 = vadd.f32 %v1041, %v1042
  %1044 = vadd.xlane.f32.xlu0 %v1043
  %v1045 = vpop.xlane.xlu0 %1044
  %v1046 = vadd.f32 %v166, %v167
  %v1047 = vadd.f32 %v1046, %v168
  %v1048 = vsel %vm820, %v169, 0.0
  %v1049 = vadd.f32 %v1047, %v1048
  %1050 = vadd.xlane.f32.xlu0 %v1049
  %v1051 = vpop.xlane.xlu0 %1050
  %v1052 = vadd.f32 %v170, %v171
  %v1053 = vadd.f32 %v1052, %v172
  %v1054 = vsel %vm820, %v173, 0.0
  %v1055 = vadd.f32 %v1053, %v1054
  %1056 = vadd.xlane.f32.xlu0 %v1055
  %v1057 = vpop.xlane.xlu0 %1056
  %v1058 = vadd.f32 %v174, %v175
  %v1059 = vadd.f32 %v1058, %v176
  %v1060 = vsel %vm820, %v177, 0.0
  %v1061 = vadd.f32 %v1059, %v1060
  %1062 = vadd.xlane.f32.xlu0 %v1061
  %v1063 = vpop.xlane.xlu0 %1062
  %v1064 = vadd.f32 %v178, %v179
  %v1065 = vadd.f32 %v1064, %v180
  %v1066 = vsel %vm820, %v181, 0.0
  %v1067 = vadd.f32 %v1065, %v1066
  %1068 = vadd.xlane.f32.xlu0 %v1067
  %v1069 = vpop.xlane.xlu0 %1068
  %v1070 = vadd.f32 %v182, %v183
  %v1071 = vadd.f32 %v1070, %v184
  %v1072 = vsel %vm820, %v185, 0.0
  %v1073 = vadd.f32 %v1071, %v1072
  %1074 = vadd.xlane.f32.xlu0 %v1073
  %v1075 = vpop.xlane.xlu0 %1074
  %v1076 = vadd.f32 %v186, %v187
  %v1077 = vadd.f32 %v1076, %v188
  %v1078 = vsel %vm820, %v189, 0.0
  %v1079 = vadd.f32 %v1077, %v1078
  %1080 = vadd.xlane.f32.xlu0 %v1079
  %v1081 = vpop.xlane.xlu0 %1080
  %v1082 = vadd.f32 %v190, %v191
  %v1083 = vadd.f32 %v1082, %v192
  %v1084 = vsel %vm820, %v193, 0.0
  %v1085 = vadd.f32 %v1083, %v1084
  %1086 = vadd.xlane.f32.xlu0 %v1085
  %v1087 = vpop.xlane.xlu0 %1086
  %v1088 = vadd.f32 %v194, %v195
  %v1089 = vadd.f32 %v1088, %v196
  %v1090 = vsel %vm820, %v197, 0.0
  %v1091 = vadd.f32 %v1089, %v1090
  %1092 = vadd.xlane.f32.xlu0 %v1091
  %v1093 = vpop.xlane.xlu0 %1092
  %v1094 = vadd.f32 %v198, %v199
  %v1095 = vadd.f32 %v1094, %v200
  %v1096 = vsel %vm820, %v201, 0.0
  %v1097 = vadd.f32 %v1095, %v1096
  %1098 = vadd.xlane.f32.xlu0 %v1097
  %v1099 = vpop.xlane.xlu0 %1098
  %v1100 = vadd.f32 %v202, %v203
  %v1101 = vadd.f32 %v1100, %v204
  %v1102 = vsel %vm820, %v205, 0.0
  %v1103 = vadd.f32 %v1101, %v1102
  %1104 = vadd.xlane.f32.xlu0 %v1103
  %v1105 = vpop.xlane.xlu0 %1104
  %v1106 = vadd.f32 %v206, %v207
  %v1107 = vadd.f32 %v1106, %v208
  %v1108 = vsel %vm820, %v209, 0.0
  %v1109 = vadd.f32 %v1107, %v1108
  %1110 = vadd.xlane.f32.xlu0 %v1109
  %v1111 = vpop.xlane.xlu0 %1110
  %v1112 = vadd.f32 %v210, %v211
  %v1113 = vadd.f32 %v1112, %v212
  %v1114 = vsel %vm820, %v213, 0.0
  %v1115 = vadd.f32 %v1113, %v1114
  %1116 = vadd.xlane.f32.xlu0 %v1115
  %v1117 = vpop.xlane.xlu0 %1116
  %v1118 = vsel %vm963, %v214, 0.0
  %v1119 = vsel %vm963, %v215, 0.0
  %v1120 = vadd.f32 %v1118, %v1119
  %v1121 = vsel %vm963, %v216, 0.0
  %v1122 = vadd.f32 %v1120, %v1121
  %v1123 = vsel %vm969, %v217, 0.0
  %v1124 = vadd.f32 %v1122, %v1123
  %1125 = vadd.xlane.f32.xlu0 %v1124
  %v1126 = vpop.xlane.xlu0 %1125
  %v1127 = vadd.f32 %v218, %v219
  %v1128 = vadd.f32 %v1127, %v220
  %v1129 = vsel %vm820, %v221, 0.0
  %v1130 = vadd.f32 %v1128, %v1129
  %1131 = vadd.xlane.f32.xlu0 %v1130
  %v1132 = vpop.xlane.xlu0 %1131
  %v1133 = vadd.f32 %v222, %v223
  %v1134 = vadd.f32 %v1133, %v224
  %v1135 = vsel %vm820, %v225, 0.0
  %v1136 = vadd.f32 %v1134, %v1135
  %1137 = vadd.xlane.f32.xlu0 %v1136
  %v1138 = vpop.xlane.xlu0 %1137
  %v1139 = vadd.f32 %v226, %v227
  %v1140 = vadd.f32 %v1139, %v228
  %v1141 = vsel %vm820, %v229, 0.0
  %v1142 = vadd.f32 %v1140, %v1141
  %1143 = vadd.xlane.f32.xlu0 %v1142
  %v1144 = vpop.xlane.xlu0 %1143
  %v1145 = vadd.f32 %v230, %v231
  %v1146 = vadd.f32 %v1145, %v232
  %v1147 = vsel %vm820, %v233, 0.0
  %v1148 = vadd.f32 %v1146, %v1147
  %1149 = vadd.xlane.f32.xlu0 %v1148
  %v1150 = vpop.xlane.xlu0 %1149
  %v1151 = vadd.f32 %v234, %v235
  %v1152 = vadd.f32 %v1151, %v236
  %v1153 = vsel %vm820, %v237, 0.0
  %v1154 = vadd.f32 %v1152, %v1153
  %1155 = vadd.xlane.f32.xlu0 %v1154
  %v1156 = vpop.xlane.xlu0 %1155
  %v1157 = vadd.f32 %v238, %v239
  %v1158 = vadd.f32 %v1157, %v240
  %v1159 = vsel %vm820, %v241, 0.0
  %v1160 = vadd.f32 %v1158, %v1159
  %1161 = vadd.xlane.f32.xlu0 %v1160
  %v1162 = vpop.xlane.xlu0 %1161
  %v1163 = vadd.f32 %v242, %v243
  %v1164 = vadd.f32 %v1163, %v244
  %v1165 = vsel %vm820, %v245, 0.0
  %v1166 = vadd.f32 %v1164, %v1165
  %1167 = vadd.xlane.f32.xlu0 %v1166
  %v1168 = vpop.xlane.xlu0 %1167
  %v1169 = vadd.f32 %v246, %v247
  %v1170 = vadd.f32 %v1169, %v248
  %v1171 = vsel %vm820, %v249, 0.0
  %v1172 = vadd.f32 %v1170, %v1171
  %1173 = vadd.xlane.f32.xlu0 %v1172
  %v1174 = vpop.xlane.xlu0 %1173
  %v1175 = vadd.f32 %v250, %v251
  %v1176 = vadd.f32 %v1175, %v252
  %v1177 = vsel %vm820, %v253, 0.0
  %v1178 = vadd.f32 %v1176, %v1177
  %1179 = vadd.xlane.f32.xlu0 %v1178
  %v1180 = vpop.xlane.xlu0 %1179
  %v1181 = vadd.f32 %v254, %v255
  %v1182 = vadd.f32 %v1181, %v256
  %v1183 = vsel %vm820, %v257, 0.0
  %v1184 = vadd.f32 %v1182, %v1183
  %1185 = vadd.xlane.f32.xlu0 %v1184
  %v1186 = vpop.xlane.xlu0 %1185
  %v1187 = vadd.f32 %v258, %v259
  %v1188 = vadd.f32 %v1187, %v260
  %v1189 = vsel %vm820, %v261, 0.0
  %v1190 = vadd.f32 %v1188, %v1189
  %1191 = vadd.xlane.f32.xlu0 %v1190
  %v1192 = vpop.xlane.xlu0 %1191
  %v1193 = vadd.f32 %v262, %v263
  %v1194 = vadd.f32 %v1193, %v264
  %v1195 = vsel %vm820, %v265, 0.0
  %v1196 = vadd.f32 %v1194, %v1195
  %1197 = vadd.xlane.f32.xlu0 %v1196
  %v1198 = vpop.xlane.xlu0 %1197
  %v1199 = vadd.f32 %v266, %v267
  %v1200 = vadd.f32 %v1199, %v268
  %v1201 = vsel %vm820, %v269, 0.0
  %v1202 = vadd.f32 %v1200, %v1201
  %1203 = vadd.xlane.f32.xlu0 %v1202
  %v1204 = vpop.xlane.xlu0 %1203
  %v1205 = vadd.f32 %v270, %v271
  %v1206 = vadd.f32 %v1205, %v272
  %v1207 = vsel %vm820, %v273, 0.0
  %v1208 = vadd.f32 %v1206, %v1207
  %1209 = vadd.xlane.f32.xlu0 %v1208
  %v1210 = vpop.xlane.xlu0 %1209
  %v1211 = vadd.f32 %v274, %v275
  %v1212 = vadd.f32 %v1211, %v276
  %v1213 = vsel %vm820, %v277, 0.0
  %v1214 = vadd.f32 %v1212, %v1213
  %1215 = vadd.xlane.f32.xlu0 %v1214
  %v1216 = vpop.xlane.xlu0 %1215
  %v1217 = vadd.f32 %v278, %v279
  %v1218 = vadd.f32 %v1217, %v280
  %v1219 = vsel %vm820, %v281, 0.0
  %v1220 = vadd.f32 %v1218, %v1219
  %1221 = vadd.xlane.f32.xlu0 %v1220
  %v1222 = vpop.xlane.xlu0 %1221
  %v1223 = vadd.f32 %v282, %v283
  %v1224 = vadd.f32 %v1223, %v284
  %v1225 = vsel %vm820, %v285, 0.0
  %v1226 = vadd.f32 %v1224, %v1225
  %1227 = vadd.xlane.f32.xlu0 %v1226
  %v1228 = vpop.xlane.xlu0 %1227
  %v1229 = vadd.f32 %v286, %v287
  %v1230 = vadd.f32 %v1229, %v288
  %v1231 = vsel %vm820, %v289, 0.0
  %v1232 = vadd.f32 %v1230, %v1231
  %1233 = vadd.xlane.f32.xlu0 %v1232
  %v1234 = vpop.xlane.xlu0 %1233
  %v1235 = vadd.f32 %v290, %v291
  %v1236 = vadd.f32 %v1235, %v292
  %v1237 = vsel %vm820, %v293, 0.0
  %v1238 = vadd.f32 %v1236, %v1237
  %1239 = vadd.xlane.f32.xlu0 %v1238
  %v1240 = vpop.xlane.xlu0 %1239
  %v1241 = vadd.f32 %v294, %v295
  %v1242 = vadd.f32 %v1241, %v296
  %v1243 = vsel %vm820, %v297, 0.0
  %v1244 = vadd.f32 %v1242, %v1243
  %1245 = vadd.xlane.f32.xlu0 %v1244
  %v1246 = vpop.xlane.xlu0 %1245
  %v1247 = vadd.f32 %v298, %v299
  %v1248 = vadd.f32 %v1247, %v300
  %v1249 = vsel %vm820, %v301, 0.0
  %v1250 = vadd.f32 %v1248, %v1249
  %1251 = vadd.xlane.f32.xlu0 %v1250
  %v1252 = vpop.xlane.xlu0 %1251
  %v1253 = vadd.f32 %v302, %v303
  %v1254 = vadd.f32 %v1253, %v304
  %v1255 = vsel %vm820, %v305, 0.0
  %v1256 = vadd.f32 %v1254, %v1255
  %1257 = vadd.xlane.f32.xlu0 %v1256
  %v1258 = vpop.xlane.xlu0 %1257
  %v1259 = vadd.f32 %v306, %v307
  %v1260 = vadd.f32 %v1259, %v308
  %v1261 = vsel %vm820, %v309, 0.0
  %v1262 = vadd.f32 %v1260, %v1261
  %1263 = vadd.xlane.f32.xlu0 %v1262
  %v1264 = vpop.xlane.xlu0 %1263
  %v1265 = vadd.f32 %v310, %v311
  %v1266 = vadd.f32 %v1265, %v312
  %v1267 = vsel %vm820, %v313, 0.0
  %v1268 = vadd.f32 %v1266, %v1267
  %1269 = vadd.xlane.f32.xlu0 %v1268
  %v1270 = vpop.xlane.xlu0 %1269
  %v1271 = vsel %vm963, %v314, 0.0
  %v1272 = vsel %vm963, %v315, 0.0
  %v1273 = vadd.f32 %v1271, %v1272
  %v1274 = vsel %vm963, %v316, 0.0
  %v1275 = vadd.f32 %v1273, %v1274
  %v1276 = vsel %vm969, %v317, 0.0
  %v1277 = vadd.f32 %v1275, %v1276
  %1278 = vadd.xlane.f32.xlu0 %v1277
  %v1279 = vpop.xlane.xlu0 %1278
  %v1280 = vadd.f32 %v318, %v319
  %v1281 = vadd.f32 %v1280, %v320
  %v1282 = vsel %vm820, %v321, 0.0
  %v1283 = vadd.f32 %v1281, %v1282
  %1284 = vadd.xlane.f32.xlu0 %v1283
  %v1285 = vpop.xlane.xlu0 %1284
  %v1286 = vadd.f32 %v322, %v323
  %v1287 = vadd.f32 %v1286, %v324
  %v1288 = vsel %vm820, %v325, 0.0
  %v1289 = vadd.f32 %v1287, %v1288
  %1290 = vadd.xlane.f32.xlu0 %v1289
  %v1291 = vpop.xlane.xlu0 %1290
  %v1292 = vadd.f32 %v326, %v327
  %v1293 = vadd.f32 %v1292, %v328
  %v1294 = vsel %vm820, %v329, 0.0
  %v1295 = vadd.f32 %v1293, %v1294
  %1296 = vadd.xlane.f32.xlu0 %v1295
  %v1297 = vpop.xlane.xlu0 %1296
  %v1298 = vadd.f32 %v330, %v331
  %v1299 = vadd.f32 %v1298, %v332
  %v1300 = vsel %vm820, %v333, 0.0
  %v1301 = vadd.f32 %v1299, %v1300
  %1302 = vadd.xlane.f32.xlu0 %v1301
  %v1303 = vpop.xlane.xlu0 %1302
  %v1304 = vadd.f32 %v334, %v335
  %v1305 = vadd.f32 %v1304, %v336
  %v1306 = vsel %vm820, %v337, 0.0
  %v1307 = vadd.f32 %v1305, %v1306
  %1308 = vadd.xlane.f32.xlu0 %v1307
  %v1309 = vpop.xlane.xlu0 %1308
  %v1310 = vadd.f32 %v338, %v339
  %v1311 = vadd.f32 %v1310, %v340
  %v1312 = vsel %vm820, %v341, 0.0
  %v1313 = vadd.f32 %v1311, %v1312
  %1314 = vadd.xlane.f32.xlu0 %v1313
  %v1315 = vpop.xlane.xlu0 %1314
  %v1316 = vadd.f32 %v342, %v343
  %v1317 = vadd.f32 %v1316, %v344
  %v1318 = vsel %vm820, %v345, 0.0
  %v1319 = vadd.f32 %v1317, %v1318
  %1320 = vadd.xlane.f32.xlu0 %v1319
  %v1321 = vpop.xlane.xlu0 %1320
  %v1322 = vadd.f32 %v346, %v347
  %v1323 = vadd.f32 %v1322, %v348
  %v1324 = vsel %vm820, %v349, 0.0
  %v1325 = vadd.f32 %v1323, %v1324
  %1326 = vadd.xlane.f32.xlu0 %v1325
  %v1327 = vpop.xlane.xlu0 %1326
  %v1328 = vadd.f32 %v350, %v351
  %v1329 = vadd.f32 %v1328, %v352
  %v1330 = vsel %vm820, %v353, 0.0
  %v1331 = vadd.f32 %v1329, %v1330
  %1332 = vadd.xlane.f32.xlu0 %v1331
  %v1333 = vpop.xlane.xlu0 %1332
  %v1334 = vadd.f32 %v354, %v355
  %v1335 = vadd.f32 %v1334, %v356
  %v1336 = vsel %vm820, %v357, 0.0
  %v1337 = vadd.f32 %v1335, %v1336
  %1338 = vadd.xlane.f32.xlu0 %v1337
  %v1339 = vpop.xlane.xlu0 %1338
  %v1340 = vadd.f32 %v358, %v359
  %v1341 = vadd.f32 %v1340, %v360
  %v1342 = vsel %vm820, %v361, 0.0
  %v1343 = vadd.f32 %v1341, %v1342
  %1344 = vadd.xlane.f32.xlu0 %v1343
  %v1345 = vpop.xlane.xlu0 %1344
  %v1346 = vadd.f32 %v362, %v363
  %v1347 = vadd.f32 %v1346, %v364
  %v1348 = vsel %vm820, %v365, 0.0
  %v1349 = vadd.f32 %v1347, %v1348
  %1350 = vadd.xlane.f32.xlu0 %v1349
  %v1351 = vpop.xlane.xlu0 %1350
  %v1352 = vadd.f32 %v366, %v367
  %v1353 = vadd.f32 %v1352, %v368
  %v1354 = vsel %vm820, %v369, 0.0
  %v1355 = vadd.f32 %v1353, %v1354
  %1356 = vadd.xlane.f32.xlu0 %v1355
  %v1357 = vpop.xlane.xlu0 %1356
  %v1358 = vadd.f32 %v370, %v371
  %v1359 = vadd.f32 %v1358, %v372
  %v1360 = vsel %vm820, %v373, 0.0
  %v1361 = vadd.f32 %v1359, %v1360
  %1362 = vadd.xlane.f32.xlu0 %v1361
  %v1363 = vpop.xlane.xlu0 %1362
  %v1364 = vadd.f32 %v374, %v375
  %v1365 = vadd.f32 %v1364, %v376
  %v1366 = vsel %vm820, %v377, 0.0
  %v1367 = vadd.f32 %v1365, %v1366
  %1368 = vadd.xlane.f32.xlu0 %v1367
  %v1369 = vpop.xlane.xlu0 %1368
  %v1370 = vadd.f32 %v378, %v379
  %v1371 = vadd.f32 %v1370, %v380
  %v1372 = vsel %vm820, %v381, 0.0
  %v1373 = vadd.f32 %v1371, %v1372
  %1374 = vadd.xlane.f32.xlu0 %v1373
  %v1375 = vpop.xlane.xlu0 %1374
  %v1376 = vadd.f32 %v382, %v383
  %v1377 = vadd.f32 %v1376, %v384
  %v1378 = vsel %vm820, %v385, 0.0
  %v1379 = vadd.f32 %v1377, %v1378
  %1380 = vadd.xlane.f32.xlu0 %v1379
  %v1381 = vpop.xlane.xlu0 %1380
  %v1382 = vadd.f32 %v386, %v387
  %v1383 = vadd.f32 %v1382, %v388
  %v1384 = vsel %vm820, %v389, 0.0
  %v1385 = vadd.f32 %v1383, %v1384
  %1386 = vadd.xlane.f32.xlu0 %v1385
  %v1387 = vpop.xlane.xlu0 %1386
  %v1388 = vadd.f32 %v390, %v391
  %v1389 = vadd.f32 %v1388, %v392
  %v1390 = vsel %vm820, %v393, 0.0
  %v1391 = vadd.f32 %v1389, %v1390
  %1392 = vadd.xlane.f32.xlu0 %v1391
  %v1393 = vpop.xlane.xlu0 %1392
  %v1394 = vadd.f32 %v394, %v395
  %v1395 = vadd.f32 %v1394, %v396
  %v1396 = vsel %vm820, %v397, 0.0
  %v1397 = vadd.f32 %v1395, %v1396
  %1398 = vadd.xlane.f32.xlu0 %v1397
  %v1399 = vpop.xlane.xlu0 %1398
  %v1400 = vadd.f32 %v398, %v399
  %v1401 = vadd.f32 %v1400, %v400
  %v1402 = vsel %vm820, %v401, 0.0
  %v1403 = vadd.f32 %v1401, %v1402
  %1404 = vadd.xlane.f32.xlu0 %v1403
  %v1405 = vpop.xlane.xlu0 %1404
  %v1406 = vadd.f32 %v402, %v403
  %v1407 = vadd.f32 %v1406, %v404
  %v1408 = vsel %vm820, %v405, 0.0
  %v1409 = vadd.f32 %v1407, %v1408
  %1410 = vadd.xlane.f32.xlu0 %v1409
  %v1411 = vpop.xlane.xlu0 %1410
  %v1412 = vadd.f32 %v406, %v407
  %v1413 = vadd.f32 %v1412, %v408
  %v1414 = vsel %vm820, %v409, 0.0
  %v1415 = vadd.f32 %v1413, %v1414
  %1416 = vadd.xlane.f32.xlu0 %v1415
  %v1417 = vpop.xlane.xlu0 %1416
  %v1418 = vadd.f32 %v410, %v411
  %v1419 = vadd.f32 %v1418, %v412
  %v1420 = vsel %vm820, %v413, 0.0
  %v1421 = vadd.f32 %v1419, %v1420
  %1422 = vadd.xlane.f32.xlu0 %v1421
  %v1423 = vpop.xlane.xlu0 %1422
  %v1424 = vsel %vm963, %v414, 0.0
  %v1425 = vsel %vm963, %v415, 0.0
  %v1426 = vadd.f32 %v1424, %v1425
  %v1427 = vsel %vm963, %v416, 0.0
  %v1428 = vadd.f32 %v1426, %v1427
  %v1429 = vsel %vm969, %v417, 0.0
  %v1430 = vadd.f32 %v1428, %v1429
  %1431 = vadd.xlane.f32.xlu0 %v1430
  %v1432 = vpop.xlane.xlu0 %1431
  %v1433 = vadd.f32 %v418, %v419
  %v1434 = vadd.f32 %v1433, %v420
  %v1435 = vsel %vm820, %v421, 0.0
  %v1436 = vadd.f32 %v1434, %v1435
  %1437 = vadd.xlane.f32.xlu0 %v1436
  %v1438 = vpop.xlane.xlu0 %1437
  %v1439 = vadd.f32 %v422, %v423
  %v1440 = vadd.f32 %v1439, %v424
  %v1441 = vsel %vm820, %v425, 0.0
  %v1442 = vadd.f32 %v1440, %v1441
  %1443 = vadd.xlane.f32.xlu0 %v1442
  %v1444 = vpop.xlane.xlu0 %1443
  %v1445 = vadd.f32 %v426, %v427
  %v1446 = vadd.f32 %v1445, %v428
  %v1447 = vsel %vm820, %v429, 0.0
  %v1448 = vadd.f32 %v1446, %v1447
  %1449 = vadd.xlane.f32.xlu0 %v1448
  %v1450 = vpop.xlane.xlu0 %1449
  %v1451 = vadd.f32 %v430, %v431
  %v1452 = vadd.f32 %v1451, %v432
  %v1453 = vsel %vm820, %v433, 0.0
  %v1454 = vadd.f32 %v1452, %v1453
  %1455 = vadd.xlane.f32.xlu0 %v1454
  %v1456 = vpop.xlane.xlu0 %1455
  %v1457 = vadd.f32 %v434, %v435
  %v1458 = vadd.f32 %v1457, %v436
  %v1459 = vsel %vm820, %v437, 0.0
  %v1460 = vadd.f32 %v1458, %v1459
  %1461 = vadd.xlane.f32.xlu0 %v1460
  %v1462 = vpop.xlane.xlu0 %1461
  %v1463 = vadd.f32 %v438, %v439
  %v1464 = vadd.f32 %v1463, %v440
  %v1465 = vsel %vm820, %v441, 0.0
  %v1466 = vadd.f32 %v1464, %v1465
  %1467 = vadd.xlane.f32.xlu0 %v1466
  %v1468 = vpop.xlane.xlu0 %1467
  %v1469 = vadd.f32 %v442, %v443
  %v1470 = vadd.f32 %v1469, %v444
  %v1471 = vsel %vm820, %v445, 0.0
  %v1472 = vadd.f32 %v1470, %v1471
  %1473 = vadd.xlane.f32.xlu0 %v1472
  %v1474 = vpop.xlane.xlu0 %1473
  %v1475 = vadd.f32 %v446, %v447
  %v1476 = vadd.f32 %v1475, %v448
  %v1477 = vsel %vm820, %v449, 0.0
  %v1478 = vadd.f32 %v1476, %v1477
  %1479 = vadd.xlane.f32.xlu0 %v1478
  %v1480 = vpop.xlane.xlu0 %1479
  %v1481 = vadd.f32 %v450, %v451
  %v1482 = vadd.f32 %v1481, %v452
  %v1483 = vsel %vm820, %v453, 0.0
  %v1484 = vadd.f32 %v1482, %v1483
  %1485 = vadd.xlane.f32.xlu0 %v1484
  %v1486 = vpop.xlane.xlu0 %1485
  %v1487 = vadd.f32 %v454, %v455
  %v1488 = vadd.f32 %v1487, %v456
  %v1489 = vsel %vm820, %v457, 0.0
  %v1490 = vadd.f32 %v1488, %v1489
  %1491 = vadd.xlane.f32.xlu0 %v1490
  %v1492 = vpop.xlane.xlu0 %1491
  %v1493 = vadd.f32 %v458, %v459
  %v1494 = vadd.f32 %v1493, %v460
  %v1495 = vsel %vm820, %v461, 0.0
  %v1496 = vadd.f32 %v1494, %v1495
  %1497 = vadd.xlane.f32.xlu0 %v1496
  %v1498 = vpop.xlane.xlu0 %1497
  %v1499 = vadd.f32 %v462, %v463
  %v1500 = vadd.f32 %v1499, %v464
  %v1501 = vsel %vm820, %v465, 0.0
  %v1502 = vadd.f32 %v1500, %v1501
  %1503 = vadd.xlane.f32.xlu0 %v1502
  %v1504 = vpop.xlane.xlu0 %1503
  %v1505 = vadd.f32 %v466, %v467
  %v1506 = vadd.f32 %v1505, %v468
  %v1507 = vsel %vm820, %v469, 0.0
  %v1508 = vadd.f32 %v1506, %v1507
  %1509 = vadd.xlane.f32.xlu0 %v1508
  %v1510 = vpop.xlane.xlu0 %1509
  %v1511 = vadd.f32 %v470, %v471
  %v1512 = vadd.f32 %v1511, %v472
  %v1513 = vsel %vm820, %v473, 0.0
  %v1514 = vadd.f32 %v1512, %v1513
  %1515 = vadd.xlane.f32.xlu0 %v1514
  %v1516 = vpop.xlane.xlu0 %1515
  %v1517 = vadd.f32 %v474, %v475
  %v1518 = vadd.f32 %v1517, %v476
  %v1519 = vsel %vm820, %v477, 0.0
  %v1520 = vadd.f32 %v1518, %v1519
  %1521 = vadd.xlane.f32.xlu0 %v1520
  %v1522 = vpop.xlane.xlu0 %1521
  %v1523 = vadd.f32 %v478, %v479
  %v1524 = vadd.f32 %v1523, %v480
  %v1525 = vsel %vm820, %v481, 0.0
  %v1526 = vadd.f32 %v1524, %v1525
  %1527 = vadd.xlane.f32.xlu0 %v1526
  %v1528 = vpop.xlane.xlu0 %1527
  %v1529 = vadd.f32 %v482, %v483
  %v1530 = vadd.f32 %v1529, %v484
  %v1531 = vsel %vm820, %v485, 0.0
  %v1532 = vadd.f32 %v1530, %v1531
  %1533 = vadd.xlane.f32.xlu0 %v1532
  %v1534 = vpop.xlane.xlu0 %1533
  %v1535 = vadd.f32 %v486, %v487
  %v1536 = vadd.f32 %v1535, %v488
  %v1537 = vsel %vm820, %v489, 0.0
  %v1538 = vadd.f32 %v1536, %v1537
  %1539 = vadd.xlane.f32.xlu0 %v1538
  %v1540 = vpop.xlane.xlu0 %1539
  %v1541 = vadd.f32 %v490, %v491
  %v1542 = vadd.f32 %v1541, %v492
  %v1543 = vsel %vm820, %v493, 0.0
  %v1544 = vadd.f32 %v1542, %v1543
  %1545 = vadd.xlane.f32.xlu0 %v1544
  %v1546 = vpop.xlane.xlu0 %1545
  %v1547 = vadd.f32 %v494, %v495
  %v1548 = vadd.f32 %v1547, %v496
  %v1549 = vsel %vm820, %v497, 0.0
  %v1550 = vadd.f32 %v1548, %v1549
  %1551 = vadd.xlane.f32.xlu0 %v1550
  %v1552 = vpop.xlane.xlu0 %1551
  %v1553 = vadd.f32 %v498, %v499
  %v1554 = vadd.f32 %v1553, %v500
  %v1555 = vsel %vm820, %v501, 0.0
  %v1556 = vadd.f32 %v1554, %v1555
  %1557 = vadd.xlane.f32.xlu0 %v1556
  %v1558 = vpop.xlane.xlu0 %1557
  %v1559 = vadd.f32 %v502, %v503
  %v1560 = vadd.f32 %v1559, %v504
  %v1561 = vsel %vm820, %v505, 0.0
  %v1562 = vadd.f32 %v1560, %v1561
  %1563 = vadd.xlane.f32.xlu0 %v1562
  %v1564 = vpop.xlane.xlu0 %1563
  %v1565 = vadd.f32 %v506, %v507
  %v1566 = vadd.f32 %v1565, %v508
  %v1567 = vsel %vm820, %v509, 0.0
  %v1568 = vadd.f32 %v1566, %v1567
  %1569 = vadd.xlane.f32.xlu0 %v1568
  %v1570 = vpop.xlane.xlu0 %1569
  %v1571 = vadd.f32 %v510, %v511
  %v1572 = vadd.f32 %v1571, %v512
  %v1573 = vsel %vm820, %v513, 0.0
  %v1574 = vadd.f32 %v1572, %v1573
  %1575 = vadd.xlane.f32.xlu0 %v1574
  %v1576 = vpop.xlane.xlu0 %1575
  %v1577 = vsel %vm963, %v514, 0.0
  %v1578 = vsel %vm963, %v515, 0.0
  %v1579 = vadd.f32 %v1577, %v1578
  %v1580 = vsel %vm963, %v516, 0.0
  %v1581 = vadd.f32 %v1579, %v1580
  %v1582 = vsel %vm969, %v517, 0.0
  %v1583 = vadd.f32 %v1581, %v1582
  %1584 = vadd.xlane.f32.xlu0 %v1583
  %v1585 = vpop.xlane.xlu0 %1584
  %v1586 = vadd.f32 %v518, %v519
  %v1587 = vadd.f32 %v1586, %v520
  %v1588 = vsel %vm820, %v521, 0.0
  %v1589 = vadd.f32 %v1587, %v1588
  %1590 = vadd.xlane.f32.xlu0 %v1589
  %v1591 = vpop.xlane.xlu0 %1590
  %v1592 = vadd.f32 %v522, %v523
  %v1593 = vadd.f32 %v1592, %v524
  %v1594 = vsel %vm820, %v525, 0.0
  %v1595 = vadd.f32 %v1593, %v1594
  %1596 = vadd.xlane.f32.xlu0 %v1595
  %v1597 = vpop.xlane.xlu0 %1596
  %v1598 = vadd.f32 %v526, %v527
  %v1599 = vadd.f32 %v1598, %v528
  %v1600 = vsel %vm820, %v529, 0.0
  %v1601 = vadd.f32 %v1599, %v1600
  %1602 = vadd.xlane.f32.xlu0 %v1601
  %v1603 = vpop.xlane.xlu0 %1602
  %v1604 = vadd.f32 %v530, %v531
  %v1605 = vadd.f32 %v1604, %v532
  %v1606 = vsel %vm820, %v533, 0.0
  %v1607 = vadd.f32 %v1605, %v1606
  %1608 = vadd.xlane.f32.xlu0 %v1607
  %v1609 = vpop.xlane.xlu0 %1608
  %v1610 = vadd.f32 %v534, %v535
  %v1611 = vadd.f32 %v1610, %v536
  %v1612 = vsel %vm820, %v537, 0.0
  %v1613 = vadd.f32 %v1611, %v1612
  %1614 = vadd.xlane.f32.xlu0 %v1613
  %v1615 = vpop.xlane.xlu0 %1614
  %v1616 = vadd.f32 %v538, %v539
  %v1617 = vadd.f32 %v1616, %v540
  %v1618 = vsel %vm820, %v541, 0.0
  %v1619 = vadd.f32 %v1617, %v1618
  %1620 = vadd.xlane.f32.xlu0 %v1619
  %v1621 = vpop.xlane.xlu0 %1620
  %v1622 = vadd.f32 %v542, %v543
  %v1623 = vadd.f32 %v1622, %v544
  %v1624 = vsel %vm820, %v545, 0.0
  %v1625 = vadd.f32 %v1623, %v1624
  %1626 = vadd.xlane.f32.xlu0 %v1625
  %v1627 = vpop.xlane.xlu0 %1626
  %v1628 = vadd.f32 %v546, %v547
  %v1629 = vadd.f32 %v1628, %v548
  %v1630 = vsel %vm820, %v549, 0.0
  %v1631 = vadd.f32 %v1629, %v1630
  %1632 = vadd.xlane.f32.xlu0 %v1631
  %v1633 = vpop.xlane.xlu0 %1632
  %v1634 = vadd.f32 %v550, %v551
  %v1635 = vadd.f32 %v1634, %v552
  %v1636 = vsel %vm820, %v553, 0.0
  %v1637 = vadd.f32 %v1635, %v1636
  %1638 = vadd.xlane.f32.xlu0 %v1637
  %v1639 = vpop.xlane.xlu0 %1638
  %v1640 = vadd.f32 %v554, %v555
  %v1641 = vadd.f32 %v1640, %v556
  %v1642 = vsel %vm820, %v557, 0.0
  %v1643 = vadd.f32 %v1641, %v1642
  %1644 = vadd.xlane.f32.xlu0 %v1643
  %v1645 = vpop.xlane.xlu0 %1644
  %v1646 = vadd.f32 %v558, %v559
  %v1647 = vadd.f32 %v1646, %v560
  %v1648 = vsel %vm820, %v561, 0.0
  %v1649 = vadd.f32 %v1647, %v1648
  %1650 = vadd.xlane.f32.xlu0 %v1649
  %v1651 = vpop.xlane.xlu0 %1650
  %v1652 = vadd.f32 %v562, %v563
  %v1653 = vadd.f32 %v1652, %v564
  %v1654 = vsel %vm820, %v565, 0.0
  %v1655 = vadd.f32 %v1653, %v1654
  %1656 = vadd.xlane.f32.xlu0 %v1655
  %v1657 = vpop.xlane.xlu0 %1656
  %v1658 = vadd.f32 %v566, %v567
  %v1659 = vadd.f32 %v1658, %v568
  %v1660 = vsel %vm820, %v569, 0.0
  %v1661 = vadd.f32 %v1659, %v1660
  %1662 = vadd.xlane.f32.xlu0 %v1661
  %v1663 = vpop.xlane.xlu0 %1662
  %v1664 = vadd.f32 %v570, %v571
  %v1665 = vadd.f32 %v1664, %v572
  %v1666 = vsel %vm820, %v573, 0.0
  %v1667 = vadd.f32 %v1665, %v1666
  %1668 = vadd.xlane.f32.xlu0 %v1667
  %v1669 = vpop.xlane.xlu0 %1668
  %v1670 = vadd.f32 %v574, %v575
  %v1671 = vadd.f32 %v1670, %v576
  %v1672 = vsel %vm820, %v577, 0.0
  %v1673 = vadd.f32 %v1671, %v1672
  %1674 = vadd.xlane.f32.xlu0 %v1673
  %v1675 = vpop.xlane.xlu0 %1674
  %v1676 = vadd.f32 %v578, %v579
  %v1677 = vadd.f32 %v1676, %v580
  %v1678 = vsel %vm820, %v581, 0.0
  %v1679 = vadd.f32 %v1677, %v1678
  %1680 = vadd.xlane.f32.xlu0 %v1679
  %v1681 = vpop.xlane.xlu0 %1680
  %v1682 = vadd.f32 %v582, %v583
  %v1683 = vadd.f32 %v1682, %v584
  %v1684 = vsel %vm820, %v585, 0.0
  %v1685 = vadd.f32 %v1683, %v1684
  %1686 = vadd.xlane.f32.xlu0 %v1685
  %v1687 = vpop.xlane.xlu0 %1686
  %v1688 = vadd.f32 %v586, %v587
  %v1689 = vadd.f32 %v1688, %v588
  %v1690 = vsel %vm820, %v589, 0.0
  %v1691 = vadd.f32 %v1689, %v1690
  %1692 = vadd.xlane.f32.xlu0 %v1691
  %v1693 = vpop.xlane.xlu0 %1692
  %v1694 = vadd.f32 %v590, %v591
  %v1695 = vadd.f32 %v1694, %v592
  %v1696 = vsel %vm820, %v593, 0.0
  %v1697 = vadd.f32 %v1695, %v1696
  %1698 = vadd.xlane.f32.xlu0 %v1697
  %v1699 = vpop.xlane.xlu0 %1698
  %v1700 = vadd.f32 %v594, %v595
  %v1701 = vadd.f32 %v1700, %v596
  %v1702 = vsel %vm820, %v597, 0.0
  %v1703 = vadd.f32 %v1701, %v1702
  %1704 = vadd.xlane.f32.xlu0 %v1703
  %v1705 = vpop.xlane.xlu0 %1704
  %v1706 = vadd.f32 %v598, %v599
  %v1707 = vadd.f32 %v1706, %v600
  %v1708 = vsel %vm820, %v601, 0.0
  %v1709 = vadd.f32 %v1707, %v1708
  %1710 = vadd.xlane.f32.xlu0 %v1709
  %v1711 = vpop.xlane.xlu0 %1710
  %v1712 = vadd.f32 %v602, %v603
  %v1713 = vadd.f32 %v1712, %v604
  %v1714 = vsel %vm820, %v605, 0.0
  %v1715 = vadd.f32 %v1713, %v1714
  %1716 = vadd.xlane.f32.xlu0 %v1715
  %v1717 = vpop.xlane.xlu0 %1716
  %v1718 = vadd.f32 %v606, %v607
  %v1719 = vadd.f32 %v1718, %v608
  %v1720 = vsel %vm820, %v609, 0.0
  %v1721 = vadd.f32 %v1719, %v1720
  %1722 = vadd.xlane.f32.xlu0 %v1721
  %v1723 = vpop.xlane.xlu0 %1722
  %v1724 = vadd.f32 %v610, %v611
  %v1725 = vadd.f32 %v1724, %v612
  %v1726 = vsel %vm820, %v613, 0.0
  %v1727 = vadd.f32 %v1725, %v1726
  %1728 = vadd.xlane.f32.xlu0 %v1727
  %v1729 = vpop.xlane.xlu0 %1728
  %v1730 = vsel %vm963, %v614, 0.0
  %v1731 = vsel %vm963, %v615, 0.0
  %v1732 = vadd.f32 %v1730, %v1731
  %v1733 = vsel %vm963, %v616, 0.0
  %v1734 = vadd.f32 %v1732, %v1733
  %v1735 = vsel %vm969, %v617, 0.0
  %v1736 = vadd.f32 %v1734, %v1735
  %1737 = vadd.xlane.f32.xlu0 %v1736
  %v1738 = vpop.xlane.xlu0 %1737
  %v1739 = vadd.f32 %v618, %v619
  %v1740 = vadd.f32 %v1739, %v620
  %v1741 = vsel %vm820, %v621, 0.0
  %v1742 = vadd.f32 %v1740, %v1741
  %1743 = vadd.xlane.f32.xlu0 %v1742
  %v1744 = vpop.xlane.xlu0 %1743
  %v1745 = vadd.f32 %v622, %v623
  %v1746 = vadd.f32 %v1745, %v624
  %v1747 = vsel %vm820, %v625, 0.0
  %v1748 = vadd.f32 %v1746, %v1747
  %1749 = vadd.xlane.f32.xlu0 %v1748
  %v1750 = vpop.xlane.xlu0 %1749
  %v1751 = vadd.f32 %v626, %v627
  %v1752 = vadd.f32 %v1751, %v628
  %v1753 = vsel %vm820, %v629, 0.0
  %v1754 = vadd.f32 %v1752, %v1753
  %1755 = vadd.xlane.f32.xlu0 %v1754
  %v1756 = vpop.xlane.xlu0 %1755
  %v1757 = vadd.f32 %v630, %v631
  %v1758 = vadd.f32 %v1757, %v632
  %v1759 = vsel %vm820, %v633, 0.0
  %v1760 = vadd.f32 %v1758, %v1759
  %1761 = vadd.xlane.f32.xlu0 %v1760
  %v1762 = vpop.xlane.xlu0 %1761
  %v1763 = vadd.f32 %v634, %v635
  %v1764 = vadd.f32 %v1763, %v636
  %v1765 = vsel %vm820, %v637, 0.0
  %v1766 = vadd.f32 %v1764, %v1765
  %1767 = vadd.xlane.f32.xlu0 %v1766
  %v1768 = vpop.xlane.xlu0 %1767
  %v1769 = vadd.f32 %v638, %v639
  %v1770 = vadd.f32 %v1769, %v640
  %v1771 = vsel %vm820, %v641, 0.0
  %v1772 = vadd.f32 %v1770, %v1771
  %1773 = vadd.xlane.f32.xlu0 %v1772
  %v1774 = vpop.xlane.xlu0 %1773
  %v1775 = vadd.f32 %v642, %v643
  %v1776 = vadd.f32 %v1775, %v644
  %v1777 = vsel %vm820, %v645, 0.0
  %v1778 = vadd.f32 %v1776, %v1777
  %1779 = vadd.xlane.f32.xlu0 %v1778
  %v1780 = vpop.xlane.xlu0 %1779
  %v1781 = vadd.f32 %v646, %v647
  %v1782 = vadd.f32 %v1781, %v648
  %v1783 = vsel %vm820, %v649, 0.0
  %v1784 = vadd.f32 %v1782, %v1783
  %1785 = vadd.xlane.f32.xlu0 %v1784
  %v1786 = vpop.xlane.xlu0 %1785
  %v1787 = vadd.f32 %v650, %v651
  %v1788 = vadd.f32 %v1787, %v652
  %v1789 = vsel %vm820, %v653, 0.0
  %v1790 = vadd.f32 %v1788, %v1789
  %1791 = vadd.xlane.f32.xlu0 %v1790
  %v1792 = vpop.xlane.xlu0 %1791
  %v1793 = vadd.f32 %v654, %v655
  %v1794 = vadd.f32 %v1793, %v656
  %v1795 = vsel %vm820, %v657, 0.0
  %v1796 = vadd.f32 %v1794, %v1795
  %1797 = vadd.xlane.f32.xlu0 %v1796
  %v1798 = vpop.xlane.xlu0 %1797
  %v1799 = vadd.f32 %v658, %v659
  %v1800 = vadd.f32 %v1799, %v660
  %v1801 = vsel %vm820, %v661, 0.0
  %v1802 = vadd.f32 %v1800, %v1801
  %1803 = vadd.xlane.f32.xlu0 %v1802
  %v1804 = vpop.xlane.xlu0 %1803
  %v1805 = vadd.f32 %v662, %v663
  %v1806 = vadd.f32 %v1805, %v664
  %v1807 = vsel %vm820, %v665, 0.0
  %v1808 = vadd.f32 %v1806, %v1807
  %1809 = vadd.xlane.f32.xlu0 %v1808
  %v1810 = vpop.xlane.xlu0 %1809
  %v1811 = vadd.f32 %v666, %v667
  %v1812 = vadd.f32 %v1811, %v668
  %v1813 = vsel %vm820, %v669, 0.0
  %v1814 = vadd.f32 %v1812, %v1813
  %1815 = vadd.xlane.f32.xlu0 %v1814
  %v1816 = vpop.xlane.xlu0 %1815
  %v1817 = vadd.f32 %v670, %v671
  %v1818 = vadd.f32 %v1817, %v672
  %v1819 = vsel %vm820, %v673, 0.0
  %v1820 = vadd.f32 %v1818, %v1819
  %1821 = vadd.xlane.f32.xlu0 %v1820
  %v1822 = vpop.xlane.xlu0 %1821
  %v1823 = vadd.f32 %v674, %v675
  %v1824 = vadd.f32 %v1823, %v676
  %v1825 = vsel %vm820, %v677, 0.0
  %v1826 = vadd.f32 %v1824, %v1825
  %1827 = vadd.xlane.f32.xlu0 %v1826
  %v1828 = vpop.xlane.xlu0 %1827
  %v1829 = vadd.f32 %v678, %v679
  %v1830 = vadd.f32 %v1829, %v680
  %v1831 = vsel %vm820, %v681, 0.0
  %v1832 = vadd.f32 %v1830, %v1831
  %1833 = vadd.xlane.f32.xlu0 %v1832
  %v1834 = vpop.xlane.xlu0 %1833
  %v1835 = vadd.f32 %v682, %v683
  %v1836 = vadd.f32 %v1835, %v684
  %v1837 = vsel %vm820, %v685, 0.0
  %v1838 = vadd.f32 %v1836, %v1837
  %1839 = vadd.xlane.f32.xlu0 %v1838
  %v1840 = vpop.xlane.xlu0 %1839
  %v1841 = vadd.f32 %v686, %v687
  %v1842 = vadd.f32 %v1841, %v688
  %v1843 = vsel %vm820, %v689, 0.0
  %v1844 = vadd.f32 %v1842, %v1843
  %1845 = vadd.xlane.f32.xlu0 %v1844
  %v1846 = vpop.xlane.xlu0 %1845
  %v1847 = vadd.f32 %v690, %v691
  %v1848 = vadd.f32 %v1847, %v692
  %v1849 = vsel %vm820, %v693, 0.0
  %v1850 = vadd.f32 %v1848, %v1849
  %1851 = vadd.xlane.f32.xlu0 %v1850
  %v1852 = vpop.xlane.xlu0 %1851
  %v1853 = vadd.f32 %v694, %v695
  %v1854 = vadd.f32 %v1853, %v696
  %v1855 = vsel %vm820, %v697, 0.0
  %v1856 = vadd.f32 %v1854, %v1855
  %1857 = vadd.xlane.f32.xlu0 %v1856
  %v1858 = vpop.xlane.xlu0 %1857
  %v1859 = vadd.f32 %v698, %v699
  %v1860 = vadd.f32 %v1859, %v700
  %v1861 = vsel %vm820, %v701, 0.0
  %v1862 = vadd.f32 %v1860, %v1861
  %1863 = vadd.xlane.f32.xlu0 %v1862
  %v1864 = vpop.xlane.xlu0 %1863
  %v1865 = vadd.f32 %v702, %v703
  %v1866 = vadd.f32 %v1865, %v704
  %v1867 = vsel %vm820, %v705, 0.0
  %v1868 = vadd.f32 %v1866, %v1867
  %1869 = vadd.xlane.f32.xlu0 %v1868
  %v1870 = vpop.xlane.xlu0 %1869
  %v1871 = vadd.f32 %v706, %v707
  %v1872 = vadd.f32 %v1871, %v708
  %v1873 = vsel %vm820, %v709, 0.0
  %v1874 = vadd.f32 %v1872, %v1873
  %1875 = vadd.xlane.f32.xlu0 %v1874
  %v1876 = vpop.xlane.xlu0 %1875
  %v1877 = vadd.f32 %v710, %v711
  %v1878 = vadd.f32 %v1877, %v712
  %v1879 = vsel %vm820, %v713, 0.0
  %v1880 = vadd.f32 %v1878, %v1879
  %1881 = vadd.xlane.f32.xlu0 %v1880
  %v1882 = vpop.xlane.xlu0 %1881
  %v1883 = vsel %vm963, %v714, 0.0
  %v1884 = vsel %vm963, %v715, 0.0
  %v1885 = vadd.f32 %v1883, %v1884
  %v1886 = vsel %vm963, %v716, 0.0
  %v1887 = vadd.f32 %v1885, %v1886
  %v1888 = vsel %vm969, %v717, 0.0
  %v1889 = vadd.f32 %v1887, %v1888
  %1890 = vadd.xlane.f32.xlu0 %v1889
  %v1891 = vpop.xlane.xlu0 %1890
  %v1892 = vadd.f32 %v718, %v719
  %v1893 = vadd.f32 %v1892, %v720
  %v1894 = vsel %vm820, %v721, 0.0
  %v1895 = vadd.f32 %v1893, %v1894
  %1896 = vadd.xlane.f32.xlu0 %v1895
  %v1897 = vpop.xlane.xlu0 %1896
  %v1898 = vadd.f32 %v722, %v723
  %v1899 = vadd.f32 %v1898, %v724
  %v1900 = vsel %vm820, %v725, 0.0
  %v1901 = vadd.f32 %v1899, %v1900
  %1902 = vadd.xlane.f32.xlu0 %v1901
  %v1903 = vpop.xlane.xlu0 %1902
  %v1904 = vadd.f32 %v726, %v727
  %v1905 = vadd.f32 %v1904, %v728
  %v1906 = vsel %vm820, %v729, 0.0
  %v1907 = vadd.f32 %v1905, %v1906
  %1908 = vadd.xlane.f32.xlu0 %v1907
  %v1909 = vpop.xlane.xlu0 %1908
  %v1910 = vadd.f32 %v730, %v731
  %v1911 = vadd.f32 %v1910, %v732
  %v1912 = vsel %vm820, %v733, 0.0
  %v1913 = vadd.f32 %v1911, %v1912
  %1914 = vadd.xlane.f32.xlu0 %v1913
  %v1915 = vpop.xlane.xlu0 %1914
  %v1916 = vadd.f32 %v734, %v735
  %v1917 = vadd.f32 %v1916, %v736
  %v1918 = vsel %vm820, %v737, 0.0
  %v1919 = vadd.f32 %v1917, %v1918
  %1920 = vadd.xlane.f32.xlu0 %v1919
  %v1921 = vpop.xlane.xlu0 %1920
  %v1922 = vadd.f32 %v738, %v739
  %v1923 = vadd.f32 %v1922, %v740
  %v1924 = vsel %vm820, %v741, 0.0
  %v1925 = vadd.f32 %v1923, %v1924
  %1926 = vadd.xlane.f32.xlu0 %v1925
  %v1927 = vpop.xlane.xlu0 %1926
  %v1928 = vadd.f32 %v742, %v743
  %v1929 = vadd.f32 %v1928, %v744
  %v1930 = vsel %vm820, %v745, 0.0
  %v1931 = vadd.f32 %v1929, %v1930
  %1932 = vadd.xlane.f32.xlu0 %v1931
  %v1933 = vpop.xlane.xlu0 %1932
  %v1934 = vadd.f32 %v746, %v747
  %v1935 = vadd.f32 %v1934, %v748
  %v1936 = vsel %vm820, %v749, 0.0
  %v1937 = vadd.f32 %v1935, %v1936
  %1938 = vadd.xlane.f32.xlu0 %v1937
  %v1939 = vpop.xlane.xlu0 %1938
  %v1940 = vadd.f32 %v750, %v751
  %v1941 = vadd.f32 %v1940, %v752
  %v1942 = vsel %vm820, %v753, 0.0
  %v1943 = vadd.f32 %v1941, %v1942
  %1944 = vadd.xlane.f32.xlu0 %v1943
  %v1945 = vpop.xlane.xlu0 %1944
  %v1946 = vadd.f32 %v754, %v755
  %v1947 = vadd.f32 %v1946, %v756
  %v1948 = vsel %vm820, %v757, 0.0
  %v1949 = vadd.f32 %v1947, %v1948
  %1950 = vadd.xlane.f32.xlu0 %v1949
  %v1951 = vpop.xlane.xlu0 %1950
  %v1952 = vadd.f32 %v758, %v759
  %v1953 = vadd.f32 %v1952, %v760
  %v1954 = vsel %vm820, %v761, 0.0
  %v1955 = vadd.f32 %v1953, %v1954
  %1956 = vadd.xlane.f32.xlu0 %v1955
  %v1957 = vpop.xlane.xlu0 %1956
  %v1958 = vadd.f32 %v762, %v763
  %v1959 = vadd.f32 %v1958, %v764
  %v1960 = vsel %vm820, %v765, 0.0
  %v1961 = vadd.f32 %v1959, %v1960
  %1962 = vadd.xlane.f32.xlu0 %v1961
  %v1963 = vpop.xlane.xlu0 %1962
  %v1964 = vadd.f32 %v766, %v767
  %v1965 = vadd.f32 %v1964, %v768
  %v1966 = vsel %vm820, %v769, 0.0
  %v1967 = vadd.f32 %v1965, %v1966
  %1968 = vadd.xlane.f32.xlu0 %v1967
  %v1969 = vpop.xlane.xlu0 %1968
  %v1970 = vadd.f32 %v770, %v771
  %v1971 = vadd.f32 %v1970, %v772
  %v1972 = vsel %vm820, %v773, 0.0
  %v1973 = vadd.f32 %v1971, %v1972
  %1974 = vadd.xlane.f32.xlu0 %v1973
  %v1975 = vpop.xlane.xlu0 %1974
  %v1976 = vadd.f32 %v774, %v775
  %v1977 = vadd.f32 %v1976, %v776
  %v1978 = vsel %vm820, %v777, 0.0
  %v1979 = vadd.f32 %v1977, %v1978
  %1980 = vadd.xlane.f32.xlu0 %v1979
  %v1981 = vpop.xlane.xlu0 %1980
  %v1982 = vadd.f32 %v778, %v779
  %v1983 = vadd.f32 %v1982, %v780
  %v1984 = vsel %vm820, %v781, 0.0
  %v1985 = vadd.f32 %v1983, %v1984
  %1986 = vadd.xlane.f32.xlu0 %v1985
  %v1987 = vpop.xlane.xlu0 %1986
  %v1988 = vadd.f32 %v782, %v783
  %v1989 = vadd.f32 %v1988, %v784
  %v1990 = vsel %vm820, %v785, 0.0
  %v1991 = vadd.f32 %v1989, %v1990
  %1992 = vadd.xlane.f32.xlu0 %v1991
  %v1993 = vpop.xlane.xlu0 %1992
  %v1994 = vadd.f32 %v786, %v787
  %v1995 = vadd.f32 %v1994, %v788
  %v1996 = vsel %vm820, %v789, 0.0
  %v1997 = vadd.f32 %v1995, %v1996
  %1998 = vadd.xlane.f32.xlu0 %v1997
  %v1999 = vpop.xlane.xlu0 %1998
  %v2000 = vadd.f32 %v790, %v791
  %v2001 = vadd.f32 %v2000, %v792
  %v2002 = vsel %vm820, %v793, 0.0
  %v2003 = vadd.f32 %v2001, %v2002
  %2004 = vadd.xlane.f32.xlu0 %v2003
  %v2005 = vpop.xlane.xlu0 %2004
  %v2006 = vadd.f32 %v794, %v795
  %v2007 = vadd.f32 %v2006, %v796
  %v2008 = vsel %vm820, %v797, 0.0
  %v2009 = vadd.f32 %v2007, %v2008
  %2010 = vadd.xlane.f32.xlu0 %v2009
  %v2011 = vpop.xlane.xlu0 %2010
  %v2012 = vadd.f32 %v798, %v799
  %v2013 = vadd.f32 %v2012, %v800
  %v2014 = vsel %vm820, %v801, 0.0
  %v2015 = vadd.f32 %v2013, %v2014
  %2016 = vadd.xlane.f32.xlu0 %v2015
  %v2017 = vpop.xlane.xlu0 %2016
  %v2018 = vadd.f32 %v802, %v803
  %v2019 = vadd.f32 %v2018, %v804
  %v2020 = vsel %vm820, %v805, 0.0
  %v2021 = vadd.f32 %v2019, %v2020
  %2022 = vadd.xlane.f32.xlu0 %v2021
  %v2023 = vpop.xlane.xlu0 %2022
  %v2024 = vadd.f32 %v806, %v807
  %v2025 = vadd.f32 %v2024, %v808
  %v2026 = vsel %vm820, %v809, 0.0
  %v2027 = vadd.f32 %v2025, %v2026
  %2028 = vadd.xlane.f32.xlu0 %v2027
  %v2029 = vpop.xlane.xlu0 %2028
  %v2030 = vadd.f32 %v810, %v811
  %v2031 = vadd.f32 %v2030, %v812
  %v2032 = vsel %vm820, %v813, 0.0
  %v2033 = vadd.f32 %v2031, %v2032
  %2034 = vadd.xlane.f32.xlu0 %v2033
  %v2035 = vpop.xlane.xlu0 %2034
  %v2036 = vsel %vm963, %v814, 0.0
  %v2037 = vsel %vm963, %v815, 0.0
  %v2038 = vadd.f32 %v2036, %v2037
  %v2039 = vsel %vm963, %v816, 0.0
  %v2040 = vadd.f32 %v2038, %v2039
  %v2041 = vsel %vm969, %v817, 0.0
  %v2042 = vadd.f32 %v2040, %v2041
  %2043 = vadd.xlane.f32.xlu0 %v2042
  %v2044 = vpop.xlane.xlu0 %2043
  %v2045 = vld [vmem:[#allocation2] sm:$0xff]
  %v2046 = vld [vmem:[#allocation2 + $0x8] sm:$0xff]
  %v2247 = vlaneseq
  %v2248 = vand.u32 %v2247, 127
  %v2249 = vlaneseq
  %v2250 = vshrl.u32 %v2249, 7
  %v2251 = vsub.s32 %v2248, %v2250
  %v2252 = vrot.slane %v824, %v2251
  %v2253 = vadd.s32 %v2248, 4294967288
  %v2254 = vlaneseq
  %v2255 = vshrl.u32 %v2254, 7
  %v2256 = vsub.s32 %v2253, %v2255
  %v2257 = vrot.slane %v830, %v2256
  %vm2258 = vcmask 130112
  %v2259 = vsel %vm2258, %v2257, %v2252
  %v2260 = vadd.s32 %v2248, 4294967280
  %v2261 = vlaneseq
  %v2262 = vshrl.u32 %v2261, 7
  %v2263 = vsub.s32 %v2260, %v2262
  %v2264 = vrot.slane %v836, %v2263
  %vm2265 = vcmask 195712
  %v2266 = vsel %vm2265, %v2264, %v2259
  %v2267 = vadd.s32 %v2248, 4294967272
  %v2268 = vlaneseq
  %v2269 = vshrl.u32 %v2268, 7
  %v2270 = vsub.s32 %v2267, %v2269
  %v2271 = vrot.slane %v842, %v2270
  %vm2272 = vcmask 261312
  %v2273 = vsel %vm2272, %v2271, %v2266
  %v2274 = vadd.s32 %v2248, 4294967264
  %v2275 = vlaneseq
  %v2276 = vshrl.u32 %v2275, 7
  %v2277 = vsub.s32 %v2274, %v2276
  %v2278 = vrot.slane %v848, %v2277
  %vm2279 = vcmask 326912
  %v2280 = vsel %vm2279, %v2278, %v2273
  %v2281 = vadd.s32 %v2248, 4294967256
  %v2282 = vlaneseq
  %v2283 = vshrl.u32 %v2282, 7
  %v2284 = vsub.s32 %v2281, %v2283
  %v2285 = vrot.slane %v854, %v2284
  %vm2286 = vcmask 392512
  %v2287 = vsel %vm2286, %v2285, %v2280
  %v2288 = vadd.s32 %v2248, 4294967248
  %v2289 = vlaneseq
  %v2290 = vshrl.u32 %v2289, 7
  %v2291 = vsub.s32 %v2288, %v2290
  %v2292 = vrot.slane %v860, %v2291
  %vm2293 = vcmask 458112
  %v2294 = vsel %vm2293, %v2292, %v2287
  %v2295 = vadd.s32 %v2248, 4294967240
  %v2296 = vlaneseq
  %v2297 = vshrl.u32 %v2296, 7
  %v2298 = vsub.s32 %v2295, %v2297
  %v2299 = vrot.slane %v866, %v2298
  %vm2300 = vcmask 523712
  %v2301 = vsel %vm2300, %v2299, %v2294
  %v2302 = vadd.s32 %v2248, 4294967232
  %v2303 = vlaneseq
  %v2304 = vshrl.u32 %v2303, 7
  %v2305 = vsub.s32 %v2302, %v2304
  %v2306 = vrot.slane %v872, %v2305
  %vm2307 = vcmask 589312
  %v2308 = vsel %vm2307, %v2306, %v2301
  %v2309 = vadd.s32 %v2248, 4294967224
  %v2310 = vlaneseq
  %v2311 = vshrl.u32 %v2310, 7
  %v2312 = vsub.s32 %v2309, %v2311
  %v2313 = vrot.slane %v878, %v2312
  %vm2314 = vcmask 654912
  %v2315 = vsel %vm2314, %v2313, %v2308
  %v2316 = vadd.s32 %v2248, 4294967216
  %v2317 = vlaneseq
  %v2318 = vshrl.u32 %v2317, 7
  %v2319 = vsub.s32 %v2316, %v2318
  %v2320 = vrot.slane %v884, %v2319
  %vm2321 = vcmask 720512
  %v2322 = vsel %vm2321, %v2320, %v2315
  %v2323 = vadd.s32 %v2248, 4294967208
  %v2324 = vlaneseq
  %v2325 = vshrl.u32 %v2324, 7
  %v2326 = vsub.s32 %v2323, %v2325
  %v2327 = vrot.slane %v890, %v2326
  %vm2328 = vcmask 786112
  %v2329 = vsel %vm2328, %v2327, %v2322
  %v2330 = vadd.s32 %v2248, 4294967200
  %v2331 = vlaneseq
  %v2332 = vshrl.u32 %v2331, 7
  %v2333 = vsub.s32 %v2330, %v2332
  %v2334 = vrot.slane %v896, %v2333
  %vm2335 = vcmask 851712
  %v2336 = vsel %vm2335, %v2334, %v2329
  %v2337 = vadd.s32 %v2248, 4294967192
  %v2338 = vlaneseq
  %v2339 = vshrl.u32 %v2338, 7
  %v2340 = vsub.s32 %v2337, %v2339
  %v2341 = vrot.slane %v902, %v2340
  %vm2342 = vcmask 917312
  %v2343 = vsel %vm2342, %v2341, %v2336
  %v2344 = vadd.s32 %v2248, 4294967184
  %v2345 = vlaneseq
  %v2346 = vshrl.u32 %v2345, 7
  %v2347 = vsub.s32 %v2344, %v2346
  %v2348 = vrot.slane %v908, %v2347
  %vm2349 = vcmask 982912
  %v2350 = vsel %vm2349, %v2348, %v2343
  %v2351 = vadd.s32 %v2248, 4294967176
  %v2352 = vlaneseq
  %v2353 = vshrl.u32 %v2352, 7
  %v2354 = vsub.s32 %v2351, %v2353
  %v2355 = vrot.slane %v914, %v2354
  %vm2356 = vcmask 1048512
  %v2357 = vsel %vm2356, %v2355, %v2350
  %v2358 = vlaneseq
  %v2359 = vshrl.u32 %v2358, 7
  %v2360 = vsub.s32 %v2248, %v2359
  %v2361 = vrot.slane %v920, %v2360
  %v2362 = vlaneseq
  %v2363 = vshrl.u32 %v2362, 7
  %v2364 = vsub.s32 %v2253, %v2363
  %v2365 = vrot.slane %v926, %v2364
  %v2366 = vsel %vm2258, %v2365, %v2361
  %v2367 = vlaneseq
  %v2368 = vshrl.u32 %v2367, 7
  %v2369 = vsub.s32 %v2260, %v2368
  %v2370 = vrot.slane %v932, %v2369
  %v2371 = vsel %vm2265, %v2370, %v2366
  %v2372 = vlaneseq
  %v2373 = vshrl.u32 %v2372, 7
  %v2374 = vsub.s32 %v2267, %v2373
  %v2375 = vrot.slane %v938, %v2374
  %v2376 = vsel %vm2272, %v2375, %v2371
  %v2377 = vlaneseq
  %v2378 = vshrl.u32 %v2377, 7
  %v2379 = vsub.s32 %v2274, %v2378
  %v2380 = vrot.slane %v944, %v2379
  %v2381 = vsel %vm2279, %v2380, %v2376
  %v2382 = vlaneseq
  %v2383 = vshrl.u32 %v2382, 7
  %v2384 = vsub.s32 %v2281, %v2383
  %v2385 = vrot.slane %v950, %v2384
  %v2386 = vsel %vm2286, %v2385, %v2381
  %v2387 = vlaneseq
  %v2388 = vshrl.u32 %v2387, 7
  %v2389 = vsub.s32 %v2288, %v2388
  %v2390 = vrot.slane %v956, %v2389
  %v2391 = vsel %vm2293, %v2390, %v2386
  %v2392 = vlaneseq
  %v2393 = vshrl.u32 %v2392, 7
  %v2394 = vsub.s32 %v2295, %v2393
  %v2395 = vrot.slane %v962, %v2394
  %v2396 = vsel %vm2300, %v2395, %v2391
  %v2397 = vlaneseq
  %v2398 = vshrl.u32 %v2397, 7
  %v2399 = vsub.s32 %v2302, %v2398
  %v2400 = vrot.slane %v973, %v2399
  %v2401 = vsel %vm2307, %v2400, %v2396
  %v2402 = vlaneseq
  %v2403 = vshrl.u32 %v2402, 7
  %v2404 = vsub.s32 %v2248, %v2403
  %v2405 = vrot.slane %v979, %v2404
  %v2406 = vlaneseq
  %v2407 = vshrl.u32 %v2406, 7
  %v2408 = vsub.s32 %v2253, %v2407
  %v2409 = vrot.slane %v985, %v2408
  %v2410 = vsel %vm2258, %v2409, %v2405
  %v2411 = vlaneseq
  %v2412 = vshrl.u32 %v2411, 7
  %v2413 = vsub.s32 %v2260, %v2412
  %v2414 = vrot.slane %v991, %v2413
  %v2415 = vsel %vm2265, %v2414, %v2410
  %v2416 = vlaneseq
  %v2417 = vshrl.u32 %v2416, 7
  %v2418 = vsub.s32 %v2267, %v2417
  %v2419 = vrot.slane %v997, %v2418
  %v2420 = vsel %vm2272, %v2419, %v2415
  %v2421 = vlaneseq
  %v2422 = vshrl.u32 %v2421, 7
  %v2423 = vsub.s32 %v2274, %v2422
  %v2424 = vrot.slane %v1003, %v2423
  %v2425 = vsel %vm2279, %v2424, %v2420
  %v2426 = vlaneseq
  %v2427 = vshrl.u32 %v2426, 7
  %v2428 = vsub.s32 %v2281, %v2427
  %v2429 = vrot.slane %v1009, %v2428
  %v2430 = vsel %vm2286, %v2429, %v2425
  %v2431 = vlaneseq
  %v2432 = vshrl.u32 %v2431, 7
  %v2433 = vsub.s32 %v2288, %v2432
  %v2434 = vrot.slane %v1015, %v2433
  %v2435 = vsel %vm2293, %v2434, %v2430
  %v2436 = vlaneseq
  %v2437 = vshrl.u32 %v2436, 7
  %v2438 = vsub.s32 %v2295, %v2437
  %v2439 = vrot.slane %v1021, %v2438
  %v2440 = vsel %vm2300, %v2439, %v2435
  %v2441 = vlaneseq
  %v2442 = vshrl.u32 %v2441, 7
  %v2443 = vsub.s32 %v2302, %v2442
  %v2444 = vrot.slane %v1027, %v2443
  %v2445 = vsel %vm2307, %v2444, %v2440
  %v2446 = vlaneseq
  %v2447 = vshrl.u32 %v2446, 7
  %v2448 = vsub.s32 %v2309, %v2447
  %v2449 = vrot.slane %v1033, %v2448
  %v2450 = vsel %vm2314, %v2449, %v2445
  %v2451 = vlaneseq
  %v2452 = vshrl.u32 %v2451, 7
  %v2453 = vsub.s32 %v2316, %v2452
  %v2454 = vrot.slane %v1039, %v2453
  %v2455 = vsel %vm2321, %v2454, %v2450
  %v2456 = vlaneseq
  %v2457 = vshrl.u32 %v2456, 7
  %v2458 = vsub.s32 %v2323, %v2457
  %v2459 = vrot.slane %v1045, %v2458
  %v2460 = vsel %vm2328, %v2459, %v2455
  %v2461 = vlaneseq
  %v2462 = vshrl.u32 %v2461, 7
  %v2463 = vsub.s32 %v2330, %v2462
  %v2464 = vrot.slane %v1051, %v2463
  %v2465 = vsel %vm2335, %v2464, %v2460
  %v2466 = vlaneseq
  %v2467 = vshrl.u32 %v2466, 7
  %v2468 = vsub.s32 %v2337, %v2467
  %v2469 = vrot.slane %v1057, %v2468
  %v2470 = vsel %vm2342, %v2469, %v2465
  %v2471 = vlaneseq
  %v2472 = vshrl.u32 %v2471, 7
  %v2473 = vsub.s32 %v2344, %v2472
  %v2474 = vrot.slane %v1063, %v2473
  %v2475 = vsel %vm2349, %v2474, %v2470
  %v2476 = vlaneseq
  %v2477 = vshrl.u32 %v2476, 7
  %v2478 = vsub.s32 %v2351, %v2477
  %v2479 = vrot.slane %v1069, %v2478
  %v2480 = vsel %vm2356, %v2479, %v2475
  %v2481 = vlaneseq
  %v2482 = vshrl.u32 %v2481, 7
  %v2483 = vsub.s32 %v2248, %v2482
  %v2484 = vrot.slane %v1075, %v2483
  %v2485 = vlaneseq
  %v2486 = vshrl.u32 %v2485, 7
  %v2487 = vsub.s32 %v2253, %v2486
  %v2488 = vrot.slane %v1081, %v2487
  %v2489 = vsel %vm2258, %v2488, %v2484
  %v2490 = vlaneseq
  %v2491 = vshrl.u32 %v2490, 7
  %v2492 = vsub.s32 %v2260, %v2491
  %v2493 = vrot.slane %v1087, %v2492
  %v2494 = vsel %vm2265, %v2493, %v2489
  %v2495 = vlaneseq
  %v2496 = vshrl.u32 %v2495, 7
  %v2497 = vsub.s32 %v2267, %v2496
  %v2498 = vrot.slane %v1093, %v2497
  %v2499 = vsel %vm2272, %v2498, %v2494
  %v2500 = vlaneseq
  %v2501 = vshrl.u32 %v2500, 7
  %v2502 = vsub.s32 %v2274, %v2501
  %v2503 = vrot.slane %v1099, %v2502
  %v2504 = vsel %vm2279, %v2503, %v2499
  %v2505 = vlaneseq
  %v2506 = vshrl.u32 %v2505, 7
  %v2507 = vsub.s32 %v2281, %v2506
  %v2508 = vrot.slane %v1105, %v2507
  %v2509 = vsel %vm2286, %v2508, %v2504
  %v2510 = vlaneseq
  %v2511 = vshrl.u32 %v2510, 7
  %v2512 = vsub.s32 %v2288, %v2511
  %v2513 = vrot.slane %v1111, %v2512
  %v2514 = vsel %vm2293, %v2513, %v2509
  %v2515 = vlaneseq
  %v2516 = vshrl.u32 %v2515, 7
  %v2517 = vsub.s32 %v2295, %v2516
  %v2518 = vrot.slane %v1117, %v2517
  %v2519 = vsel %vm2300, %v2518, %v2514
  %v2520 = vlaneseq
  %v2521 = vshrl.u32 %v2520, 7
  %v2522 = vsub.s32 %v2302, %v2521
  %v2523 = vrot.slane %v1126, %v2522
  %v2524 = vsel %vm2307, %v2523, %v2519
  %v2525 = vlaneseq
  %v2526 = vshrl.u32 %v2525, 7
  %v2527 = vsub.s32 %v2248, %v2526
  %v2528 = vrot.slane %v1132, %v2527
  %v2529 = vlaneseq
  %v2530 = vshrl.u32 %v2529, 7
  %v2531 = vsub.s32 %v2253, %v2530
  %v2532 = vrot.slane %v1138, %v2531
  %v2533 = vsel %vm2258, %v2532, %v2528
  %v2534 = vlaneseq
  %v2535 = vshrl.u32 %v2534, 7
  %v2536 = vsub.s32 %v2260, %v2535
  %v2537 = vrot.slane %v1144, %v2536
  %v2538 = vsel %vm2265, %v2537, %v2533
  %v2539 = vlaneseq
  %v2540 = vshrl.u32 %v2539, 7
  %v2541 = vsub.s32 %v2267, %v2540
  %v2542 = vrot.slane %v1150, %v2541
  %v2543 = vsel %vm2272, %v2542, %v2538
  %v2544 = vlaneseq
  %v2545 = vshrl.u32 %v2544, 7
  %v2546 = vsub.s32 %v2274, %v2545
  %v2547 = vrot.slane %v1156, %v2546
  %v2548 = vsel %vm2279, %v2547, %v2543
  %v2549 = vlaneseq
  %v2550 = vshrl.u32 %v2549, 7
  %v2551 = vsub.s32 %v2281, %v2550
  %v2552 = vrot.slane %v1162, %v2551
  %v2553 = vsel %vm2286, %v2552, %v2548
  %v2554 = vlaneseq
  %v2555 = vshrl.u32 %v2554, 7
  %v2556 = vsub.s32 %v2288, %v2555
  %v2557 = vrot.slane %v1168, %v2556
  %v2558 = vsel %vm2293, %v2557, %v2553
  %v2559 = vlaneseq
  %v2560 = vshrl.u32 %v2559, 7
  %v2561 = vsub.s32 %v2295, %v2560
  %v2562 = vrot.slane %v1174, %v2561
  %v2563 = vsel %vm2300, %v2562, %v2558
  %v2564 = vlaneseq
  %v2565 = vshrl.u32 %v2564, 7
  %v2566 = vsub.s32 %v2302, %v2565
  %v2567 = vrot.slane %v1180, %v2566
  %v2568 = vsel %vm2307, %v2567, %v2563
  %v2569 = vlaneseq
  %v2570 = vshrl.u32 %v2569, 7
  %v2571 = vsub.s32 %v2309, %v2570
  %v2572 = vrot.slane %v1186, %v2571
  %v2573 = vsel %vm2314, %v2572, %v2568
  %v2574 = vlaneseq
  %v2575 = vshrl.u32 %v2574, 7
  %v2576 = vsub.s32 %v2316, %v2575
  %v2577 = vrot.slane %v1192, %v2576
  %v2578 = vsel %vm2321, %v2577, %v2573
  %v2579 = vlaneseq
  %v2580 = vshrl.u32 %v2579, 7
  %v2581 = vsub.s32 %v2323, %v2580
  %v2582 = vrot.slane %v1198, %v2581
  %v2583 = vsel %vm2328, %v2582, %v2578
  %v2584 = vlaneseq
  %v2585 = vshrl.u32 %v2584, 7
  %v2586 = vsub.s32 %v2330, %v2585
  %v2587 = vrot.slane %v1204, %v2586
  %v2588 = vsel %vm2335, %v2587, %v2583
  %v2589 = vlaneseq
  %v2590 = vshrl.u32 %v2589, 7
  %v2591 = vsub.s32 %v2337, %v2590
  %v2592 = vrot.slane %v1210, %v2591
  %v2593 = vsel %vm2342, %v2592, %v2588
  %v2594 = vlaneseq
  %v2595 = vshrl.u32 %v2594, 7
  %v2596 = vsub.s32 %v2344, %v2595
  %v2597 = vrot.slane %v1216, %v2596
  %v2598 = vsel %vm2349, %v2597, %v2593
  %v2599 = vlaneseq
  %v2600 = vshrl.u32 %v2599, 7
  %v2601 = vsub.s32 %v2351, %v2600
  %v2602 = vrot.slane %v1222, %v2601
  %v2603 = vsel %vm2356, %v2602, %v2598
  %v2604 = vlaneseq
  %v2605 = vshrl.u32 %v2604, 7
  %v2606 = vsub.s32 %v2248, %v2605
  %v2607 = vrot.slane %v1228, %v2606
  %v2608 = vlaneseq
  %v2609 = vshrl.u32 %v2608, 7
  %v2610 = vsub.s32 %v2253, %v2609
  %v2611 = vrot.slane %v1234, %v2610
  %v2612 = vsel %vm2258, %v2611, %v2607
  %v2613 = vlaneseq
  %v2614 = vshrl.u32 %v2613, 7
  %v2615 = vsub.s32 %v2260, %v2614
  %v2616 = vrot.slane %v1240, %v2615
  %v2617 = vsel %vm2265, %v2616, %v2612
  %v2618 = vlaneseq
  %v2619 = vshrl.u32 %v2618, 7
  %v2620 = vsub.s32 %v2267, %v2619
  %v2621 = vrot.slane %v1246, %v2620
  %v2622 = vsel %vm2272, %v2621, %v2617
  %v2623 = vlaneseq
  %v2624 = vshrl.u32 %v2623, 7
  %v2625 = vsub.s32 %v2274, %v2624
  %v2626 = vrot.slane %v1252, %v2625
  %v2627 = vsel %vm2279, %v2626, %v2622
  %v2628 = vlaneseq
  %v2629 = vshrl.u32 %v2628, 7
  %v2630 = vsub.s32 %v2281, %v2629
  %v2631 = vrot.slane %v1258, %v2630
  %v2632 = vsel %vm2286, %v2631, %v2627
  %v2633 = vlaneseq
  %v2634 = vshrl.u32 %v2633, 7
  %v2635 = vsub.s32 %v2288, %v2634
  %v2636 = vrot.slane %v1264, %v2635
  %v2637 = vsel %vm2293, %v2636, %v2632
  %v2638 = vlaneseq
  %v2639 = vshrl.u32 %v2638, 7
  %v2640 = vsub.s32 %v2295, %v2639
  %v2641 = vrot.slane %v1270, %v2640
  %v2642 = vsel %vm2300, %v2641, %v2637
  %v2643 = vlaneseq
  %v2644 = vshrl.u32 %v2643, 7
  %v2645 = vsub.s32 %v2302, %v2644
  %v2646 = vrot.slane %v1279, %v2645
  %v2647 = vsel %vm2307, %v2646, %v2642
  %v2648 = vlaneseq
  %v2649 = vshrl.u32 %v2648, 7
  %v2650 = vsub.s32 %v2248, %v2649
  %v2651 = vrot.slane %v1285, %v2650
  %v2652 = vlaneseq
  %v2653 = vshrl.u32 %v2652, 7
  %v2654 = vsub.s32 %v2253, %v2653
  %v2655 = vrot.slane %v1291, %v2654
  %v2656 = vsel %vm2258, %v2655, %v2651
  %v2657 = vlaneseq
  %v2658 = vshrl.u32 %v2657, 7
  %v2659 = vsub.s32 %v2260, %v2658
  %v2660 = vrot.slane %v1297, %v2659
  %v2661 = vsel %vm2265, %v2660, %v2656
  %v2662 = vlaneseq
  %v2663 = vshrl.u32 %v2662, 7
  %v2664 = vsub.s32 %v2267, %v2663
  %v2665 = vrot.slane %v1303, %v2664
  %v2666 = vsel %vm2272, %v2665, %v2661
  %v2667 = vlaneseq
  %v2668 = vshrl.u32 %v2667, 7
  %v2669 = vsub.s32 %v2274, %v2668
  %v2670 = vrot.slane %v1309, %v2669
  %v2671 = vsel %vm2279, %v2670, %v2666
  %v2672 = vlaneseq
  %v2673 = vshrl.u32 %v2672, 7
  %v2674 = vsub.s32 %v2281, %v2673
  %v2675 = vrot.slane %v1315, %v2674
  %v2676 = vsel %vm2286, %v2675, %v2671
  %v2677 = vlaneseq
  %v2678 = vshrl.u32 %v2677, 7
  %v2679 = vsub.s32 %v2288, %v2678
  %v2680 = vrot.slane %v1321, %v2679
  %v2681 = vsel %vm2293, %v2680, %v2676
  %v2682 = vlaneseq
  %v2683 = vshrl.u32 %v2682, 7
  %v2684 = vsub.s32 %v2295, %v2683
  %v2685 = vrot.slane %v1327, %v2684
  %v2686 = vsel %vm2300, %v2685, %v2681
  %v2687 = vlaneseq
  %v2688 = vshrl.u32 %v2687, 7
  %v2689 = vsub.s32 %v2302, %v2688
  %v2690 = vrot.slane %v1333, %v2689
  %v2691 = vsel %vm2307, %v2690, %v2686
  %v2692 = vlaneseq
  %v2693 = vshrl.u32 %v2692, 7
  %v2694 = vsub.s32 %v2309, %v2693
  %v2695 = vrot.slane %v1339, %v2694
  %v2696 = vsel %vm2314, %v2695, %v2691
  %v2697 = vlaneseq
  %v2698 = vshrl.u32 %v2697, 7
  %v2699 = vsub.s32 %v2316, %v2698
  %v2700 = vrot.slane %v1345, %v2699
  %v2701 = vsel %vm2321, %v2700, %v2696
  %v2702 = vlaneseq
  %v2703 = vshrl.u32 %v2702, 7
  %v2704 = vsub.s32 %v2323, %v2703
  %v2705 = vrot.slane %v1351, %v2704
  %v2706 = vsel %vm2328, %v2705, %v2701
  %v2707 = vlaneseq
  %v2708 = vshrl.u32 %v2707, 7
  %v2709 = vsub.s32 %v2330, %v2708
  %v2710 = vrot.slane %v1357, %v2709
  %v2711 = vsel %vm2335, %v2710, %v2706
  %v2712 = vlaneseq
  %v2713 = vshrl.u32 %v2712, 7
  %v2714 = vsub.s32 %v2337, %v2713
  %v2715 = vrot.slane %v1363, %v2714
  %v2716 = vsel %vm2342, %v2715, %v2711
  %v2717 = vlaneseq
  %v2718 = vshrl.u32 %v2717, 7
  %v2719 = vsub.s32 %v2344, %v2718
  %v2720 = vrot.slane %v1369, %v2719
  %v2721 = vsel %vm2349, %v2720, %v2716
  %v2722 = vlaneseq
  %v2723 = vshrl.u32 %v2722, 7
  %v2724 = vsub.s32 %v2351, %v2723
  %v2725 = vrot.slane %v1375, %v2724
  %v2726 = vsel %vm2356, %v2725, %v2721
  %v2727 = vlaneseq
  %v2728 = vshrl.u32 %v2727, 7
  %v2729 = vsub.s32 %v2248, %v2728
  %v2730 = vrot.slane %v1381, %v2729
  %v2731 = vlaneseq
  %v2732 = vshrl.u32 %v2731, 7
  %v2733 = vsub.s32 %v2253, %v2732
  %v2734 = vrot.slane %v1387, %v2733
  %v2735 = vsel %vm2258, %v2734, %v2730
  %v2736 = vlaneseq
  %v2737 = vshrl.u32 %v2736, 7
  %v2738 = vsub.s32 %v2260, %v2737
  %v2739 = vrot.slane %v1393, %v2738
  %v2740 = vsel %vm2265, %v2739, %v2735
  %v2741 = vlaneseq
  %v2742 = vshrl.u32 %v2741, 7
  %v2743 = vsub.s32 %v2267, %v2742
  %v2744 = vrot.slane %v1399, %v2743
  %v2745 = vsel %vm2272, %v2744, %v2740
  %v2746 = vlaneseq
  %v2747 = vshrl.u32 %v2746, 7
  %v2748 = vsub.s32 %v2274, %v2747
  %v2749 = vrot.slane %v1405, %v2748
  %v2750 = vsel %vm2279, %v2749, %v2745
  %v2751 = vlaneseq
  %v2752 = vshrl.u32 %v2751, 7
  %v2753 = vsub.s32 %v2281, %v2752
  %v2754 = vrot.slane %v1411, %v2753
  %v2755 = vsel %vm2286, %v2754, %v2750
  %v2756 = vlaneseq
  %v2757 = vshrl.u32 %v2756, 7
  %v2758 = vsub.s32 %v2288, %v2757
  %v2759 = vrot.slane %v1417, %v2758
  %v2760 = vsel %vm2293, %v2759, %v2755
  %v2761 = vlaneseq
  %v2762 = vshrl.u32 %v2761, 7
  %v2763 = vsub.s32 %v2295, %v2762
  %v2764 = vrot.slane %v1423, %v2763
  %v2765 = vsel %vm2300, %v2764, %v2760
  %v2766 = vlaneseq
  %v2767 = vshrl.u32 %v2766, 7
  %v2768 = vsub.s32 %v2302, %v2767
  %v2769 = vrot.slane %v1432, %v2768
  %v2770 = vsel %vm2307, %v2769, %v2765
  %v2771 = vlaneseq
  %v2772 = vshrl.u32 %v2771, 7
  %v2773 = vsub.s32 %v2248, %v2772
  %v2774 = vrot.slane %v1438, %v2773
  %v2775 = vlaneseq
  %v2776 = vshrl.u32 %v2775, 7
  %v2777 = vsub.s32 %v2253, %v2776
  %v2778 = vrot.slane %v1444, %v2777
  %v2779 = vsel %vm2258, %v2778, %v2774
  %v2780 = vlaneseq
  %v2781 = vshrl.u32 %v2780, 7
  %v2782 = vsub.s32 %v2260, %v2781
  %v2783 = vrot.slane %v1450, %v2782
  %v2784 = vsel %vm2265, %v2783, %v2779
  %v2785 = vlaneseq
  %v2786 = vshrl.u32 %v2785, 7
  %v2787 = vsub.s32 %v2267, %v2786
  %v2788 = vrot.slane %v1456, %v2787
  %v2789 = vsel %vm2272, %v2788, %v2784
  %v2790 = vlaneseq
  %v2791 = vshrl.u32 %v2790, 7
  %v2792 = vsub.s32 %v2274, %v2791
  %v2793 = vrot.slane %v1462, %v2792
  %v2794 = vsel %vm2279, %v2793, %v2789
  %v2795 = vlaneseq
  %v2796 = vshrl.u32 %v2795, 7
  %v2797 = vsub.s32 %v2281, %v2796
  %v2798 = vrot.slane %v1468, %v2797
  %v2799 = vsel %vm2286, %v2798, %v2794
  %v2800 = vlaneseq
  %v2801 = vshrl.u32 %v2800, 7
  %v2802 = vsub.s32 %v2288, %v2801
  %v2803 = vrot.slane %v1474, %v2802
  %v2804 = vsel %vm2293, %v2803, %v2799
  %v2805 = vlaneseq
  %v2806 = vshrl.u32 %v2805, 7
  %v2807 = vsub.s32 %v2295, %v2806
  %v2808 = vrot.slane %v1480, %v2807
  %v2809 = vsel %vm2300, %v2808, %v2804
  %v2810 = vlaneseq
  %v2811 = vshrl.u32 %v2810, 7
  %v2812 = vsub.s32 %v2302, %v2811
  %v2813 = vrot.slane %v1486, %v2812
  %v2814 = vsel %vm2307, %v2813, %v2809
  %v2815 = vlaneseq
  %v2816 = vshrl.u32 %v2815, 7
  %v2817 = vsub.s32 %v2309, %v2816
  %v2818 = vrot.slane %v1492, %v2817
  %v2819 = vsel %vm2314, %v2818, %v2814
  %v2820 = vlaneseq
  %v2821 = vshrl.u32 %v2820, 7
  %v2822 = vsub.s32 %v2316, %v2821
  %v2823 = vrot.slane %v1498, %v2822
  %v2824 = vsel %vm2321, %v2823, %v2819
  %v2825 = vlaneseq
  %v2826 = vshrl.u32 %v2825, 7
  %v2827 = vsub.s32 %v2323, %v2826
  %v2828 = vrot.slane %v1504, %v2827
  %v2829 = vsel %vm2328, %v2828, %v2824
  %v2830 = vlaneseq
  %v2831 = vshrl.u32 %v2830, 7
  %v2832 = vsub.s32 %v2330, %v2831
  %v2833 = vrot.slane %v1510, %v2832
  %v2834 = vsel %vm2335, %v2833, %v2829
  %v2835 = vlaneseq
  %v2836 = vshrl.u32 %v2835, 7
  %v2837 = vsub.s32 %v2337, %v2836
  %v2838 = vrot.slane %v1516, %v2837
  %v2839 = vsel %vm2342, %v2838, %v2834
  %v2840 = vlaneseq
  %v2841 = vshrl.u32 %v2840, 7
  %v2842 = vsub.s32 %v2344, %v2841
  %v2843 = vrot.slane %v1522, %v2842
  %v2844 = vsel %vm2349, %v2843, %v2839
  %v2845 = vlaneseq
  %v2846 = vshrl.u32 %v2845, 7
  %v2847 = vsub.s32 %v2351, %v2846
  %v2848 = vrot.slane %v1528, %v2847
  %v2849 = vsel %vm2356, %v2848, %v2844
  %v2850 = vlaneseq
  %v2851 = vshrl.u32 %v2850, 7
  %v2852 = vsub.s32 %v2248, %v2851
  %v2853 = vrot.slane %v1534, %v2852
  %v2854 = vlaneseq
  %v2855 = vshrl.u32 %v2854, 7
  %v2856 = vsub.s32 %v2253, %v2855
  %v2857 = vrot.slane %v1540, %v2856
  %v2858 = vsel %vm2258, %v2857, %v2853
  %v2859 = vlaneseq
  %v2860 = vshrl.u32 %v2859, 7
  %v2861 = vsub.s32 %v2260, %v2860
  %v2862 = vrot.slane %v1546, %v2861
  %v2863 = vsel %vm2265, %v2862, %v2858
  %v2864 = vlaneseq
  %v2865 = vshrl.u32 %v2864, 7
  %v2866 = vsub.s32 %v2267, %v2865
  %v2867 = vrot.slane %v1552, %v2866
  %v2868 = vsel %vm2272, %v2867, %v2863
  %v2869 = vlaneseq
  %v2870 = vshrl.u32 %v2869, 7
  %v2871 = vsub.s32 %v2274, %v2870
  %v2872 = vrot.slane %v1558, %v2871
  %v2873 = vsel %vm2279, %v2872, %v2868
  %v2874 = vlaneseq
  %v2875 = vshrl.u32 %v2874, 7
  %v2876 = vsub.s32 %v2281, %v2875
  %v2877 = vrot.slane %v1564, %v2876
  %v2878 = vsel %vm2286, %v2877, %v2873
  %v2879 = vlaneseq
  %v2880 = vshrl.u32 %v2879, 7
  %v2881 = vsub.s32 %v2288, %v2880
  %v2882 = vrot.slane %v1570, %v2881
  %v2883 = vsel %vm2293, %v2882, %v2878
  %v2884 = vlaneseq
  %v2885 = vshrl.u32 %v2884, 7
  %v2886 = vsub.s32 %v2295, %v2885
  %v2887 = vrot.slane %v1576, %v2886
  %v2888 = vsel %vm2300, %v2887, %v2883
  %v2889 = vlaneseq
  %v2890 = vshrl.u32 %v2889, 7
  %v2891 = vsub.s32 %v2302, %v2890
  %v2892 = vrot.slane %v1585, %v2891
  %v2893 = vsel %vm2307, %v2892, %v2888
  %v2894 = vlaneseq
  %v2895 = vshrl.u32 %v2894, 7
  %v2896 = vsub.s32 %v2248, %v2895
  %v2897 = vrot.slane %v1591, %v2896
  %v2898 = vlaneseq
  %v2899 = vshrl.u32 %v2898, 7
  %v2900 = vsub.s32 %v2253, %v2899
  %v2901 = vrot.slane %v1597, %v2900
  %v2902 = vsel %vm2258, %v2901, %v2897
  %v2903 = vlaneseq
  %v2904 = vshrl.u32 %v2903, 7
  %v2905 = vsub.s32 %v2260, %v2904
  %v2906 = vrot.slane %v1603, %v2905
  %v2907 = vsel %vm2265, %v2906, %v2902
  %v2908 = vlaneseq
  %v2909 = vshrl.u32 %v2908, 7
  %v2910 = vsub.s32 %v2267, %v2909
  %v2911 = vrot.slane %v1609, %v2910
  %v2912 = vsel %vm2272, %v2911, %v2907
  %v2913 = vlaneseq
  %v2914 = vshrl.u32 %v2913, 7
  %v2915 = vsub.s32 %v2274, %v2914
  %v2916 = vrot.slane %v1615, %v2915
  %v2917 = vsel %vm2279, %v2916, %v2912
  %v2918 = vlaneseq
  %v2919 = vshrl.u32 %v2918, 7
  %v2920 = vsub.s32 %v2281, %v2919
  %v2921 = vrot.slane %v1621, %v2920
  %v2922 = vsel %vm2286, %v2921, %v2917
  %v2923 = vlaneseq
  %v2924 = vshrl.u32 %v2923, 7
  %v2925 = vsub.s32 %v2288, %v2924
  %v2926 = vrot.slane %v1627, %v2925
  %v2927 = vsel %vm2293, %v2926, %v2922
  %v2928 = vlaneseq
  %v2929 = vshrl.u32 %v2928, 7
  %v2930 = vsub.s32 %v2295, %v2929
  %v2931 = vrot.slane %v1633, %v2930
  %v2932 = vsel %vm2300, %v2931, %v2927
  %v2933 = vlaneseq
  %v2934 = vshrl.u32 %v2933, 7
  %v2935 = vsub.s32 %v2302, %v2934
  %v2936 = vrot.slane %v1639, %v2935
  %v2937 = vsel %vm2307, %v2936, %v2932
  %v2938 = vlaneseq
  %v2939 = vshrl.u32 %v2938, 7
  %v2940 = vsub.s32 %v2309, %v2939
  %v2941 = vrot.slane %v1645, %v2940
  %v2942 = vsel %vm2314, %v2941, %v2937
  %v2943 = vlaneseq
  %v2944 = vshrl.u32 %v2943, 7
  %v2945 = vsub.s32 %v2316, %v2944
  %v2946 = vrot.slane %v1651, %v2945
  %v2947 = vsel %vm2321, %v2946, %v2942
  %v2948 = vlaneseq
  %v2949 = vshrl.u32 %v2948, 7
  %v2950 = vsub.s32 %v2323, %v2949
  %v2951 = vrot.slane %v1657, %v2950
  %v2952 = vsel %vm2328, %v2951, %v2947
  %v2953 = vlaneseq
  %v2954 = vshrl.u32 %v2953, 7
  %v2955 = vsub.s32 %v2330, %v2954
  %v2956 = vrot.slane %v1663, %v2955
  %v2957 = vsel %vm2335, %v2956, %v2952
  %v2958 = vlaneseq
  %v2959 = vshrl.u32 %v2958, 7
  %v2960 = vsub.s32 %v2337, %v2959
  %v2961 = vrot.slane %v1669, %v2960
  %v2962 = vsel %vm2342, %v2961, %v2957
  %v2963 = vlaneseq
  %v2964 = vshrl.u32 %v2963, 7
  %v2965 = vsub.s32 %v2344, %v2964
  %v2966 = vrot.slane %v1675, %v2965
  %v2967 = vsel %vm2349, %v2966, %v2962
  %v2968 = vlaneseq
  %v2969 = vshrl.u32 %v2968, 7
  %v2970 = vsub.s32 %v2351, %v2969
  %v2971 = vrot.slane %v1681, %v2970
  %v2972 = vsel %vm2356, %v2971, %v2967
  %v2973 = vlaneseq
  %v2974 = vshrl.u32 %v2973, 7
  %v2975 = vsub.s32 %v2248, %v2974
  %v2976 = vrot.slane %v1687, %v2975
  %v2977 = vlaneseq
  %v2978 = vshrl.u32 %v2977, 7
  %v2979 = vsub.s32 %v2253, %v2978
  %v2980 = vrot.slane %v1693, %v2979
  %v2981 = vsel %vm2258, %v2980, %v2976
  %v2982 = vlaneseq
  %v2983 = vshrl.u32 %v2982, 7
  %v2984 = vsub.s32 %v2260, %v2983
  %v2985 = vrot.slane %v1699, %v2984
  %v2986 = vsel %vm2265, %v2985, %v2981
  %v2987 = vlaneseq
  %v2988 = vshrl.u32 %v2987, 7
  %v2989 = vsub.s32 %v2267, %v2988
  %v2990 = vrot.slane %v1705, %v2989
  %v2991 = vsel %vm2272, %v2990, %v2986
  %v2992 = vlaneseq
  %v2993 = vshrl.u32 %v2992, 7
  %v2994 = vsub.s32 %v2274, %v2993
  %v2995 = vrot.slane %v1711, %v2994
  %v2996 = vsel %vm2279, %v2995, %v2991
  %v2997 = vlaneseq
  %v2998 = vshrl.u32 %v2997, 7
  %v2999 = vsub.s32 %v2281, %v2998
  %v3000 = vrot.slane %v1717, %v2999
  %v3001 = vsel %vm2286, %v3000, %v2996
  %v3002 = vlaneseq
  %v3003 = vshrl.u32 %v3002, 7
  %v3004 = vsub.s32 %v2288, %v3003
  %v3005 = vrot.slane %v1723, %v3004
  %v3006 = vsel %vm2293, %v3005, %v3001
  %v3007 = vlaneseq
  %v3008 = vshrl.u32 %v3007, 7
  %v3009 = vsub.s32 %v2295, %v3008
  %v3010 = vrot.slane %v1729, %v3009
  %v3011 = vsel %vm2300, %v3010, %v3006
  %v3012 = vlaneseq
  %v3013 = vshrl.u32 %v3012, 7
  %v3014 = vsub.s32 %v2302, %v3013
  %v3015 = vrot.slane %v1738, %v3014
  %v3016 = vsel %vm2307, %v3015, %v3011
  %v3017 = vlaneseq
  %v3018 = vshrl.u32 %v3017, 7
  %v3019 = vsub.s32 %v2248, %v3018
  %v3020 = vrot.slane %v1744, %v3019
  %v3021 = vlaneseq
  %v3022 = vshrl.u32 %v3021, 7
  %v3023 = vsub.s32 %v2253, %v3022
  %v3024 = vrot.slane %v1750, %v3023
  %v3025 = vsel %vm2258, %v3024, %v3020
  %v3026 = vlaneseq
  %v3027 = vshrl.u32 %v3026, 7
  %v3028 = vsub.s32 %v2260, %v3027
  %v3029 = vrot.slane %v1756, %v3028
  %v3030 = vsel %vm2265, %v3029, %v3025
  %v3031 = vlaneseq
  %v3032 = vshrl.u32 %v3031, 7
  %v3033 = vsub.s32 %v2267, %v3032
  %v3034 = vrot.slane %v1762, %v3033
  %v3035 = vsel %vm2272, %v3034, %v3030
  %v3036 = vlaneseq
  %v3037 = vshrl.u32 %v3036, 7
  %v3038 = vsub.s32 %v2274, %v3037
  %v3039 = vrot.slane %v1768, %v3038
  %v3040 = vsel %vm2279, %v3039, %v3035
  %v3041 = vlaneseq
  %v3042 = vshrl.u32 %v3041, 7
  %v3043 = vsub.s32 %v2281, %v3042
  %v3044 = vrot.slane %v1774, %v3043
  %v3045 = vsel %vm2286, %v3044, %v3040
  %v3046 = vlaneseq
  %v3047 = vshrl.u32 %v3046, 7
  %v3048 = vsub.s32 %v2288, %v3047
  %v3049 = vrot.slane %v1780, %v3048
  %v3050 = vsel %vm2293, %v3049, %v3045
  %v3051 = vlaneseq
  %v3052 = vshrl.u32 %v3051, 7
  %v3053 = vsub.s32 %v2295, %v3052
  %v3054 = vrot.slane %v1786, %v3053
  %v3055 = vsel %vm2300, %v3054, %v3050
  %v3056 = vlaneseq
  %v3057 = vshrl.u32 %v3056, 7
  %v3058 = vsub.s32 %v2302, %v3057
  %v3059 = vrot.slane %v1792, %v3058
  %v3060 = vsel %vm2307, %v3059, %v3055
  %v3061 = vlaneseq
  %v3062 = vshrl.u32 %v3061, 7
  %v3063 = vsub.s32 %v2309, %v3062
  %v3064 = vrot.slane %v1798, %v3063
  %v3065 = vsel %vm2314, %v3064, %v3060
  %v3066 = vlaneseq
  %v3067 = vshrl.u32 %v3066, 7
  %v3068 = vsub.s32 %v2316, %v3067
  %v3069 = vrot.slane %v1804, %v3068
  %v3070 = vsel %vm2321, %v3069, %v3065
  %v3071 = vlaneseq
  %v3072 = vshrl.u32 %v3071, 7
  %v3073 = vsub.s32 %v2323, %v3072
  %v3074 = vrot.slane %v1810, %v3073
  %v3075 = vsel %vm2328, %v3074, %v3070
  %v3076 = vlaneseq
  %v3077 = vshrl.u32 %v3076, 7
  %v3078 = vsub.s32 %v2330, %v3077
  %v3079 = vrot.slane %v1816, %v3078
  %v3080 = vsel %vm2335, %v3079, %v3075
  %v3081 = vlaneseq
  %v3082 = vshrl.u32 %v3081, 7
  %v3083 = vsub.s32 %v2337, %v3082
  %v3084 = vrot.slane %v1822, %v3083
  %v3085 = vsel %vm2342, %v3084, %v3080
  %v3086 = vlaneseq
  %v3087 = vshrl.u32 %v3086, 7
  %v3088 = vsub.s32 %v2344, %v3087
  %v3089 = vrot.slane %v1828, %v3088
  %v3090 = vsel %vm2349, %v3089, %v3085
  %v3091 = vlaneseq
  %v3092 = vshrl.u32 %v3091, 7
  %v3093 = vsub.s32 %v2351, %v3092
  %v3094 = vrot.slane %v1834, %v3093
  %v3095 = vsel %vm2356, %v3094, %v3090
  %v3096 = vlaneseq
  %v3097 = vshrl.u32 %v3096, 7
  %v3098 = vsub.s32 %v2248, %v3097
  %v3099 = vrot.slane %v1840, %v3098
  %v3100 = vlaneseq
  %v3101 = vshrl.u32 %v3100, 7
  %v3102 = vsub.s32 %v2253, %v3101
  %v3103 = vrot.slane %v1846, %v3102
  %v3104 = vsel %vm2258, %v3103, %v3099
  %v3105 = vlaneseq
  %v3106 = vshrl.u32 %v3105, 7
  %v3107 = vsub.s32 %v2260, %v3106
  %v3108 = vrot.slane %v1852, %v3107
  %v3109 = vsel %vm2265, %v3108, %v3104
  %v3110 = vlaneseq
  %v3111 = vshrl.u32 %v3110, 7
  %v3112 = vsub.s32 %v2267, %v3111
  %v3113 = vrot.slane %v1858, %v3112
  %v3114 = vsel %vm2272, %v3113, %v3109
  %v3115 = vlaneseq
  %v3116 = vshrl.u32 %v3115, 7
  %v3117 = vsub.s32 %v2274, %v3116
  %v3118 = vrot.slane %v1864, %v3117
  %v3119 = vsel %vm2279, %v3118, %v3114
  %v3120 = vlaneseq
  %v3121 = vshrl.u32 %v3120, 7
  %v3122 = vsub.s32 %v2281, %v3121
  %v3123 = vrot.slane %v1870, %v3122
  %v3124 = vsel %vm2286, %v3123, %v3119
  %v3125 = vlaneseq
  %v3126 = vshrl.u32 %v3125, 7
  %v3127 = vsub.s32 %v2288, %v3126
  %v3128 = vrot.slane %v1876, %v3127
  %v3129 = vsel %vm2293, %v3128, %v3124
  %v3130 = vlaneseq
  %v3131 = vshrl.u32 %v3130, 7
  %v3132 = vsub.s32 %v2295, %v3131
  %v3133 = vrot.slane %v1882, %v3132
  %v3134 = vsel %vm2300, %v3133, %v3129
  %v3135 = vlaneseq
  %v3136 = vshrl.u32 %v3135, 7
  %v3137 = vsub.s32 %v2302, %v3136
  %v3138 = vrot.slane %v1891, %v3137
  %v3139 = vsel %vm2307, %v3138, %v3134
  %v3140 = vlaneseq
  %v3141 = vshrl.u32 %v3140, 7
  %v3142 = vsub.s32 %v2248, %v3141
  %v3143 = vrot.slane %v1897, %v3142
  %v3144 = vlaneseq
  %v3145 = vshrl.u32 %v3144, 7
  %v3146 = vsub.s32 %v2253, %v3145
  %v3147 = vrot.slane %v1903, %v3146
  %v3148 = vsel %vm2258, %v3147, %v3143
  %v3149 = vlaneseq
  %v3150 = vshrl.u32 %v3149, 7
  %v3151 = vsub.s32 %v2260, %v3150
  %v3152 = vrot.slane %v1909, %v3151
  %v3153 = vsel %vm2265, %v3152, %v3148
  %v3154 = vlaneseq
  %v3155 = vshrl.u32 %v3154, 7
  %v3156 = vsub.s32 %v2267, %v3155
  %v3157 = vrot.slane %v1915, %v3156
  %v3158 = vsel %vm2272, %v3157, %v3153
  %v3159 = vlaneseq
  %v3160 = vshrl.u32 %v3159, 7
  %v3161 = vsub.s32 %v2274, %v3160
  %v3162 = vrot.slane %v1921, %v3161
  %v3163 = vsel %vm2279, %v3162, %v3158
  %v3164 = vlaneseq
  %v3165 = vshrl.u32 %v3164, 7
  %v3166 = vsub.s32 %v2281, %v3165
  %v3167 = vrot.slane %v1927, %v3166
  %v3168 = vsel %vm2286, %v3167, %v3163
  %v3169 = vlaneseq
  %v3170 = vshrl.u32 %v3169, 7
  %v3171 = vsub.s32 %v2288, %v3170
  %v3172 = vrot.slane %v1933, %v3171
  %v3173 = vsel %vm2293, %v3172, %v3168
  %v3174 = vlaneseq
  %v3175 = vshrl.u32 %v3174, 7
  %v3176 = vsub.s32 %v2295, %v3175
  %v3177 = vrot.slane %v1939, %v3176
  %v3178 = vsel %vm2300, %v3177, %v3173
  %v3179 = vlaneseq
  %v3180 = vshrl.u32 %v3179, 7
  %v3181 = vsub.s32 %v2302, %v3180
  %v3182 = vrot.slane %v1945, %v3181
  %v3183 = vsel %vm2307, %v3182, %v3178
  %v3184 = vlaneseq
  %v3185 = vshrl.u32 %v3184, 7
  %v3186 = vsub.s32 %v2309, %v3185
  %v3187 = vrot.slane %v1951, %v3186
  %v3188 = vsel %vm2314, %v3187, %v3183
  %v3189 = vlaneseq
  %v3190 = vshrl.u32 %v3189, 7
  %v3191 = vsub.s32 %v2316, %v3190
  %v3192 = vrot.slane %v1957, %v3191
  %v3193 = vsel %vm2321, %v3192, %v3188
  %v3194 = vlaneseq
  %v3195 = vshrl.u32 %v3194, 7
  %v3196 = vsub.s32 %v2323, %v3195
  %v3197 = vrot.slane %v1963, %v3196
  %v3198 = vsel %vm2328, %v3197, %v3193
  %v3199 = vlaneseq
  %v3200 = vshrl.u32 %v3199, 7
  %v3201 = vsub.s32 %v2330, %v3200
  %v3202 = vrot.slane %v1969, %v3201
  %v3203 = vsel %vm2335, %v3202, %v3198
  %v3204 = vlaneseq
  %v3205 = vshrl.u32 %v3204, 7
  %v3206 = vsub.s32 %v2337, %v3205
  %v3207 = vrot.slane %v1975, %v3206
  %v3208 = vsel %vm2342, %v3207, %v3203
  %v3209 = vlaneseq
  %v3210 = vshrl.u32 %v3209, 7
  %v3211 = vsub.s32 %v2344, %v3210
  %v3212 = vrot.slane %v1981, %v3211
  %v3213 = vsel %vm2349, %v3212, %v3208
  %v3214 = vlaneseq
  %v3215 = vshrl.u32 %v3214, 7
  %v3216 = vsub.s32 %v2351, %v3215
  %v3217 = vrot.slane %v1987, %v3216
  %v3218 = vsel %vm2356, %v3217, %v3213
  %v3219 = vlaneseq
  %v3220 = vshrl.u32 %v3219, 7
  %v3221 = vsub.s32 %v2248, %v3220
  %v3222 = vrot.slane %v1993, %v3221
  %v3223 = vlaneseq
  %v3224 = vshrl.u32 %v3223, 7
  %v3225 = vsub.s32 %v2253, %v3224
  %v3226 = vrot.slane %v1999, %v3225
  %v3227 = vsel %vm2258, %v3226, %v3222
  %v3228 = vlaneseq
  %v3229 = vshrl.u32 %v3228, 7
  %v3230 = vsub.s32 %v2260, %v3229
  %v3231 = vrot.slane %v2005, %v3230
  %v3232 = vsel %vm2265, %v3231, %v3227
  %v3233 = vlaneseq
  %v3234 = vshrl.u32 %v3233, 7
  %v3235 = vsub.s32 %v2267, %v3234
  %v3236 = vrot.slane %v2011, %v3235
  %v3237 = vsel %vm2272, %v3236, %v3232
  %v3238 = vlaneseq
  %v3239 = vshrl.u32 %v3238, 7
  %v3240 = vsub.s32 %v2274, %v3239
  %v3241 = vrot.slane %v2017, %v3240
  %v3242 = vsel %vm2279, %v3241, %v3237
  %v3243 = vlaneseq
  %v3244 = vshrl.u32 %v3243, 7
  %v3245 = vsub.s32 %v2281, %v3244
  %v3246 = vrot.slane %v2023, %v3245
  %v3247 = vsel %vm2286, %v3246, %v3242
  %v3248 = vlaneseq
  %v3249 = vshrl.u32 %v3248, 7
  %v3250 = vsub.s32 %v2288, %v3249
  %v3251 = vrot.slane %v2029, %v3250
  %v3252 = vsel %vm2293, %v3251, %v3247
  %v3253 = vlaneseq
  %v3254 = vshrl.u32 %v3253, 7
  %v3255 = vsub.s32 %v2295, %v3254
  %v3256 = vrot.slane %v2035, %v3255
  %v3257 = vsel %vm2300, %v3256, %v3252
  %v3258 = vlaneseq
  %v3259 = vshrl.u32 %v3258, 7
  %v3260 = vsub.s32 %v2302, %v3259
  %v3261 = vrot.slane %v2044, %v3260
  %v3262 = vsel %vm2307, %v3261, %v3257
  %vm3263 = vcmask 1041409
  %v3264 = vsel %vm3263, %v2480, %v2357
  %vm3265 = vcmask 1042434
  %v3266 = vsel %vm3265, %v2603, %v3264
  %vm3267 = vcmask 1043459
  %v3268 = vsel %vm3267, %v2726, %v3266
  %vm3269 = vcmask 1044484
  %v3270 = vsel %vm3269, %v2849, %v3268
  %vm3271 = vcmask 1045509
  %v3272 = vsel %vm3271, %v2972, %v3270
  %vm3273 = vcmask 1046534
  %v3274 = vsel %vm3273, %v3095, %v3272
  %vm3275 = vcmask 1047559
  %v3276 = vsel %vm3275, %v3218, %v3274
  %v3277 = vsel %vm3263, %v2524, %v2401
  %v3278 = vsel %vm3265, %v2647, %v3277
  %v3279 = vsel %vm3267, %v2770, %v3278
  %v3280 = vsel %vm3269, %v2893, %v3279
  %v3281 = vsel %vm3271, %v3016, %v3280
  %v3282 = vsel %vm3273, %v3139, %v3281
  %v3283 = vsel %vm3275, %v3262, %v3282
  %v3286 = vadd.f32 %v2045, %v3276
  %v3287 = vadd.f32 %v2046, %v3283
  %3288 = vst [vmem:[#allocation2] sm:$0xff] %v3286
  %vm3289 = vcmask 556032
  %3290 = vst.msk [vmem:[#allocation2 + $0x8] sm:$0xff] %vm3289, %v3287
  // Predicated region
  $region14: #{_emb_head_pallas.2} parent=0 // pred_check
    %p3291 = pneg %p11
  $region15: #{_emb_head_pallas.2} parent=0 // pred_check_branch
    %3293 = sbr.rel (%p3291) target = $region17
  $region16: #{_emb_head_pallas.2} parent=0 // pred_region
    %v3294 = vld [vmem:[#allocation2] sm:$0xff]
    %v3295 = vld [vmem:[#allocation2 + $0x8] sm:$0xff]
    %v3296 = vmul.f32 %v3294, 0.0025
    %v3297 = vmul.f32 %v3295, 0.0025
    %v3298 = vld [vmem:[%s1] sm:$0xff]
    %v3299 = vld [vmem:[%s1 + $0x8] sm:$0xff]
    %v3300 = vld [vmem:[%s1 + $0x10] sm:$0xff]
    %v3301 = vld [vmem:[%s1 + $0x18] sm:$0xff]
    %v3302 = vld [vmem:[%s1 + $0x20] sm:$0xff]
    %v3303 = vld [vmem:[%s1 + $0x28] sm:$0xff]
    %v3304 = vld [vmem:[%s1 + $0x30] sm:$0xff]
    %v3305 = vld [vmem:[%s1 + $0x38] sm:$0xff]
    %v3306 = vld [vmem:[%s1 + $0x40] sm:$0xff]
    %v3307 = vld [vmem:[%s1 + $0x48] sm:$0xff]
    %v3308 = vld [vmem:[%s1 + $0x50] sm:$0xff]
    %v3309 = vld [vmem:[%s1 + $0x58] sm:$0xff]
    %v3310 = vld [vmem:[%s1 + $0x60] sm:$0xff]
    %v3311 = vld [vmem:[%s1 + $0x68] sm:$0xff]
    %v3312 = vld [vmem:[%s1 + $0x70] sm:$0xff]
    %v3313 = vld [vmem:[%s1 + $0x78] sm:$0xff]
    %v3314 = vld [vmem:[%s1 + $0x80] sm:$0xff]
    %v3315 = vld [vmem:[%s1 + $0x88] sm:$0xff]
    %v3316 = vld [vmem:[%s1 + $0x90] sm:$0xff]
    %v3317 = vld [vmem:[%s1 + $0x98] sm:$0xff]
    %v3318 = vld [vmem:[%s1 + $0xa0] sm:$0xff]
    %v3319 = vld [vmem:[%s1 + $0xa8] sm:$0xff]
    %v3320 = vld [vmem:[%s1 + $0xb0] sm:$0xff]
    %v3321 = vld [vmem:[%s1 + $0xb8] sm:$0xff]
    %v3322 = vld [vmem:[%s1 + $0xc0] sm:$0xf]
    %v3324 = vsel %vm3289, %v3297, 0
    %v3327 = vsel %vm963, %v3322, 0
    %3329 = vmatprep.subr.mxu0 0.0
    %3330 = vmatpush1.msra.mxu0 %v3298
    %3331 = vmatprep.subr.mxu0 0.0
    %3332 = vmatpush1.msra.mxu0 %v3299
    %3333 = vmatprep.subr.mxu0 0.0
    %3334 = vmatpush1.msra.mxu0 %v3300
    %3335 = vmatprep.subr.mxu0 0.0
    %3336 = vmatpush1.msra.mxu0 %v3301
    %3337 = vmatprep.subr.mxu0 0.0
    %3338 = vmatpush1.msra.mxu0 %v3302
    %3339 = vmatprep.subr.mxu0 0.0
    %3340 = vmatpush1.msra.mxu0 %v3303
    %3341 = vmatprep.subr.mxu0 0.0
    %3342 = vmatpush1.msra.mxu0 %v3304
    %3343 = vmatprep.subr.mxu0 0.0
    %3344 = vmatpush1.msra.mxu0 %v3305
    %3345 = vmatprep.subr.mxu0 0.0
    %3346 = vmatpush1.msra.mxu0 %v3306
    %3347 = vmatprep.subr.mxu0 0.0
    %3348 = vmatpush1.msra.mxu0 %v3307
    %3349 = vmatprep.subr.mxu0 0.0
    %3350 = vmatpush1.msra.mxu0 %v3308
    %3351 = vmatprep.subr.mxu0 0.0
    %3352 = vmatpush1.msra.mxu0 %v3309
    %3353 = vmatprep.subr.mxu0 0.0
    %3354 = vmatpush1.msra.mxu0 %v3310
    %3355 = vmatprep.subr.mxu0 0.0
    %3356 = vmatpush1.msra.mxu0 %v3311
    %3357 = vmatprep.subr.mxu0 0.0
    %3358 = vmatpush1.msra.mxu0 %v3312
    %3359 = vmatprep.subr.mxu0 0.0
    %3360 = vmatpush1.msra.mxu0 %v3313
    %3361 = vmatprep.subr.mxu0 0.0
    %3362 = vmatpush1.msra.mxu0 %v3314
    %3363 = vmatprep.subr.mxu0 0.0
    %3364 = vmatpush1.msra.mxu0 %v3315
    %3365 = vmatprep.subr.mxu0 0.0
    %3366 = vmatpush1.msra.mxu0 %v3316
    %3367 = vmatprep.subr.mxu0 0.0
    %3368 = vmatpush1.msra.mxu0 %v3317
    %3369 = vmatprep.subr.mxu0 0.0
    %3370 = vmatpush1.msra.mxu0 %v3318
    %3371 = vmatprep.subr.mxu0 0.0
    %3372 = vmatpush1.msra.mxu0 %v3319
    %3373 = vmatprep.subr.mxu0 0.0
    %3374 = vmatpush1.msra.mxu0 %v3320
    %3375 = vmatprep.subr.mxu0 0.0
    %3376 = vmatpush1.msra.mxu0 %v3321
    %3377 = vmatprep.subr.mxu0 0.0
    %3378 = vmatpush1.msra.mxu0 %v3327
    %3379 = vmatprep.subr.mxu0 0.0
    %3380 = vmatpush1.msra.mxu0 0.0
    %3381 = vmatprep.subr.mxu0 0.0
    %3382 = vmatpush1.msra.mxu0 0.0
    %3383 = vmatprep.subr.mxu0 0.0
    %3384 = vmatpush1.msra.mxu0 0.0
    %3385 = vmatprep.subr.mxu0 0.0
    %3386 = vmatpush1.msra.mxu0 0.0
    %3387 = vmatprep.subr.mxu0 0.0
    %3388 = vmatpush1.msra.mxu0 0.0
    %3389 = vmatprep.subr.mxu0 0.0
    %3390 = vmatpush1.msra.mxu0 0.0
    %3391 = vmatprep.subr.mxu0 0.0
    %3392 = vmatpush1.msra.mxu0 0.0
    %3393 = vmatprep.mubr.f32.mxu0 %v3324
    %3394 = vmatmul.mubr.f32.gmra.mrb[0].mxu0 %v3296
    %v3395 = vpop.f32.mrb[0].mxu0
    %v3396 = vadd.f32 0.0, %v3395
    %v3397 = vpop.f32.mrb[0].mxu0
    %3398 = vdwg.mxu0
    %3399 = vst [vmem:[%s2] sm:$0xff] %v3396
  $region17: #{_emb_head_pallas.2} parent=0 // pred_fallthru
    _
  // Predicated region
  $region18: #{_emb_head_pallas.2} parent=0 // pred_check
    _
  $region19: #{_emb_head_pallas.2} parent=0 // pred_check_branch
    %3401 = sbr.rel (0) target = $region21
  $region20: #{_emb_head_pallas.2} parent=0 // pred_region
    _
  $region21: #{_emb_head_pallas.2} parent=0 // pred_fallthru
    _
  // Predicated region
  $region22: #{_emb_head_pallas.2} parent=0 // pred_check
    _
  $region23: #{_emb_head_pallas.2} parent=0 // pred_check_branch
    %3403 = sbr.rel (0) target = $region25
  $region24: #{_emb_head_pallas.2} parent=0 // pred_region
    _
  $region25: #{_emb_head_pallas.2} parent=0 // pred_fallthru
    _

</llo_original>
